<compile_context>
chip_gen: v7x
topology: tpu7x:2x2x1
jax: 0.10.0
libtpu: 0.0.40
codegen_flags: <defaults>
</compile_context>

<pallas_src>
import functools

import jax
import jax.numpy as jnp
from jax.experimental import pallas as pl
from jax.experimental.pallas import tpu as pltpu


# ----------------------------- SAGE layer kernel -----------------------------

def _sage_layer_kernel(a_ref, xk_ref, xs_ref, w_ref, b_ref, out_ref, acc_ref,
                       *, apply_relu):
    """One GraphSAGE('mean') layer, tiled over node rows (i) x adjacency cols (k).

    acc accumulates the mean-neighbor aggregation in f32; on the last k tile the
    self and aggregated features are concatenated ([x | agg]) and pushed through a
    single fused (2F x H) bf16 matmul on the MXU (f32 accumulation), then bias /
    optional ReLU in f32.
    """
    k = pl.program_id(1)

    @pl.when(k == 0)
    def _init():
        acc_ref[...] = jnp.zeros_like(acc_ref)

    # partial mean-neighbor aggregation: (tm, tk) @ (tk, F), bf16 -> f32
    acc_ref[...] += jnp.dot(a_ref[...], xk_ref[...],
                            preferred_element_type=jnp.float32)

    @pl.when(k == pl.num_programs(1) - 1)
    def _finalize():
        agg = acc_ref[...].astype(xs_ref.dtype)                  # bf16 MXU operand
        cat = jnp.concatenate([xs_ref[...], agg], axis=-1)       # (tm, 2F)
        h = jnp.dot(cat, w_ref[...], preferred_element_type=jnp.float32)
        h = h + b_ref[...]
        if apply_relu:
            h = jnp.maximum(h, 0.0)
        out_ref[...] = h.astype(out_ref.dtype)


def sage_layer(a_bf16, feats, w_cat, bias, *, out_dtype, apply_relu,
               tm=128, tk=128):
    """Tiled GraphSAGE layer.  a_bf16: (N, N) row-normalized adjacency (bf16),
    feats: (N, F) bf16, w_cat: (2F, H) bf16 ([Wself; Wneigh]), bias: (1, H) f32."""
    n = a_bf16.shape[0]
    f = feats.shape[1]
    h_dim = w_cat.shape[1]
    assert n % tm == 0 and n % tk == 0, "num_nodes must be a multiple of the tile"
    assert f % 128 == 0 and h_dim % 128 == 0, "feature dims must be 128-lane padded"

    kernel = functools.partial(_sage_layer_kernel, apply_relu=apply_relu)
    return pl.pallas_call(
        kernel,
        out_shape=jax.ShapeDtypeStruct((n, h_dim), out_dtype),
        grid_spec=pltpu.PrefetchScalarGridSpec(
            num_scalar_prefetch=0,
            grid=(n // tm, n // tk),
            in_specs=[
                pl.BlockSpec((tm, tk), lambda i, k: (i, k)),        # A_norm tile
                pl.BlockSpec((tk, f), lambda i, k: (k, 0)),         # neighbor feats
                pl.BlockSpec((tm, f), lambda i, k: (i, 0)),         # self feats
                pl.BlockSpec((2 * f, h_dim), lambda i, k: (0, 0)),  # [Wself; Wneigh]
                pl.BlockSpec((1, h_dim), lambda i, k: (0, 0)),      # bias
            ],
            out_specs=pl.BlockSpec((tm, h_dim), lambda i, k: (i, 0)),
            scratch_shapes=[pltpu.VMEM((tm, f), jnp.float32)],      # f32 accumulator
        ),
        compiler_params=pltpu.CompilerParams(
            dimension_semantics=("parallel", "arbitrary")),
    )(a_bf16, feats, feats, w_cat, bias)


# ----------------------- fused pos+neg dot-product predictor -----------------------

def _edge_score_kernel(ps_ref, pd_ref, ns_ref, nd_ref, h_ref,
                       pos_out_ref, neg_out_ref, ubuf_ref, vbuf_ref):
    """Per-edge <h[u], h[v]> for both the positive and negative edge sets.

    Edge endpoints come in as scalar-prefetched int32 indices (SMEM); their rows of
    h (resident in VMEM) are gathered with dynamic sublane slices into scratch, then
    the per-edge dot products are emitted lane-dense as a (1, TE) tile.
    """
    t = pl.program_id(0)
    te, _ = ubuf_ref.shape
    base = t * te

    def scores_for(src_ref, dst_ref):
        def gather(e, carry):
            s = src_ref[base + e]
            d = dst_ref[base + e]
            ubuf_ref[pl.ds(e, 1), :] = h_ref[pl.ds(s, 1), :]
            vbuf_ref[pl.ds(e, 1), :] = h_ref[pl.ds(d, 1), :]
            return carry

        jax.lax.fori_loop(0, te, gather, 0)

        hu = ubuf_ref[...]                                   # (TE, F) f32
        hv = vbuf_ref[...]                                   # (TE, F) f32
        # scores[e] = <hu[e], hv[e]> written lane-dense as (1, TE):
        # diagonal of hu @ hv^T via an iota mask + sublane reduce (no relayout).
        p = jax.lax.dot_general(hu, hv, (((1,), (1,)), ((), ())),
                                preferred_element_type=jnp.float32)   # (TE, TE)
        rows = jax.lax.broadcasted_iota(jnp.int32, (te, te), 0)
        cols = jax.lax.broadcasted_iota(jnp.int32, (te, te), 1)
        diag = jnp.where(rows == cols, p, 0.0)
        return jnp.sum(diag, axis=0, keepdims=True)                   # (1, TE)

    pos_out_ref[...] = scores_for(ps_ref, pd_ref)
    neg_out_ref[...] = scores_for(ns_ref, nd_ref)


def dot_predictors(h, pos_src, pos_dst, neg_src, neg_dst, *, te=128):
    n, f = h.shape
    e_pad = pos_src.shape[0]
    assert e_pad % te == 0 and neg_src.shape[0] == e_pad
    num_tiles = e_pad // te

    return pl.pallas_call(
        _edge_score_kernel,
        out_shape=(jax.ShapeDtypeStruct((1, e_pad), jnp.float32),
                   jax.ShapeDtypeStruct((1, e_pad), jnp.float32)),
        grid_spec=pltpu.PrefetchScalarGridSpec(
            num_scalar_prefetch=4,          # pos_src, pos_dst, neg_src, neg_dst
            grid=(num_tiles,),
            # h stays resident in VMEM across all edge tiles (constant block index).
            # TODO(synk): for N*F too large for VMEM, keep h in memory_space=pl.ANY
            # and DMA-gather the endpoint rows with pltpu.make_async_copy instead.
            in_specs=[pl.BlockSpec((n, f), lambda t, ps, pd, ns, nd: (0, 0))],
            out_specs=[pl.BlockSpec((1, te), lambda t, ps, pd, ns, nd: (0, t)),
                       pl.BlockSpec((1, te), lambda t, ps, pd, ns, nd: (0, t))],
            scratch_shapes=[pltpu.VMEM((te, f), jnp.float32),
                            pltpu.VMEM((te, f), jnp.float32)],
        ),
        compiler_params=pltpu.CompilerParams(
            dimension_semantics=("parallel",)),
    )(pos_src, pos_dst, neg_src, neg_dst, h)


# ------------------------------- glue (plain JAX) -------------------------------

def build_adjacency(src, dst, num_nodes):
    """Dense row-normalized adjacency (mean aggregation), cast to bf16 MXU operand.

    TODO(synk): for real graph sizes replace the dense O(N^2) adjacency with a
    CSR/blocked-sparse aggregation driven by scalar-prefetched row offsets.
    """
    a = jnp.zeros((num_nodes, num_nodes), jnp.float32).at[dst, src].add(1.0)
    deg = jnp.sum(a, axis=1, keepdims=True)
    return (a / jnp.maximum(deg, 1.0)).astype(jnp.bfloat16)


def init_params(key, in_features, hidden_features, out_features):
    k1, k2 = jax.random.split(key, 2)

    def stacked_linear(k, fan_in, fan_out):
        # rows [0:fan_in] = W_self, rows [fan_in:2*fan_in] = W_neigh (fused K=2F matmul)
        w = jax.random.normal(k, (2 * fan_in, fan_out), jnp.float32)
        return (w / jnp.sqrt(jnp.float32(fan_in))).astype(jnp.bfloat16)

    return {
        "w1": stacked_linear(k1, in_features, hidden_features),
        "b1": jnp.zeros((1, hidden_features), jnp.float32),
        "w2": stacked_linear(k2, hidden_features, out_features),
        "b2": jnp.zeros((1, out_features), jnp.float32),
    }


def model_forward(params, pos_edges, neg_edges, x, *, edge_tile=128):
    """Equivalent of Model.forward(g, neg_g, x) -> (pos_scores, neg_scores)."""
    n = x.shape[0]
    a = build_adjacency(pos_edges[0], pos_edges[1], n)   # messages flow on g only
    x_bf = x.astype(jnp.bfloat16)

    h1 = sage_layer(a, x_bf, params["w1"], params["b1"],
                    out_dtype=jnp.bfloat16, apply_relu=True)
    h = sage_layer(a, h1, params["w2"], params["b2"],
                   out_dtype=jnp.float32, apply_relu=False)

    ep, en = pos_edges.shape[1], neg_edges.shape[1]
    e_pad = ((max(ep, en) + edge_tile - 1) // edge_tile) * edge_tile

    def pad(idx):
        return jnp.pad(idx.astype(jnp.int32), (0, e_pad - idx.shape[0]))

    pos_s, neg_s = dot_predictors(h, pad(pos_edges[0]), pad(pos_edges[1]),
                                  pad(neg_edges[0]), pad(neg_edges[1]),
                                  te=edge_tile)
    return pos_s[0, :ep][:, None], neg_s[0, :en][:, None]


def reference_forward(params, pos_edges, neg_edges, x):
    """Pure-JAX reference replicating the kernel's bf16 operand rounding."""
    a = build_adjacency(pos_edges[0], pos_edges[1], x.shape[0]).astype(jnp.float32)
    xb = x.astype(jnp.bfloat16).astype(jnp.float32)
    w1 = params["w1"].astype(jnp.float32)
    w2 = params["w2"].astype(jnp.float32)

    agg1 = (a @ xb).astype(jnp.bfloat16).astype(jnp.float32)
    h1 = jnp.maximum(jnp.concatenate([xb, agg1], axis=-1) @ w1 + params["b1"], 0.0)
    h1 = h1.astype(jnp.bfloat16).astype(jnp.float32)
    agg2 = (a @ h1).astype(jnp.bfloat16).astype(jnp.float32)
    h = jnp.concatenate([h1, agg2], axis=-1) @ w2 + params["b2"]

    def score(src, dst):
        return jnp.sum(h[src] * h[dst], axis=-1, keepdims=True)

    return score(pos_edges[0], pos_edges[1]), score(neg_edges[0], neg_edges[1])


if __name__ == "__main__":
    key = jax.random.PRNGKey(0)
    k_x, k_pe, k_ne, k_p = jax.random.split(key, 4)

    num_nodes = 256                                        # multiple of the 128-row tile
    in_features = hidden_features = out_features = 128     # 128-lane padded feature dims
    num_pos_edges = num_neg_edges = 256

    x = jax.random.normal(k_x, (num_nodes, in_features), jnp.float32)
    pos_edges = jax.random.randint(k_pe, (2, num_pos_edges), 0, num_nodes)
    neg_edges = jax.random.randint(k_ne, (2, num_neg_edges), 0, num_nodes)

    params = init_params(k_p, in_features, hidden_features, out_features)

    pos_score, neg_score = jax.jit(model_forward)(params, pos_edges, neg_edges, x)
    jax.block_until_ready((pos_score, neg_score))

    assert pos_score.shape == (num_pos_edges, 1)
    assert neg_score.shape == (num_neg_edges, 1)

    ref_pos, ref_neg = reference_forward(params, pos_edges, neg_edges, x)
    assert jnp.allclose(pos_score, ref_pos, rtol=5e-2, atol=5e-2), (
        float(jnp.max(jnp.abs(pos_score - ref_pos))))
    assert jnp.allclose(neg_score, ref_neg, rtol=5e-2, atol=5e-2), (
        float(jnp.max(jnp.abs(neg_score - ref_neg))))

    print("KERNEL_OK")
</pallas_src>

<mosaic_0001>
module attributes {stable_mosaic.version = 11 : i64} {
  func.func private @main(%arg0: i32) attributes {dimension_semantics = [#tpu.dimension_semantics<core_parallel>], iteration_bounds = array<i64: 2>, tpu.core_type = #tpu.core_type<sc_scalar_subcore>, window_params = []} {
    return
  }
}

module attributes {stable_mosaic.version = 11 : i64} {
  func.func private @main(%arg0: i32) attributes {dimension_semantics = [#tpu.dimension_semantics<core_parallel>], iteration_bounds = array<i64: 2>, tpu.core_type = #tpu.core_type<sc_scalar_subcore>, window_params = []} {
    return
  }
}

module attributes {stable_mosaic.version = 11 : i64} {
  func.func @_sage_layer_kernel(%arg0: i32, %arg1: i32, %arg2: memref<128x128xbf16, #tpu.memory_space<vmem>>, %arg3: memref<128x128xbf16, #tpu.memory_space<vmem>>, %arg4: memref<128x128xbf16, #tpu.memory_space<vmem>>, %arg5: memref<256x128xbf16, #tpu.memory_space<vmem>>, %arg6: memref<1x128xf32, #tpu.memory_space<vmem>>, %arg7: memref<128x128xbf16, #tpu.memory_space<vmem>>, %arg8: memref<128x128xf32, #tpu.memory_space<vmem>>) attributes {dimension_semantics = [#tpu.dimension_semantics<parallel>, #tpu.dimension_semantics<arbitrary>], iteration_bounds = array<i64: 2, 2>, scalar_prefetch = 0 : i64, scratch_operands = 1 : i64, tpu.core_type = #tpu.core_type<tc>, window_params = [{transform_indices = @transform_0, window_bounds = array<i64: 128, 128>}, {transform_indices = @transform_1, window_bounds = array<i64: 128, 128>}, {transform_indices = @transform_2, window_bounds = array<i64: 128, 128>}, {pipeline_mode = #tpu.pipeline_mode<synchronous>, transform_indices = @transform_3, window_bounds = array<i64: 256, 128>}, {pipeline_mode = #tpu.pipeline_mode<synchronous>, transform_indices = @transform_4, window_bounds = array<i64: 1, 128>}, {transform_indices = @transform_5, window_bounds = array<i64: 128, 128>}]} {
    %c0_i32 = arith.constant 0 : i32
    %0 = arith.cmpi eq, %arg1, %c0_i32 : i32
    %1 = arith.extui %0 : i1 to i32
    %c0_i32_0 = arith.constant 0 : i32
    %2 = arith.cmpi ne, %1, %c0_i32_0 : i32
    scf.if %2 {
      %cst_9 = arith.constant 0.000000e+00 : f32
      %12 = vector.broadcast %cst_9 : f32 to vector<128x128xf32>
      %c0_10 = arith.constant 0 : index
      %c0_11 = arith.constant 0 : index
      %13 = vector.load %arg8[%c0_10, %c0_11] : memref<128x128xf32, #tpu.memory_space<vmem>>, vector<128x128xf32>
      tpu.vector_store %arg8[%c0_10, %c0_11], %12 {strides = array<i32>} : memref<128x128xf32, #tpu.memory_space<vmem>>, vector<128x128xf32>,
    } else {
    }
    %c0 = arith.constant 0 : index
    %c0_1 = arith.constant 0 : index
    %3 = vector.load %arg8[%c0, %c0_1] : memref<128x128xf32, #tpu.memory_space<vmem>>, vector<128x128xf32>
    %c0_2 = arith.constant 0 : index
    %c0_3 = arith.constant 0 : index
    %4 = vector.load %arg2[%c0_2, %c0_3] : memref<128x128xbf16, #tpu.memory_space<vmem>>, vector<128x128xbf16>
    %c0_4 = arith.constant 0 : index
    %c0_5 = arith.constant 0 : index
    %5 = vector.load %arg3[%c0_4, %c0_5] : memref<128x128xbf16, #tpu.memory_space<vmem>>, vector<128x128xbf16>
    %cst = arith.constant dense<0.000000e+00> : vector<128x128xf32>
    %6 = tpu.matmul %4, %5, %cst {dimension_numbers = #tpu.dot_dimension_numbers<[1], [0], [0], [1], [0, 0, 1, 1], [], []>} : vector<128x128xbf16>, vector<128x128xbf16>, vector<128x128xf32> -> vector<128x128xf32>
    %7 = arith.addf %3, %6 : vector<128x128xf32>
    %c0_6 = arith.constant 0 : index
    %c0_7 = arith.constant 0 : index
    %8 = vector.load %arg8[%c0_6, %c0_7] : memref<128x128xf32, #tpu.memory_space<vmem>>, vector<128x128xf32>
    tpu.vector_store %arg8[%c0_6, %c0_7], %7 {strides = array<i32>} : memref<128x128xf32, #tpu.memory_space<vmem>>, vector<128x128xf32>,
    %c1_i32 = arith.constant 1 : i32
    %9 = arith.cmpi eq, %arg1, %c1_i32 : i32
    %10 = arith.extui %9 : i1 to i32
    %c0_i32_8 = arith.constant 0 : i32
    %11 = arith.cmpi ne, %10, %c0_i32_8 : i32
    scf.if %11 {
      %c0_9 = arith.constant 0 : index
      %c0_10 = arith.constant 0 : index
      %12 = vector.load %arg8[%c0_9, %c0_10] : memref<128x128xf32, #tpu.memory_space<vmem>>, vector<128x128xf32>
      %13 = arith.truncf %12 : vector<128x128xf32> to vector<128x128xbf16>
      %c0_11 = arith.constant 0 : index
      %c0_12 = arith.constant 0 : index
      %14 = vector.load %arg4[%c0_11, %c0_12] : memref<128x128xbf16, #tpu.memory_space<vmem>>, vector<128x128xbf16>
      %15 = tpu.concatenate %14, %13 in 1 : vector<128x128xbf16>, vector<128x128xbf16> -> vector<128x256xbf16>
      %c0_13 = arith.constant 0 : index
      %c0_14 = arith.constant 0 : index
      %16 = vector.load %arg5[%c0_13, %c0_14] : memref<256x128xbf16, #tpu.memory_space<vmem>>, vector<256x128xbf16>
      %cst_15 = arith.constant dense<0.000000e+00> : vector<128x128xf32>
      %17 = tpu.matmul %15, %16, %cst_15 {dimension_numbers = #tpu.dot_dimension_numbers<[1], [0], [0], [1], [0, 0, 1, 1], [], []>} : vector<128x256xbf16>, vector<256x128xbf16>, vector<128x128xf32> -> vector<128x128xf32>
      %c0_16 = arith.constant 0 : index
      %c0_17 = arith.constant 0 : index
      %18 = vector.load %arg6[%c0_16, %c0_17] : memref<1x128xf32, #tpu.memory_space<vmem>>, vector<1x128xf32>
      %19 = vector.broadcast %18 : vector<1x128xf32> to vector<128x128xf32>
      %20 = arith.addf %17, %19 : vector<128x128xf32>
      %cst_18 = arith.constant 0.000000e+00 : f32
      %21 = vector.broadcast %cst_18 : f32 to vector<128x128xf32>
      %22 = arith.maximumf %20, %21 : vector<128x128xf32>
      %23 = arith.truncf %22 : vector<128x128xf32> to vector<128x128xbf16>
      %c0_19 = arith.constant 0 : index
      %c0_20 = arith.constant 0 : index
      %24 = vector.load %arg7[%c0_19, %c0_20] : memref<128x128xbf16, #tpu.memory_space<vmem>>, vector<128x128xbf16>
      tpu.vector_store %arg7[%c0_19, %c0_20], %23 {strides = array<i32>} : memref<128x128xbf16, #tpu.memory_space<vmem>>, vector<128x128xbf16>,
    } else {
    }
    return
  }
  func.func @transform_0(%arg0: i32, %arg1: i32) -> (i32, i32) {
    %c0_i32 = arith.constant 0 : i32
    return %arg0, %arg1 : i32, i32
  }
  func.func @transform_1(%arg0: i32, %arg1: i32) -> (i32, i32) {
    %c0_i32 = arith.constant 0 : i32
    %c0_i32_0 = arith.constant 0 : i32
    return %arg1, %c0_i32 : i32, i32
  }
  func.func @transform_2(%arg0: i32, %arg1: i32) -> (i32, i32) {
    %c0_i32 = arith.constant 0 : i32
    %c0_i32_0 = arith.constant 0 : i32
    return %arg0, %c0_i32 : i32, i32
  }
  func.func @transform_3(%arg0: i32, %arg1: i32) -> (i32, i32) {
    %c0_i32 = arith.constant 0 : i32
    %c0_i32_0 = arith.constant 0 : i32
    %c0_i32_1 = arith.constant 0 : i32
    return %c0_i32, %c0_i32_0 : i32, i32
  }
  func.func @transform_4(%arg0: i32, %arg1: i32) -> (i32, i32) {
    %c0_i32 = arith.constant 0 : i32
    %c0_i32_0 = arith.constant 0 : i32
    %c0_i32_1 = arith.constant 0 : i32
    return %c0_i32, %c0_i32_0 : i32, i32
  }
  func.func @transform_5(%arg0: i32, %arg1: i32) -> (i32, i32) {
    %c0_i32 = arith.constant 0 : i32
    %c0_i32_0 = arith.constant 0 : i32
    return %arg0, %c0_i32 : i32, i32
  }
}

module attributes {stable_mosaic.version = 11 : i64} {
  func.func @_sage_layer_kernel(%arg0: i32, %arg1: i32, %arg2: memref<128x128xbf16, #tpu.memory_space<vmem>>, %arg3: memref<128x128xbf16, #tpu.memory_space<vmem>>, %arg4: memref<128x128xbf16, #tpu.memory_space<vmem>>, %arg5: memref<256x128xbf16, #tpu.memory_space<vmem>>, %arg6: memref<1x128xf32, #tpu.memory_space<vmem>>, %arg7: memref<128x128xf32, #tpu.memory_space<vmem>>, %arg8: memref<128x128xf32, #tpu.memory_space<vmem>>) attributes {dimension_semantics = [#tpu.dimension_semantics<parallel>, #tpu.dimension_semantics<arbitrary>], iteration_bounds = array<i64: 2, 2>, scalar_prefetch = 0 : i64, scratch_operands = 1 : i64, tpu.core_type = #tpu.core_type<tc>, window_params = [{transform_indices = @transform_0, window_bounds = array<i64: 128, 128>}, {transform_indices = @transform_1, window_bounds = array<i64: 128, 128>}, {transform_indices = @transform_2, window_bounds = array<i64: 128, 128>}, {pipeline_mode = #tpu.pipeline_mode<synchronous>, transform_indices = @transform_3, window_bounds = array<i64: 256, 128>}, {pipeline_mode = #tpu.pipeline_mode<synchronous>, transform_indices = @transform_4, window_bounds = array<i64: 1, 128>}, {transform_indices = @transform_5, window_bounds = array<i64: 128, 128>}]} {
    %c0_i32 = arith.constant 0 : i32
    %0 = arith.cmpi eq, %arg1, %c0_i32 : i32
    %1 = arith.extui %0 : i1 to i32
    %c0_i32_0 = arith.constant 0 : i32
    %2 = arith.cmpi ne, %1, %c0_i32_0 : i32
    scf.if %2 {
      %cst_9 = arith.constant 0.000000e+00 : f32
      %12 = vector.broadcast %cst_9 : f32 to vector<128x128xf32>
      %c0_10 = arith.constant 0 : index
      %c0_11 = arith.constant 0 : index
      %13 = vector.load %arg8[%c0_10, %c0_11] : memref<128x128xf32, #tpu.memory_space<vmem>>, vector<128x128xf32>
      tpu.vector_store %arg8[%c0_10, %c0_11], %12 {strides = array<i32>} : memref<128x128xf32, #tpu.memory_space<vmem>>, vector<128x128xf32>,
    } else {
    }
    %c0 = arith.constant 0 : index
    %c0_1 = arith.constant 0 : index
    %3 = vector.load %arg8[%c0, %c0_1] : memref<128x128xf32, #tpu.memory_space<vmem>>, vector<128x128xf32>
    %c0_2 = arith.constant 0 : index
    %c0_3 = arith.constant 0 : index
    %4 = vector.load %arg2[%c0_2, %c0_3] : memref<128x128xbf16, #tpu.memory_space<vmem>>, vector<128x128xbf16>
    %c0_4 = arith.constant 0 : index
    %c0_5 = arith.constant 0 : index
    %5 = vector.load %arg3[%c0_4, %c0_5] : memref<128x128xbf16, #tpu.memory_space<vmem>>, vector<128x128xbf16>
    %cst = arith.constant dense<0.000000e+00> : vector<128x128xf32>
    %6 = tpu.matmul %4, %5, %cst {dimension_numbers = #tpu.dot_dimension_numbers<[1], [0], [0], [1], [0, 0, 1, 1], [], []>} : vector<128x128xbf16>, vector<128x128xbf16>, vector<128x128xf32> -> vector<128x128xf32>
    %7 = arith.addf %3, %6 : vector<128x128xf32>
    %c0_6 = arith.constant 0 : index
    %c0_7 = arith.constant 0 : index
    %8 = vector.load %arg8[%c0_6, %c0_7] : memref<128x128xf32, #tpu.memory_space<vmem>>, vector<128x128xf32>
    tpu.vector_store %arg8[%c0_6, %c0_7], %7 {strides = array<i32>} : memref<128x128xf32, #tpu.memory_space<vmem>>, vector<128x128xf32>,
    %c1_i32 = arith.constant 1 : i32
    %9 = arith.cmpi eq, %arg1, %c1_i32 : i32
    %10 = arith.extui %9 : i1 to i32
    %c0_i32_8 = arith.constant 0 : i32
    %11 = arith.cmpi ne, %10, %c0_i32_8 : i32
    scf.if %11 {
      %c0_9 = arith.constant 0 : index
      %c0_10 = arith.constant 0 : index
      %12 = vector.load %arg8[%c0_9, %c0_10] : memref<128x128xf32, #tpu.memory_space<vmem>>, vector<128x128xf32>
      %13 = arith.truncf %12 : vector<128x128xf32> to vector<128x128xbf16>
      %c0_11 = arith.constant 0 : index
      %c0_12 = arith.constant 0 : index
      %14 = vector.load %arg4[%c0_11, %c0_12] : memref<128x128xbf16, #tpu.memory_space<vmem>>, vector<128x128xbf16>
      %15 = tpu.concatenate %14, %13 in 1 : vector<128x128xbf16>, vector<128x128xbf16> -> vector<128x256xbf16>
      %c0_13 = arith.constant 0 : index
      %c0_14 = arith.constant 0 : index
      %16 = vector.load %arg5[%c0_13, %c0_14] : memref<256x128xbf16, #tpu.memory_space<vmem>>, vector<256x128xbf16>
      %cst_15 = arith.constant dense<0.000000e+00> : vector<128x128xf32>
      %17 = tpu.matmul %15, %16, %cst_15 {dimension_numbers = #tpu.dot_dimension_numbers<[1], [0], [0], [1], [0, 0, 1, 1], [], []>} : vector<128x256xbf16>, vector<256x128xbf16>, vector<128x128xf32> -> vector<128x128xf32>
      %c0_16 = arith.constant 0 : index
      %c0_17 = arith.constant 0 : index
      %18 = vector.load %arg6[%c0_16, %c0_17] : memref<1x128xf32, #tpu.memory_space<vmem>>, vector<1x128xf32>
      %19 = vector.broadcast %18 : vector<1x128xf32> to vector<128x128xf32>
      %20 = arith.addf %17, %19 : vector<128x128xf32>
      %c0_18 = arith.constant 0 : index
      %c0_19 = arith.constant 0 : index
      %21 = vector.load %arg7[%c0_18, %c0_19] : memref<128x128xf32, #tpu.memory_space<vmem>>, vector<128x128xf32>
      tpu.vector_store %arg7[%c0_18, %c0_19], %20 {strides = array<i32>} : memref<128x128xf32, #tpu.memory_space<vmem>>, vector<128x128xf32>,
    } else {
    }
    return
  }
  func.func @transform_0(%arg0: i32, %arg1: i32) -> (i32, i32) {
    %c0_i32 = arith.constant 0 : i32
    return %arg0, %arg1 : i32, i32
  }
  func.func @transform_1(%arg0: i32, %arg1: i32) -> (i32, i32) {
    %c0_i32 = arith.constant 0 : i32
    %c0_i32_0 = arith.constant 0 : i32
    return %arg1, %c0_i32 : i32, i32
  }
  func.func @transform_2(%arg0: i32, %arg1: i32) -> (i32, i32) {
    %c0_i32 = arith.constant 0 : i32
    %c0_i32_0 = arith.constant 0 : i32
    return %arg0, %c0_i32 : i32, i32
  }
  func.func @transform_3(%arg0: i32, %arg1: i32) -> (i32, i32) {
    %c0_i32 = arith.constant 0 : i32
    %c0_i32_0 = arith.constant 0 : i32
    %c0_i32_1 = arith.constant 0 : i32
    return %c0_i32, %c0_i32_0 : i32, i32
  }
  func.func @transform_4(%arg0: i32, %arg1: i32) -> (i32, i32) {
    %c0_i32 = arith.constant 0 : i32
    %c0_i32_0 = arith.constant 0 : i32
    %c0_i32_1 = arith.constant 0 : i32
    return %c0_i32, %c0_i32_0 : i32, i32
  }
  func.func @transform_5(%arg0: i32, %arg1: i32) -> (i32, i32) {
    %c0_i32 = arith.constant 0 : i32
    %c0_i32_0 = arith.constant 0 : i32
    return %arg0, %c0_i32 : i32, i32
  }
}

module attributes {stable_mosaic.version = 11 : i64} {
  func.func @_edge_score_kernel(%arg0: i32, %arg1: memref<256xi32, #tpu.memory_space<smem>>, %arg2: memref<256xi32, #tpu.memory_space<smem>>, %arg3: memref<256xi32, #tpu.memory_space<smem>>, %arg4: memref<256xi32, #tpu.memory_space<smem>>, %arg5: memref<256x128xf32, #tpu.memory_space<vmem>>, %arg6: memref<1x128xf32, #tpu.memory_space<vmem>>, %arg7: memref<1x128xf32, #tpu.memory_space<vmem>>, %arg8: memref<128x128xf32, #tpu.memory_space<vmem>>, %arg9: memref<128x128xf32, #tpu.memory_space<vmem>>) attributes {dimension_semantics = [#tpu.dimension_semantics<parallel>], iteration_bounds = array<i64: 2>, scalar_prefetch = 4 : i64, scratch_operands = 2 : i64, tpu.core_type = #tpu.core_type<tc>, window_params = [{pipeline_mode = #tpu.pipeline_mode<synchronous>, transform_indices = @transform_0, window_bounds = array<i64: 256, 128>}, {transform_indices = @transform_1, window_bounds = array<i64: 1, 128>}, {transform_indices = @transform_2, window_bounds = array<i64: 1, 128>}]} {
    %c128_i32 = arith.constant 128 : i32
    %0 = arith.muli %arg0, %c128_i32 : i32
    %c0_i32 = arith.constant 0 : i32
    %c128_i32_0 = arith.constant 128 : i32
    %1 = arith.addi %c0_i32, %c128_i32_0 : i32
    %c1_i32 = arith.constant 1 : i32
    scf.for %arg10 = %c0_i32 to %1 step %c1_i32  : i32 {
      %25 = arith.addi %0, %arg10 : i32
      %26 = arith.index_cast %25 : i32 to index
      %27 = memref.load %arg1[%26] : memref<256xi32, #tpu.memory_space<smem>>
      %28 = arith.addi %0, %arg10 : i32
      %29 = arith.index_cast %28 : i32 to index
      %30 = memref.load %arg2[%29] : memref<256xi32, #tpu.memory_space<smem>>
      %31 = arith.index_cast %27 : i32 to index
      %c0_22 = arith.constant 0 : index
      %32 = vector.load %arg5[%31, %c0_22] : memref<256x128xf32, #tpu.memory_space<vmem>>, vector<1x128xf32>
      %33 = arith.index_cast %arg10 : i32 to index
      %c0_23 = arith.constant 0 : index
      %34 = vector.load %arg8[%33, %c0_23] : memref<128x128xf32, #tpu.memory_space<vmem>>, vector<1x128xf32>
      tpu.vector_store %arg8[%33, %c0_23], %32 {strides = array<i32>} : memref<128x128xf32, #tpu.memory_space<vmem>>, vector<1x128xf32>,
      %35 = arith.index_cast %30 : i32 to index
      %c0_24 = arith.constant 0 : index
      %36 = vector.load %arg5[%35, %c0_24] : memref<256x128xf32, #tpu.memory_space<vmem>>, vector<1x128xf32>
      %37 = arith.index_cast %arg10 : i32 to index
      %c0_25 = arith.constant 0 : index
      %38 = vector.load %arg9[%37, %c0_25] : memref<128x128xf32, #tpu.memory_space<vmem>>, vector<1x128xf32>
      tpu.vector_store %arg9[%37, %c0_25], %36 {strides = array<i32>} : memref<128x128xf32, #tpu.memory_space<vmem>>, vector<1x128xf32>,
    }
    %c128_i32_1 = arith.constant 128 : i32
    %c0 = arith.constant 0 : index
    %c0_2 = arith.constant 0 : index
    %2 = vector.load %arg8[%c0, %c0_2] : memref<128x128xf32, #tpu.memory_space<vmem>>, vector<128x128xf32>
    %c0_3 = arith.constant 0 : index
    %c0_4 = arith.constant 0 : index
    %3 = vector.load %arg9[%c0_3, %c0_4] : memref<128x128xf32, #tpu.memory_space<vmem>>, vector<128x128xf32>
    %cst = arith.constant dense<0.000000e+00> : vector<128x128xf32>
    %4 = tpu.matmul %2, %3, %cst {dimension_numbers = #tpu.dot_dimension_numbers<[1], [1], [0], [0], [0, 0, 1, 0], [], []>} : vector<128x128xf32>, vector<128x128xf32>, vector<128x128xf32> -> vector<128x128xf32>
    %5 = tpu.iota {dimensions = array<i32: 0>} : vector<128x128xi32>
    %6 = tpu.iota {dimensions = array<i32: 1>} : vector<128x128xi32>
    %7 = arith.cmpi eq, %5, %6 : vector<128x128xi32>
    %cst_5 = arith.constant 0.000000e+00 : f32
    %8 = vector.broadcast %cst_5 : f32 to vector<128x128xf32>
    %9 = arith.select %7, %4, %8 : vector<128x128xi1>, vector<128x128xf32>
    %cst_6 = arith.constant dense<0.000000e+00> : vector<128xf32>
    %10 = vector.multi_reduction <add>, %9, %cst_6 [0] : vector<128x128xf32> to vector<128xf32>
    %11 = vector.shape_cast %10 : vector<128xf32> to vector<1x128xf32>
    %c0_7 = arith.constant 0 : index
    %c0_8 = arith.constant 0 : index
    %12 = vector.load %arg6[%c0_7, %c0_8] : memref<1x128xf32, #tpu.memory_space<vmem>>, vector<1x128xf32>
    tpu.vector_store %arg6[%c0_7, %c0_8], %11 {strides = array<i32>} : memref<1x128xf32, #tpu.memory_space<vmem>>, vector<1x128xf32>,
    %c0_i32_9 = arith.constant 0 : i32
    %c128_i32_10 = arith.constant 128 : i32
    %13 = arith.addi %c0_i32_9, %c128_i32_10 : i32
    %c1_i32_11 = arith.constant 1 : i32
    scf.for %arg10 = %c0_i32_9 to %13 step %c1_i32_11  : i32 {
      %25 = arith.addi %0, %arg10 : i32
      %26 = arith.index_cast %25 : i32 to index
      %27 = memref.load %arg3[%26] : memref<256xi32, #tpu.memory_space<smem>>
      %28 = arith.addi %0, %arg10 : i32
      %29 = arith.index_cast %28 : i32 to index
      %30 = memref.load %arg4[%29] : memref<256xi32, #tpu.memory_space<smem>>
      %31 = arith.index_cast %27 : i32 to index
      %c0_22 = arith.constant 0 : index
      %32 = vector.load %arg5[%31, %c0_22] : memref<256x128xf32, #tpu.memory_space<vmem>>, vector<1x128xf32>
      %33 = arith.index_cast %arg10 : i32 to index
      %c0_23 = arith.constant 0 : index
      %34 = vector.load %arg8[%33, %c0_23] : memref<128x128xf32, #tpu.memory_space<vmem>>, vector<1x128xf32>
      tpu.vector_store %arg8[%33, %c0_23], %32 {strides = array<i32>} : memref<128x128xf32, #tpu.memory_space<vmem>>, vector<1x128xf32>,
      %35 = arith.index_cast %30 : i32 to index
      %c0_24 = arith.constant 0 : index
      %36 = vector.load %arg5[%35, %c0_24] : memref<256x128xf32, #tpu.memory_space<vmem>>, vector<1x128xf32>
      %37 = arith.index_cast %arg10 : i32 to index
      %c0_25 = arith.constant 0 : index
      %38 = vector.load %arg9[%37, %c0_25] : memref<128x128xf32, #tpu.memory_space<vmem>>, vector<1x128xf32>
      tpu.vector_store %arg9[%37, %c0_25], %36 {strides = array<i32>} : memref<128x128xf32, #tpu.memory_space<vmem>>, vector<1x128xf32>,
    }
    %c128_i32_12 = arith.constant 128 : i32
    %c0_13 = arith.constant 0 : index
    %c0_14 = arith.constant 0 : index
    %14 = vector.load %arg8[%c0_13, %c0_14] : memref<128x128xf32, #tpu.memory_space<vmem>>, vector<128x128xf32>
    %c0_15 = arith.constant 0 : index
    %c0_16 = arith.constant 0 : index
    %15 = vector.load %arg9[%c0_15, %c0_16] : memref<128x128xf32, #tpu.memory_space<vmem>>, vector<128x128xf32>
    %cst_17 = arith.constant dense<0.000000e+00> : vector<128x128xf32>
    %16 = tpu.matmul %14, %15, %cst_17 {dimension_numbers = #tpu.dot_dimension_numbers<[1], [1], [0], [0], [0, 0, 1, 0], [], []>} : vector<128x128xf32>, vector<128x128xf32>, vector<128x128xf32> -> vector<128x128xf32>
    %17 = tpu.iota {dimensions = array<i32: 0>} : vector<128x128xi32>
    %18 = tpu.iota {dimensions = array<i32: 1>} : vector<128x128xi32>
    %19 = arith.cmpi eq, %17, %18 : vector<128x128xi32>
    %cst_18 = arith.constant 0.000000e+00 : f32
    %20 = vector.broadcast %cst_18 : f32 to vector<128x128xf32>
    %21 = arith.select %19, %16, %20 : vector<128x128xi1>, vector<128x128xf32>
    %cst_19 = arith.constant dense<0.000000e+00> : vector<128xf32>
    %22 = vector.multi_reduction <add>, %21, %cst_19 [0] : vector<128x128xf32> to vector<128xf32>
    %23 = vector.shape_cast %22 : vector<128xf32> to vector<1x128xf32>
    %c0_20 = arith.constant 0 : index
    %c0_21 = arith.constant 0 : index
    %24 = vector.load %arg7[%c0_20, %c0_21] : memref<1x128xf32, #tpu.memory_space<vmem>>, vector<1x128xf32>
    tpu.vector_store %arg7[%c0_20, %c0_21], %23 {strides = array<i32>} : memref<1x128xf32, #tpu.memory_space<vmem>>, vector<1x128xf32>,
    return
  }
  func.func @transform_0(%arg0: i32, %arg1: memref<256xi32, #tpu.memory_space<smem>>, %arg2: memref<256xi32, #tpu.memory_space<smem>>, %arg3: memref<256xi32, #tpu.memory_space<smem>>, %arg4: memref<256xi32, #tpu.memory_space<smem>>) -> (i32, i32) {
    %c0_i32 = arith.constant 0 : i32
    %c0_i32_0 = arith.constant 0 : i32
    %c0_i32_1 = arith.constant 0 : i32
    return %c0_i32, %c0_i32_0 : i32, i32
  }
  func.func @transform_1(%arg0: i32, %arg1: memref<256xi32, #tpu.memory_space<smem>>, %arg2: memref<256xi32, #tpu.memory_space<smem>>, %arg3: memref<256xi32, #tpu.memory_space<smem>>, %arg4: memref<256xi32, #tpu.memory_space<smem>>) -> (i32, i32) {
    %c0_i32 = arith.constant 0 : i32
    %c0_i32_0 = arith.constant 0 : i32
    return %c0_i32, %arg0 : i32, i32
  }
  func.func @transform_2(%arg0: i32, %arg1: memref<256xi32, #tpu.memory_space<smem>>, %arg2: memref<256xi32, #tpu.memory_space<smem>>, %arg3: memref<256xi32, #tpu.memory_space<smem>>, %arg4: memref<256xi32, #tpu.memory_space<smem>>) -> (i32, i32) {
    %c0_i32 = arith.constant 0 : i32
    %c0_i32_0 = arith.constant 0 : i32
    return %c0_i32, %arg0 : i32, i32
  }
}

</mosaic_0001>

<llo_original>
// kernel: model_forward.5
$region0: #{model_forward.5}
  #allocation0 [shape = 'u32[]', space=smem, size = 0x4, offset = 0x4, fixed_abs, tag = 'smem constant byte address 0x4 - core index']
  #allocation1 [shape = 'u32[144,128]{1,0:T(1,128)}', space=vmem, size = 0x12000, scoped, tag = 'internal scratch']
  #allocation2 [shape = 'f32[128,128]{1,0:T(8,128)}', space=vmem, size = 0x10000, scoped, tag = 'scratch operand']
  #allocation3 [shape = 'f32[128,128]{1,0:T(8,128)}', space=vmem, size = 0x10000, scoped, tag = 'scratch operand']
  #allocation4 [shape = 's32[1]{0}', space=sflag, size = 0x4, scoped, tag = 'scoped memory for model_forward.5']
  #allocation5 [shape = 'u8[1024]{0}', space=smem, size = 0x400, scoped, tag = 'prefetched SMEM operand 0']
  #allocation6 [shape = 'u8[1024]{0}', space=smem, size = 0x400, scoped, tag = 'prefetched SMEM operand 1']
  #allocation7 [shape = 'u8[1024]{0}', space=smem, size = 0x400, scoped, tag = 'prefetched SMEM operand 2']
  #allocation8 [shape = 'u8[1024]{0}', space=smem, size = 0x400, scoped, tag = 'prefetched SMEM operand 3']
  %s0 = inlined_call_operand.vmem [shape: s32[256], index: 0, kind: input, shape index: {}]
  %s1 = inlined_call_operand.vmem [shape: s32[256], index: 1, kind: input, shape index: {}]
  %s2 = inlined_call_operand.vmem [shape: s32[256], index: 2, kind: input, shape index: {}]
  %s3 = inlined_call_operand.vmem [shape: s32[256], index: 3, kind: input, shape index: {}]
  %s4 = inlined_call_operand.vmem [shape: f32[256,128], index: 4, kind: input, shape index: {}]
  %s5 = inlined_call_operand.hbm [shape: f32[1,256], index: 5, kind: output, shape index: {0}]
  %s6 = inlined_call_operand.hbm [shape: f32[1,256], index: 6, kind: output, shape index: {1}]
  %7 = xla_tuple %s5, %s6
  %s8 = sld [smem:[#allocation0]]
  $region59: #{model_forward.5} parent=0
    _
  %s10 = ssub.s32 1, %s8
  %s11 = scalar_select 0, %s10, %s8
  %s12 = sshll.u32 %s0, 4
  %s13 = int_to_ptr.vmem [resolvable:$true] %s12
  %15 = dma.vmem_to_smem %s13, 32, [#allocation5], [#allocation4]
  %s16 = sshll.u32 %s1, 4
  %s17 = int_to_ptr.vmem [resolvable:$true] %s16
  %19 = dma.vmem_to_smem %s17, 32, [#allocation6], [#allocation4]
  %s20 = sshll.u32 %s2, 4
  %s21 = int_to_ptr.vmem [resolvable:$true] %s20
  %23 = dma.vmem_to_smem %s21, 32, [#allocation7], [#allocation4]
  %s24 = sshll.u32 %s3, 4
  %s25 = int_to_ptr.vmem [resolvable:$true] %s24
  %27 = dma.vmem_to_smem %s25, 32, [#allocation8], [#allocation4]
  %28 = dma.done [#allocation4], 128
  %29 = sfence
  $region1: #{model_forward.5} parent=0
    #allocation9 [shape = 'u8[1024]{0}', space=vmem, size = 0x400, scoped, tag = 'output window, operand 0']
    #allocation10 [shape = 's32[2]{0}', space=sflag, size = 0x8, scoped, tag = 'scoped memory for model_forward.5']
    #allocation11 [shape = 'u8[1024]{0}', space=vmem, size = 0x400, scoped, tag = 'output window, operand 1']
    #allocation12 [shape = 's32[2]{0}', space=sflag, size = 0x8, scoped, tag = 'scoped memory for model_forward.5']
    %30 = vsyncpa [#allocation10], 0
    %s31 = scalar_lea.sflag [#allocation10], 1
    %32 = vsyncpa %s31, 0
    %33 = vsyncpa [#allocation12], 0
    %s34 = scalar_lea.sflag [#allocation12], 1
    %35 = vsyncpa %s34, 0
    loop: start=0, step=1, limit=4
    $region2: #{model_forward.5} parent=1 // loop_pre_header
      _
    $region3: #{model_forward.5} parent=1 // loop_header
      %s37 = sphi 0, %s41
      %p38 = scmp.ge.s32.totalorder %s37, 4
      %s45 = sphi 0, %s45
      %s47 = sphi 0, %s45
      %s48 = sphi 0, %s47
      %s62 = sphi 0, %s48
      %s68 = sphi 0, %s70
      %s71 = sphi 0, %s68
      %s72 = sphi 0, %s71
      %s88 = sphi 0, %s72
      %s94 = sphi 0, %s96
      %s97 = sphi 0, %s94
      %s98 = sphi 0, %s97
      %s114 = sphi 0, %s98
    $region4: #{model_forward.5} parent=1 // loop_header_branch
      %40 = sbr.rel (%p38) target = $region8
    $region5: #{model_forward.5} parent=1 // loop_body
      %s42 = ssub.s32 %s37, 1
      %s43 = ssub.s32 %s37, 2
      %s44 = sadd.s32 %s37, 1
      %s46 = sadd.s32 %s45, 1
      %p49 = scmp.eq.s32.totalorder %s37, 1
      %p50 = scmp.ne.s32.totalorder %s45, %s47
      %p51 = scmp.eq.s32.totalorder %s37, 0
      %p52 = por %p50, %p51
      %p53 = scmp.ne.s32.totalorder %s45, %s47
      %p54 = scmp.eq.s32.totalorder %s42, 1
      %p55 = por %p53, %p54
      %p56 = scmp.ne.s32.totalorder %s47, %s48
      %p57 = scmp.eq.s32.totalorder %s42, 0
      %p58 = por %p56, %p57
      %p59 = scmp.ne.s32.totalorder %s47, %s48
      %p60 = scmp.eq.s32.totalorder %s43, 1
      %p61 = por %p59, %p60
      %p63 = scmp.ne.s32.totalorder %s48, %s62
      %p64 = scmp.eq.s32.totalorder %s43, 0
      %p65 = por %p63, %p64
      %s66 = ssub.s32 %s37, %s44
      %p67 = scmp.eq.s32.totalorder %s66, 0
      %s69 = sadd.s32 %s68, 1
      %s70 = scalar_select %p67, %s68, %s69
      %p73 = pneg %p67
      %p74 = scmp.eq.s32.totalorder %s37, 1
      %p75 = por %p73, %p74
      %p76 = scmp.ne.s32.totalorder %s68, %s71
      %p77 = scmp.eq.s32.totalorder %s37, 0
      %p78 = por %p76, %p77
      %p79 = scmp.ne.s32.totalorder %s68, %s71
      %p80 = scmp.eq.s32.totalorder %s42, 1
      %p81 = por %p79, %p80
      %p82 = scmp.ne.s32.totalorder %s71, %s72
      %p83 = scmp.eq.s32.totalorder %s42, 0
      %p84 = por %p82, %p83
      %p85 = scmp.ne.s32.totalorder %s71, %s72
      %p86 = scmp.eq.s32.totalorder %s43, 1
      %p87 = por %p85, %p86
      %p89 = scmp.ne.s32.totalorder %s72, %s88
      %p90 = scmp.eq.s32.totalorder %s43, 0
      %p91 = por %p89, %p90
      %s92 = ssub.s32 %s37, %s44
      %p93 = scmp.eq.s32.totalorder %s92, 0
      %s95 = sadd.s32 %s94, 1
      %s96 = scalar_select %p93, %s94, %s95
      %p99 = pneg %p93
      %p100 = scmp.eq.s32.totalorder %s37, 1
      %p101 = por %p99, %p100
      %p102 = scmp.ne.s32.totalorder %s94, %s97
      %p103 = scmp.eq.s32.totalorder %s37, 0
      %p104 = por %p102, %p103
      %p105 = scmp.ne.s32.totalorder %s94, %s97
      %p106 = scmp.eq.s32.totalorder %s42, 1
      %p107 = por %p105, %p106
      %p108 = scmp.ne.s32.totalorder %s97, %s98
      %p109 = scmp.eq.s32.totalorder %s42, 0
      %p110 = por %p108, %p109
      %p111 = scmp.ne.s32.totalorder %s97, %s98
      %p112 = scmp.eq.s32.totalorder %s43, 1
      %p113 = por %p111, %p112
      %p115 = scmp.ne.s32.totalorder %s98, %s114
      %p116 = scmp.eq.s32.totalorder %s43, 0
      %p117 = por %p115, %p116
      %p118 = scmp.le.s32.totalorder 1, %s37
      %p119 = scmp.lt.s32.totalorder %s37, 3
      %p120 = pnand %p118, %p119
      %p121 = pneg %p120
      // Predicated region
      $region9: #{model_forward.5} parent=5 // pred_check
        _
      $region10: #{model_forward.5} parent=5 // pred_check_branch
        %123 = sbr.rel (%p120) target = $region12
      $region11: #{model_forward.5} parent=5 // pred_region
        %s124 = ssub.s32 %s37, 1
        // Predicated region
        $region13: #{model_forward.5} parent=11 // pred_check
          %p125 = pneg %p58
        $region14: #{model_forward.5} parent=11 // pred_check_branch
          %127 = sbr.rel (%p125) target = $region16
        $region15: #{model_forward.5} parent=11 // pred_region
          _
        $region16: #{model_forward.5} parent=11 // pred_fallthru
          _
      $region12: #{model_forward.5} parent=5 // pred_fallthru
        _
      %p128 = scmp.lt.s32.totalorder %s37, 2
      // Predicated region
      $region17: #{model_forward.5} parent=5 // pred_check
        %p129 = pneg %p128
      $region18: #{model_forward.5} parent=5 // pred_check_branch
        %131 = sbr.rel (%p129) target = $region20
      $region19: #{model_forward.5} parent=5 // pred_region
        _
      $region20: #{model_forward.5} parent=5 // pred_fallthru
        _
      %p132 = scmp.le.s32.totalorder 1, %s37
      %p133 = scmp.lt.s32.totalorder %s37, 3
      %p134 = pnand %p132, %p133
      %p135 = pneg %p134
      // Predicated region
      $region21: #{model_forward.5} parent=5 // pred_check
        _
      $region22: #{model_forward.5} parent=5 // pred_check_branch
        %137 = sbr.rel (%p134) target = $region24
      $region23: #{model_forward.5} parent=5 // pred_region
        %s138 = ssub.s32 %s37, 1
        %p139 = pneg %p58
        %p140 = pneg %p55
        %p141 = pneg %p84
        %p142 = pneg %p81
        %s143 = sand.u32 %s71, 1
        %s144 = scalar_lea.sflag [#allocation10], %s143
        %s145 = sand.u32 %s71, 1
        %s146 = scalar_lea.vmem [#allocation9], %s145
        %p147 = pneg %p110
        %p148 = pneg %p107
        %s149 = sand.u32 %s97, 1
        %s150 = scalar_lea.sflag [#allocation12], %s149
        %s151 = sand.u32 %s97, 1
        %s152 = scalar_lea.vmem [#allocation11], %s151
        %s153 = smul.u32 %s42, 128
        loop: start=0, step=1, limit=128
        $region25: #{model_forward.5} parent=23 // loop_pre_header
          _
        $region26: #{model_forward.5} parent=23 // loop_header
          %s155 = sphi 0, %s159
          %p156 = scmp.ge.s32.totalorder %s155, 128
        $region27: #{model_forward.5} parent=23 // loop_header_branch
          %158 = sbr.rel (%p156) target = $region31
        $region28: #{model_forward.5} parent=23 // loop_body
          %s160 = sadd.s32 %s153, %s155
          %s161 = sld [smem:[#allocation5 + %s160]]
          %s162 = sld [smem:[#allocation6 + %s160]]
          %s163 = scalar_lea.vmem %s4, %s161
          %v164 = vld [vmem:[%s163] sm:$0x1]
          %s165 = scalar_lea.vmem [#allocation2], %s155
          %166 = vst [vmem:[%s165] sm:$0x1] %v164
          %s167 = scalar_lea.vmem %s4, %s162
          %v168 = vld [vmem:[%s167] sm:$0x1]
          %s169 = scalar_lea.vmem [#allocation3], %s155
          %170 = vst [vmem:[%s169] sm:$0x1] %v168
        $region29: #{model_forward.5} parent=23 // loop_footer
          %s159 = sadd.s32 1, %s155
        $region30: #{model_forward.5} parent=23 // loop_footer_branch
          %154 = sbr.rel target = $region26
        $region31: #{model_forward.5} parent=23 // loop_exit
          _
        %v171 = vld [vmem:[#allocation2] sm:$0xff]
        %v172 = vld [vmem:[#allocation2 + $0x8] sm:$0xff]
        %v173 = vld [vmem:[#allocation2 + $0x10] sm:$0xff]
        %v174 = vld [vmem:[#allocation2 + $0x18] sm:$0xff]
        %v175 = vld [vmem:[#allocation2 + $0x20] sm:$0xff]
        %v176 = vld [vmem:[#allocation2 + $0x28] sm:$0xff]
        %v177 = vld [vmem:[#allocation2 + $0x30] sm:$0xff]
        %v178 = vld [vmem:[#allocation2 + $0x38] sm:$0xff]
        %v179 = vld [vmem:[#allocation2 + $0x40] sm:$0xff]
        %v180 = vld [vmem:[#allocation2 + $0x48] sm:$0xff]
        %v181 = vld [vmem:[#allocation2 + $0x50] sm:$0xff]
        %v182 = vld [vmem:[#allocation2 + $0x58] sm:$0xff]
        %v183 = vld [vmem:[#allocation2 + $0x60] sm:$0xff]
        %v184 = vld [vmem:[#allocation2 + $0x68] sm:$0xff]
        %v185 = vld [vmem:[#allocation2 + $0x70] sm:$0xff]
        %v186 = vld [vmem:[#allocation2 + $0x78] sm:$0xff]
        %v187 = vld [vmem:[#allocation3] sm:$0xff]
        %v188 = vld [vmem:[#allocation3 + $0x8] sm:$0xff]
        %v189 = vld [vmem:[#allocation3 + $0x10] sm:$0xff]
        %v190 = vld [vmem:[#allocation3 + $0x18] sm:$0xff]
        %v191 = vld [vmem:[#allocation3 + $0x20] sm:$0xff]
        %v192 = vld [vmem:[#allocation3 + $0x28] sm:$0xff]
        %v193 = vld [vmem:[#allocation3 + $0x30] sm:$0xff]
        %v194 = vld [vmem:[#allocation3 + $0x38] sm:$0xff]
        %v195 = vld [vmem:[#allocation3 + $0x40] sm:$0xff]
        %v196 = vld [vmem:[#allocation3 + $0x48] sm:$0xff]
        %v197 = vld [vmem:[#allocation3 + $0x50] sm:$0xff]
        %v198 = vld [vmem:[#allocation3 + $0x58] sm:$0xff]
        %v199 = vld [vmem:[#allocation3 + $0x60] sm:$0xff]
        %v200 = vld [vmem:[#allocation3 + $0x68] sm:$0xff]
        %v201 = vld [vmem:[#allocation3 + $0x70] sm:$0xff]
        %v202 = vld [vmem:[#allocation3 + $0x78] sm:$0xff]
        %203 = vmatprep.subr.mxu0 0.0
        %204 = vmatpush1.xpose.msra.mxu0 %v187
        %205 = vmatprep.subr.mxu0 0.0
        %206 = vmatpush1.xpose.msra.mxu0 %v188
        %207 = vmatprep.subr.mxu0 0.0
        %208 = vmatpush1.xpose.msra.mxu0 %v189
        %209 = vmatprep.subr.mxu0 0.0
        %210 = vmatpush1.xpose.msra.mxu0 %v190
        %211 = vmatprep.subr.mxu0 0.0
        %212 = vmatpush1.xpose.msra.mxu0 %v191
        %213 = vmatprep.subr.mxu0 0.0
        %214 = vmatpush1.xpose.msra.mxu0 %v192
        %215 = vmatprep.subr.mxu0 0.0
        %216 = vmatpush1.xpose.msra.mxu0 %v193
        %217 = vmatprep.subr.mxu0 0.0
        %218 = vmatpush1.xpose.msra.mxu0 %v194
        %219 = vmatprep.subr.mxu0 0.0
        %220 = vmatpush1.xpose.msra.mxu0 %v195
        %221 = vmatprep.subr.mxu0 0.0
        %222 = vmatpush1.xpose.msra.mxu0 %v196
        %223 = vmatprep.subr.mxu0 0.0
        %224 = vmatpush1.xpose.msra.mxu0 %v197
        %225 = vmatprep.subr.mxu0 0.0
        %226 = vmatpush1.xpose.msra.mxu0 %v198
        %227 = vmatprep.subr.mxu0 0.0
        %228 = vmatpush1.xpose.msra.mxu0 %v199
        %229 = vmatprep.subr.mxu0 0.0
        %230 = vmatpush1.xpose.msra.mxu0 %v200
        %231 = vmatprep.subr.mxu0 0.0
        %232 = vmatpush1.xpose.msra.mxu0 %v201
        %233 = vmatprep.subr.mxu0 0.0
        %234 = vmatpush1.xpose.msra.mxu0 %v202
        %235 = vmatprep.subr.mxu0 0.0
        %236 = vmatpush1.xpose.msra.mxu0 0.0
        %237 = vmatprep.subr.mxu0 0.0
        %238 = vmatpush1.xpose.msra.mxu0 0.0
        %239 = vmatprep.subr.mxu0 0.0
        %240 = vmatpush1.xpose.msra.mxu0 0.0
        %241 = vmatprep.subr.mxu0 0.0
        %242 = vmatpush1.xpose.msra.mxu0 0.0
        %243 = vmatprep.subr.mxu0 0.0
        %244 = vmatpush1.xpose.msra.mxu0 0.0
        %245 = vmatprep.subr.mxu0 0.0
        %246 = vmatpush1.xpose.msra.mxu0 0.0
        %247 = vmatprep.subr.mxu0 0.0
        %248 = vmatpush1.xpose.msra.mxu0 0.0
        %249 = vmatprep.subr.mxu0 0.0
        %250 = vmatpush1.xpose.msra.mxu0 0.0
        %251 = vmatprep.subr.mxu0 0.0
        %252 = vmatpush1.xpose.msra.mxu0 0.0
        %253 = vmatprep.subr.mxu0 0.0
        %254 = vmatpush1.xpose.msra.mxu0 0.0
        %255 = vmatprep.subr.mxu0 0.0
        %256 = vmatpush1.xpose.msra.mxu0 0.0
        %257 = vmatprep.subr.mxu0 0.0
        %258 = vmatpush1.xpose.msra.mxu0 0.0
        %259 = vmatprep.subr.mxu0 0.0
        %260 = vmatpush1.xpose.msra.mxu0 0.0
        %261 = vmatprep.subr.mxu0 0.0
        %262 = vmatpush1.xpose.msra.mxu0 0.0
        %263 = vmatprep.subr.mxu0 0.0
        %264 = vmatpush1.xpose.msra.mxu0 0.0
        %265 = vmatprep.subr.mxu0 0.0
        %266 = vmatpush1.xpose.msra.mxu0 0.0
        %267 = vmatprep.mubr.f32.mxu0 0.0
        %268 = vmatmul.mubr.f32.gmra.mrb[0].mxu0 %v171
        %v269 = vpop.f32.mrb[0].mxu0
        %v270 = vadd.f32 0.0, %v269
        %v271 = vpop.f32.mrb[0].mxu0
        %272 = vmatprep.mubr.f32.mxu0 0.0
        %273 = vmatmul.mubr.f32.gmra.mrb[0].mxu0 %v172
        %v274 = vpop.f32.mrb[0].mxu0
        %v275 = vadd.f32 0.0, %v274
        %v276 = vpop.f32.mrb[0].mxu0
        %277 = vmatprep.mubr.f32.mxu0 0.0
        %278 = vmatmul.mubr.f32.gmra.mrb[0].mxu0 %v173
        %v279 = vpop.f32.mrb[0].mxu0
        %v280 = vadd.f32 0.0, %v279
        %v281 = vpop.f32.mrb[0].mxu0
        %282 = vmatprep.mubr.f32.mxu0 0.0
        %283 = vmatmul.mubr.f32.gmra.mrb[0].mxu0 %v174
        %v284 = vpop.f32.mrb[0].mxu0
        %v285 = vadd.f32 0.0, %v284
        %v286 = vpop.f32.mrb[0].mxu0
        %287 = vmatprep.mubr.f32.mxu0 0.0
        %288 = vmatmul.mubr.f32.gmra.mrb[0].mxu0 %v175
        %v289 = vpop.f32.mrb[0].mxu0
        %v290 = vadd.f32 0.0, %v289
        %v291 = vpop.f32.mrb[0].mxu0
        %292 = vmatprep.mubr.f32.mxu0 0.0
        %293 = vmatmul.mubr.f32.gmra.mrb[0].mxu0 %v176
        %v294 = vpop.f32.mrb[0].mxu0
        %v295 = vadd.f32 0.0, %v294
        %v296 = vpop.f32.mrb[0].mxu0
        %297 = vmatprep.mubr.f32.mxu0 0.0
        %298 = vmatmul.mubr.f32.gmra.mrb[0].mxu0 %v177
        %v299 = vpop.f32.mrb[0].mxu0
        %v300 = vadd.f32 0.0, %v299
        %v301 = vpop.f32.mrb[0].mxu0
        %302 = vmatprep.mubr.f32.mxu0 0.0
        %303 = vmatmul.mubr.f32.gmra.mrb[0].mxu0 %v178
        %v304 = vpop.f32.mrb[0].mxu0
        %v305 = vadd.f32 0.0, %v304
        %v306 = vpop.f32.mrb[0].mxu0
        %307 = vmatprep.mubr.f32.mxu0 0.0
        %308 = vmatmul.mubr.f32.gmra.mrb[0].mxu0 %v179
        %v309 = vpop.f32.mrb[0].mxu0
        %v310 = vadd.f32 0.0, %v309
        %v311 = vpop.f32.mrb[0].mxu0
        %312 = vmatprep.mubr.f32.mxu0 0.0
        %313 = vmatmul.mubr.f32.gmra.mrb[0].mxu0 %v180
        %v314 = vpop.f32.mrb[0].mxu0
        %v315 = vadd.f32 0.0, %v314
        %v316 = vpop.f32.mrb[0].mxu0
        %317 = vmatprep.mubr.f32.mxu0 0.0
        %318 = vmatmul.mubr.f32.gmra.mrb[0].mxu0 %v181
        %v319 = vpop.f32.mrb[0].mxu0
        %v320 = vadd.f32 0.0, %v319
        %v321 = vpop.f32.mrb[0].mxu0
        %322 = vmatprep.mubr.f32.mxu0 0.0
        %323 = vmatmul.mubr.f32.gmra.mrb[0].mxu0 %v182
        %v324 = vpop.f32.mrb[0].mxu0
        %v325 = vadd.f32 0.0, %v324
        %v326 = vpop.f32.mrb[0].mxu0
        %327 = vmatprep.mubr.f32.mxu0 0.0
        %328 = vmatmul.mubr.f32.gmra.mrb[0].mxu0 %v183
        %v329 = vpop.f32.mrb[0].mxu0
        %v330 = vadd.f32 0.0, %v329
        %v331 = vpop.f32.mrb[0].mxu0
        %332 = vmatprep.mubr.f32.mxu0 0.0
        %333 = vmatmul.mubr.f32.gmra.mrb[0].mxu0 %v184
        %v334 = vpop.f32.mrb[0].mxu0
        %v335 = vadd.f32 0.0, %v334
        %v336 = vpop.f32.mrb[0].mxu0
        %337 = vmatprep.mubr.f32.mxu0 0.0
        %338 = vmatmul.mubr.f32.gmra.mrb[0].mxu0 %v185
        %v339 = vpop.f32.mrb[0].mxu0
        %v340 = vadd.f32 0.0, %v339
        %v341 = vpop.f32.mrb[0].mxu0
        %342 = vmatprep.mubr.f32.mxu0 0.0
        %343 = vmatmul.mubr.f32.gmra.mrb[0].mxu0 %v186
        %v344 = vpop.f32.mrb[0].mxu0
        %v345 = vadd.f32 0.0, %v344
        %v346 = vpop.f32.mrb[0].mxu0
        %347 = vdwg.mxu0
        %v348 = vlaneseq
        %v349 = vshrl.u32 %v348, 7
        %v350 = vadd.s32 %v349, 8
        %v351 = vadd.s32 %v349, 16
        %v352 = vadd.s32 %v349, 24
        %v353 = vadd.s32 %v349, 32
        %v354 = vadd.s32 %v349, 40
        %v355 = vadd.s32 %v349, 48
        %v356 = vadd.s32 %v349, 56
        %v357 = vadd.s32 %v349, 64
        %v358 = vadd.s32 %v349, 72
        %v359 = vadd.s32 %v349, 80
        %v360 = vadd.s32 %v349, 88
        %v361 = vadd.s32 %v349, 96
        %v362 = vadd.s32 %v349, 104
        %v363 = vadd.s32 %v349, 112
        %v364 = vadd.s32 %v349, 120
        %v365 = vlaneseq
        %v366 = vand.u32 %v365, 127
        %vm367 = vcmp.eq.s32.totalorder %v349, %v366
        %vm368 = vcmp.eq.s32.totalorder %v350, %v366
        %vm369 = vcmp.eq.s32.totalorder %v351, %v366
        %vm370 = vcmp.eq.s32.totalorder %v352, %v366
        %vm371 = vcmp.eq.s32.totalorder %v353, %v366
        %vm372 = vcmp.eq.s32.totalorder %v354, %v366
        %vm373 = vcmp.eq.s32.totalorder %v355, %v366
        %vm374 = vcmp.eq.s32.totalorder %v356, %v366
        %vm375 = vcmp.eq.s32.totalorder %v357, %v366
        %vm376 = vcmp.eq.s32.totalorder %v358, %v366
        %vm377 = vcmp.eq.s32.totalorder %v359, %v366
        %vm378 = vcmp.eq.s32.totalorder %v360, %v366
        %vm379 = vcmp.eq.s32.totalorder %v361, %v366
        %vm380 = vcmp.eq.s32.totalorder %v362, %v366
        %vm381 = vcmp.eq.s32.totalorder %v363, %v366
        %vm382 = vcmp.eq.s32.totalorder %v364, %v366
        %v383 = vsel %vm367, %v270, 0.0
        %v384 = vsel %vm368, %v275, 0.0
        %v385 = vsel %vm369, %v280, 0.0
        %v386 = vsel %vm370, %v285, 0.0
        %v387 = vsel %vm371, %v290, 0.0
        %v388 = vsel %vm372, %v295, 0.0
        %v389 = vsel %vm373, %v300, 0.0
        %v390 = vsel %vm374, %v305, 0.0
        %v391 = vsel %vm375, %v310, 0.0
        %v392 = vsel %vm376, %v315, 0.0
        %v393 = vsel %vm377, %v320, 0.0
        %v394 = vsel %vm378, %v325, 0.0
        %v395 = vsel %vm379, %v330, 0.0
        %v396 = vsel %vm380, %v335, 0.0
        %v397 = vsel %vm381, %v340, 0.0
        %v398 = vsel %vm382, %v345, 0.0
        %v399 = vadd.f32 %v383, %v384
        %v400 = vadd.f32 %v399, %v385
        %v401 = vadd.f32 %v400, %v386
        %v402 = vadd.f32 %v401, %v387
        %v403 = vadd.f32 %v402, %v388
        %v404 = vadd.f32 %v403, %v389
        %v405 = vadd.f32 %v404, %v390
        %v406 = vadd.f32 %v405, %v391
        %v407 = vadd.f32 %v406, %v392
        %v408 = vadd.f32 %v407, %v393
        %v409 = vadd.f32 %v408, %v394
        %v410 = vadd.f32 %v409, %v395
        %v411 = vadd.f32 %v410, %v396
        %v412 = vadd.f32 %v411, %v397
        %v413 = vadd.f32 %v412, %v398
        %v414 = vrot.slane %v413, 4
        %v415 = vadd.f32 %v413, %v414
        %v416 = vrot.slane %v415, 2
        %v417 = vadd.f32 %v415, %v416
        %v418 = vrot.slane %v417, 1
        %v419 = vadd.f32 %v417, %v418
        %420 = vst [vmem:[%s146] sm:$0x1] %v419
        loop: start=0, step=1, limit=128
        $region32: #{model_forward.5} parent=23 // loop_pre_header
          _
        $region33: #{model_forward.5} parent=23 // loop_header
          %s422 = sphi 0, %s426
          %p423 = scmp.ge.s32.totalorder %s422, 128
        $region34: #{model_forward.5} parent=23 // loop_header_branch
          %425 = sbr.rel (%p423) target = $region38
        $region35: #{model_forward.5} parent=23 // loop_body
          %s427 = sadd.s32 %s153, %s422
          %s428 = sld [smem:[#allocation7 + %s427]]
          %s429 = sld [smem:[#allocation8 + %s427]]
          %s430 = scalar_lea.vmem %s4, %s428
          %v431 = vld [vmem:[%s430] sm:$0x1]
          %s432 = scalar_lea.vmem [#allocation2], %s422
          %433 = vst [vmem:[%s432] sm:$0x1] %v431
          %s434 = scalar_lea.vmem %s4, %s429
          %v435 = vld [vmem:[%s434] sm:$0x1]
          %s436 = scalar_lea.vmem [#allocation3], %s422
          %437 = vst [vmem:[%s436] sm:$0x1] %v435
        $region36: #{model_forward.5} parent=23 // loop_footer
          %s426 = sadd.s32 1, %s422
        $region37: #{model_forward.5} parent=23 // loop_footer_branch
          %421 = sbr.rel target = $region33
        $region38: #{model_forward.5} parent=23 // loop_exit
          _
        %v438 = vld [vmem:[#allocation2] sm:$0xff]
        %v439 = vld [vmem:[#allocation2 + $0x8] sm:$0xff]
        %v440 = vld [vmem:[#allocation2 + $0x10] sm:$0xff]
        %v441 = vld [vmem:[#allocation2 + $0x18] sm:$0xff]
        %v442 = vld [vmem:[#allocation2 + $0x20] sm:$0xff]
        %v443 = vld [vmem:[#allocation2 + $0x28] sm:$0xff]
        %v444 = vld [vmem:[#allocation2 + $0x30] sm:$0xff]
        %v445 = vld [vmem:[#allocation2 + $0x38] sm:$0xff]
        %v446 = vld [vmem:[#allocation2 + $0x40] sm:$0xff]
        %v447 = vld [vmem:[#allocation2 + $0x48] sm:$0xff]
        %v448 = vld [vmem:[#allocation2 + $0x50] sm:$0xff]
        %v449 = vld [vmem:[#allocation2 + $0x58] sm:$0xff]
        %v450 = vld [vmem:[#allocation2 + $0x60] sm:$0xff]
        %v451 = vld [vmem:[#allocation2 + $0x68] sm:$0xff]
        %v452 = vld [vmem:[#allocation2 + $0x70] sm:$0xff]
        %v453 = vld [vmem:[#allocation2 + $0x78] sm:$0xff]
        %v454 = vld [vmem:[#allocation3] sm:$0xff]
        %v455 = vld [vmem:[#allocation3 + $0x8] sm:$0xff]
        %v456 = vld [vmem:[#allocation3 + $0x10] sm:$0xff]
        %v457 = vld [vmem:[#allocation3 + $0x18] sm:$0xff]
        %v458 = vld [vmem:[#allocation3 + $0x20] sm:$0xff]
        %v459 = vld [vmem:[#allocation3 + $0x28] sm:$0xff]
        %v460 = vld [vmem:[#allocation3 + $0x30] sm:$0xff]
        %v461 = vld [vmem:[#allocation3 + $0x38] sm:$0xff]
        %v462 = vld [vmem:[#allocation3 + $0x40] sm:$0xff]
        %v463 = vld [vmem:[#allocation3 + $0x48] sm:$0xff]
        %v464 = vld [vmem:[#allocation3 + $0x50] sm:$0xff]
        %v465 = vld [vmem:[#allocation3 + $0x58] sm:$0xff]
        %v466 = vld [vmem:[#allocation3 + $0x60] sm:$0xff]
        %v467 = vld [vmem:[#allocation3 + $0x68] sm:$0xff]
        %v468 = vld [vmem:[#allocation3 + $0x70] sm:$0xff]
        %v469 = vld [vmem:[#allocation3 + $0x78] sm:$0xff]
        %470 = vmatprep.subr.mxu0 0.0
        %471 = vmatpush1.xpose.msra.mxu0 %v454
        %472 = vmatprep.subr.mxu0 0.0
        %473 = vmatpush1.xpose.msra.mxu0 %v455
        %474 = vmatprep.subr.mxu0 0.0
        %475 = vmatpush1.xpose.msra.mxu0 %v456
        %476 = vmatprep.subr.mxu0 0.0
        %477 = vmatpush1.xpose.msra.mxu0 %v457
        %478 = vmatprep.subr.mxu0 0.0
        %479 = vmatpush1.xpose.msra.mxu0 %v458
        %480 = vmatprep.subr.mxu0 0.0
        %481 = vmatpush1.xpose.msra.mxu0 %v459
        %482 = vmatprep.subr.mxu0 0.0
        %483 = vmatpush1.xpose.msra.mxu0 %v460
        %484 = vmatprep.subr.mxu0 0.0
        %485 = vmatpush1.xpose.msra.mxu0 %v461
        %486 = vmatprep.subr.mxu0 0.0
        %487 = vmatpush1.xpose.msra.mxu0 %v462
        %488 = vmatprep.subr.mxu0 0.0
        %489 = vmatpush1.xpose.msra.mxu0 %v463
        %490 = vmatprep.subr.mxu0 0.0
        %491 = vmatpush1.xpose.msra.mxu0 %v464
        %492 = vmatprep.subr.mxu0 0.0
        %493 = vmatpush1.xpose.msra.mxu0 %v465
        %494 = vmatprep.subr.mxu0 0.0
        %495 = vmatpush1.xpose.msra.mxu0 %v466
        %496 = vmatprep.subr.mxu0 0.0
        %497 = vmatpush1.xpose.msra.mxu0 %v467
        %498 = vmatprep.subr.mxu0 0.0
        %499 = vmatpush1.xpose.msra.mxu0 %v468
        %500 = vmatprep.subr.mxu0 0.0
        %501 = vmatpush1.xpose.msra.mxu0 %v469
        %502 = vmatprep.subr.mxu0 0.0
        %503 = vmatpush1.xpose.msra.mxu0 0.0
        %504 = vmatprep.subr.mxu0 0.0
        %505 = vmatpush1.xpose.msra.mxu0 0.0
        %506 = vmatprep.subr.mxu0 0.0
        %507 = vmatpush1.xpose.msra.mxu0 0.0
        %508 = vmatprep.subr.mxu0 0.0
        %509 = vmatpush1.xpose.msra.mxu0 0.0
        %510 = vmatprep.subr.mxu0 0.0
        %511 = vmatpush1.xpose.msra.mxu0 0.0
        %512 = vmatprep.subr.mxu0 0.0
        %513 = vmatpush1.xpose.msra.mxu0 0.0
        %514 = vmatprep.subr.mxu0 0.0
        %515 = vmatpush1.xpose.msra.mxu0 0.0
        %516 = vmatprep.subr.mxu0 0.0
        %517 = vmatpush1.xpose.msra.mxu0 0.0
        %518 = vmatprep.subr.mxu0 0.0
        %519 = vmatpush1.xpose.msra.mxu0 0.0
        %520 = vmatprep.subr.mxu0 0.0
        %521 = vmatpush1.xpose.msra.mxu0 0.0
        %522 = vmatprep.subr.mxu0 0.0
        %523 = vmatpush1.xpose.msra.mxu0 0.0
        %524 = vmatprep.subr.mxu0 0.0
        %525 = vmatpush1.xpose.msra.mxu0 0.0
        %526 = vmatprep.subr.mxu0 0.0
        %527 = vmatpush1.xpose.msra.mxu0 0.0
        %528 = vmatprep.subr.mxu0 0.0
        %529 = vmatpush1.xpose.msra.mxu0 0.0
        %530 = vmatprep.subr.mxu0 0.0
        %531 = vmatpush1.xpose.msra.mxu0 0.0
        %532 = vmatprep.subr.mxu0 0.0
        %533 = vmatpush1.xpose.msra.mxu0 0.0
        %534 = vmatprep.mubr.f32.mxu0 0.0
        %535 = vmatmul.mubr.f32.gmra.mrb[0].mxu0 %v438
        %v536 = vpop.f32.mrb[0].mxu0
        %v537 = vadd.f32 0.0, %v536
        %v538 = vpop.f32.mrb[0].mxu0
        %539 = vmatprep.mubr.f32.mxu0 0.0
        %540 = vmatmul.mubr.f32.gmra.mrb[0].mxu0 %v439
        %v541 = vpop.f32.mrb[0].mxu0
        %v542 = vadd.f32 0.0, %v541
        %v543 = vpop.f32.mrb[0].mxu0
        %544 = vmatprep.mubr.f32.mxu0 0.0
        %545 = vmatmul.mubr.f32.gmra.mrb[0].mxu0 %v440
        %v546 = vpop.f32.mrb[0].mxu0
        %v547 = vadd.f32 0.0, %v546
        %v548 = vpop.f32.mrb[0].mxu0
        %549 = vmatprep.mubr.f32.mxu0 0.0
        %550 = vmatmul.mubr.f32.gmra.mrb[0].mxu0 %v441
        %v551 = vpop.f32.mrb[0].mxu0
        %v552 = vadd.f32 0.0, %v551
        %v553 = vpop.f32.mrb[0].mxu0
        %554 = vmatprep.mubr.f32.mxu0 0.0
        %555 = vmatmul.mubr.f32.gmra.mrb[0].mxu0 %v442
        %v556 = vpop.f32.mrb[0].mxu0
        %v557 = vadd.f32 0.0, %v556
        %v558 = vpop.f32.mrb[0].mxu0
        %559 = vmatprep.mubr.f32.mxu0 0.0
        %560 = vmatmul.mubr.f32.gmra.mrb[0].mxu0 %v443
        %v561 = vpop.f32.mrb[0].mxu0
        %v562 = vadd.f32 0.0, %v561
        %v563 = vpop.f32.mrb[0].mxu0
        %564 = vmatprep.mubr.f32.mxu0 0.0
        %565 = vmatmul.mubr.f32.gmra.mrb[0].mxu0 %v444
        %v566 = vpop.f32.mrb[0].mxu0
        %v567 = vadd.f32 0.0, %v566
        %v568 = vpop.f32.mrb[0].mxu0
        %569 = vmatprep.mubr.f32.mxu0 0.0
        %570 = vmatmul.mubr.f32.gmra.mrb[0].mxu0 %v445
        %v571 = vpop.f32.mrb[0].mxu0
        %v572 = vadd.f32 0.0, %v571
        %v573 = vpop.f32.mrb[0].mxu0
        %574 = vmatprep.mubr.f32.mxu0 0.0
        %575 = vmatmul.mubr.f32.gmra.mrb[0].mxu0 %v446
        %v576 = vpop.f32.mrb[0].mxu0
        %v577 = vadd.f32 0.0, %v576
        %v578 = vpop.f32.mrb[0].mxu0
        %579 = vmatprep.mubr.f32.mxu0 0.0
        %580 = vmatmul.mubr.f32.gmra.mrb[0].mxu0 %v447
        %v581 = vpop.f32.mrb[0].mxu0
        %v582 = vadd.f32 0.0, %v581
        %v583 = vpop.f32.mrb[0].mxu0
        %584 = vmatprep.mubr.f32.mxu0 0.0
        %585 = vmatmul.mubr.f32.gmra.mrb[0].mxu0 %v448
        %v586 = vpop.f32.mrb[0].mxu0
        %v587 = vadd.f32 0.0, %v586
        %v588 = vpop.f32.mrb[0].mxu0
        %589 = vmatprep.mubr.f32.mxu0 0.0
        %590 = vmatmul.mubr.f32.gmra.mrb[0].mxu0 %v449
        %v591 = vpop.f32.mrb[0].mxu0
        %v592 = vadd.f32 0.0, %v591
        %v593 = vpop.f32.mrb[0].mxu0
        %594 = vmatprep.mubr.f32.mxu0 0.0
        %595 = vmatmul.mubr.f32.gmra.mrb[0].mxu0 %v450
        %v596 = vpop.f32.mrb[0].mxu0
        %v597 = vadd.f32 0.0, %v596
        %v598 = vpop.f32.mrb[0].mxu0
        %599 = vmatprep.mubr.f32.mxu0 0.0
        %600 = vmatmul.mubr.f32.gmra.mrb[0].mxu0 %v451
        %v601 = vpop.f32.mrb[0].mxu0
        %v602 = vadd.f32 0.0, %v601
        %v603 = vpop.f32.mrb[0].mxu0
        %604 = vmatprep.mubr.f32.mxu0 0.0
        %605 = vmatmul.mubr.f32.gmra.mrb[0].mxu0 %v452
        %v606 = vpop.f32.mrb[0].mxu0
        %v607 = vadd.f32 0.0, %v606
        %v608 = vpop.f32.mrb[0].mxu0
        %609 = vmatprep.mubr.f32.mxu0 0.0
        %610 = vmatmul.mubr.f32.gmra.mrb[0].mxu0 %v453
        %v611 = vpop.f32.mrb[0].mxu0
        %v612 = vadd.f32 0.0, %v611
        %v613 = vpop.f32.mrb[0].mxu0
        %614 = vdwg.mxu0
        %v615 = vsel %vm367, %v537, 0.0
        %v616 = vsel %vm368, %v542, 0.0
        %v617 = vsel %vm369, %v547, 0.0
        %v618 = vsel %vm370, %v552, 0.0
        %v619 = vsel %vm371, %v557, 0.0
        %v620 = vsel %vm372, %v562, 0.0
        %v621 = vsel %vm373, %v567, 0.0
        %v622 = vsel %vm374, %v572, 0.0
        %v623 = vsel %vm375, %v577, 0.0
        %v624 = vsel %vm376, %v582, 0.0
        %v625 = vsel %vm377, %v587, 0.0
        %v626 = vsel %vm378, %v592, 0.0
        %v627 = vsel %vm379, %v597, 0.0
        %v628 = vsel %vm380, %v602, 0.0
        %v629 = vsel %vm381, %v607, 0.0
        %v630 = vsel %vm382, %v612, 0.0
        %v631 = vadd.f32 %v615, %v616
        %v632 = vadd.f32 %v631, %v617
        %v633 = vadd.f32 %v632, %v618
        %v634 = vadd.f32 %v633, %v619
        %v635 = vadd.f32 %v634, %v620
        %v636 = vadd.f32 %v635, %v621
        %v637 = vadd.f32 %v636, %v622
        %v638 = vadd.f32 %v637, %v623
        %v639 = vadd.f32 %v638, %v624
        %v640 = vadd.f32 %v639, %v625
        %v641 = vadd.f32 %v640, %v626
        %v642 = vadd.f32 %v641, %v627
        %v643 = vadd.f32 %v642, %v628
        %v644 = vadd.f32 %v643, %v629
        %v645 = vadd.f32 %v644, %v630
        %v646 = vrot.slane %v645, 4
        %v647 = vadd.f32 %v645, %v646
        %v648 = vrot.slane %v647, 2
        %v649 = vadd.f32 %v647, %v648
        %v650 = vrot.slane %v649, 1
        %v651 = vadd.f32 %v649, %v650
        %652 = vst [vmem:[%s152] sm:$0x1] %v651
        %s653 = sand.u32 %s71, 1
        %s654 = scalar_lea.sflag [#allocation10], %s653
        %s655 = sand.u32 %s71, 1
        %s656 = scalar_lea.vmem [#allocation9], %s655
        %s657 = sand.u32 %s97, 1
        %s658 = scalar_lea.sflag [#allocation12], %s657
        %s659 = sand.u32 %s97, 1
        %s660 = scalar_lea.vmem [#allocation11], %s659
        // Predicated region
        $region39: #{model_forward.5} parent=23 // pred_check
          %p661 = pneg %p81
        $region40: #{model_forward.5} parent=23 // pred_check_branch
          %663 = sbr.rel (%p661) target = $region42
        $region41: #{model_forward.5} parent=23 // pred_region
          %s665 = ssub.s32 16, 16
          %666 = vsyncadd %s654, %s665
          %s667 = smul.addr %s42, 16
          %s668 = scalar_lea.hbm %s5, %s667
          %s670 = sshll.u32 %s656, 4
          %s671 = int_to_ptr.vmem [resolvable:$true] %s670
          %673 = dma.vmem_to_hbm [thread:$0]  %s671, 16, %s668, %s654
        $region42: #{model_forward.5} parent=23 // pred_fallthru
          _
        // Predicated region
        $region43: #{model_forward.5} parent=23 // pred_check
          %p674 = pneg %p107
        $region44: #{model_forward.5} parent=23 // pred_check_branch
          %676 = sbr.rel (%p674) target = $region46
        $region45: #{model_forward.5} parent=23 // pred_region
          %s678 = ssub.s32 16, 16
          %679 = vsyncadd %s658, %s678
          %s680 = smul.addr %s42, 16
          %s681 = scalar_lea.hbm %s6, %s680
          %s683 = sshll.u32 %s660, 4
          %s684 = int_to_ptr.vmem [resolvable:$true] %s683
          %686 = dma.vmem_to_hbm [thread:$0]  %s684, 16, %s681, %s658
        $region46: #{model_forward.5} parent=23 // pred_fallthru
          _
      $region24: #{model_forward.5} parent=5 // pred_fallthru
        _
      %p687 = scmp.le.s32.totalorder 2, %s37
      // Predicated region
      $region47: #{model_forward.5} parent=5 // pred_check
        %p688 = pneg %p687
      $region48: #{model_forward.5} parent=5 // pred_check_branch
        %690 = sbr.rel (%p688) target = $region50
      $region49: #{model_forward.5} parent=5 // pred_region
        %s691 = ssub.s32 %s37, 2
        // Predicated region
        $region51: #{model_forward.5} parent=49 // pred_check
          %p692 = pneg %p87
        $region52: #{model_forward.5} parent=49 // pred_check_branch
          %694 = sbr.rel (%p692) target = $region54
        $region53: #{model_forward.5} parent=49 // pred_region
          %s695 = sand.u32 %s72, 1
          %s696 = scalar_lea.sflag [#allocation10], %s695
          %s697 = sand.u32 %s72, 1
          %s698 = scalar_lea.vmem [#allocation9], %s697
          %699 = dma.done %s696, 16
        $region54: #{model_forward.5} parent=49 // pred_fallthru
          _
        // Predicated region
        $region55: #{model_forward.5} parent=49 // pred_check
          %p700 = pneg %p113
        $region56: #{model_forward.5} parent=49 // pred_check_branch
          %702 = sbr.rel (%p700) target = $region58
        $region57: #{model_forward.5} parent=49 // pred_region
          %s703 = sand.u32 %s98, 1
          %s704 = scalar_lea.sflag [#allocation12], %s703
          %s705 = sand.u32 %s98, 1
          %s706 = scalar_lea.vmem [#allocation11], %s705
          %707 = dma.done %s704, 16
        $region58: #{model_forward.5} parent=49 // pred_fallthru
          _
      $region50: #{model_forward.5} parent=5 // pred_fallthru
        _
    $region6: #{model_forward.5} parent=1 // loop_footer
      %s41 = sadd.s32 1, %s37
    $region7: #{model_forward.5} parent=1 // loop_footer_branch
      %36 = sbr.rel target = $region3
    $region8: #{model_forward.5} parent=1 // loop_exit
      _
    %708 = vsyncpa [#allocation10], 1
    %s709 = scalar_lea.sflag [#allocation10], 1
    %710 = vsyncpa %s709, 1
    %711 = vsyncpa [#allocation12], 1
    %s712 = scalar_lea.sflag [#allocation12], 1
    %713 = vsyncpa %s712, 1

// kernel: model_forward.4
$region0: #{model_forward.4}
  #allocation0 [shape = 'u32[]', space=smem, size = 0x4, offset = 0x4, fixed_abs, tag = 'smem constant byte address 0x4 - core index']
  #allocation1 [shape = 'u32[144,128]{1,0:T(1,128)}', space=vmem, size = 0x12000, scoped, tag = 'internal scratch']
  #allocation2 [shape = 'f32[128,128]{1,0:T(8,128)}', space=vmem, size = 0x10000, scoped, tag = 'scratch operand']
  %s0 = inlined_call_operand.vmem [shape: bf16[256,256], index: 0, kind: input, shape index: {}]
  %s1 = inlined_call_operand.vmem [shape: bf16[256,128], index: 1, kind: input, shape index: {}, may-alias: {1,2}]
  %s2 = inlined_call_operand.vmem [shape: bf16[256,128], index: 2, kind: input, shape index: {}, may-alias: {1,2}]
  %s3 = inlined_call_operand.vmem [shape: bf16[256,128], index: 3, kind: input, shape index: {}]
  %s4 = inlined_call_operand.vmem [shape: f32[1,128], index: 4, kind: input, shape index: {}]
  %s5 = inlined_call_operand.vmem [shape: f32[256,128], index: 5, kind: output, shape index: {}]
  %s6 = sld [smem:[#allocation0]]
  $region102: #{model_forward.4} parent=0
    _
  %s8 = ssub.s32 1, %s6
  %s9 = scalar_select 0, %s8, %s6
  $region1: #{model_forward.4} parent=0
    #allocation3 [shape = 'u8[65536]{0}', space=vmem, size = 0x10000, scoped, tag = 'input window, operand 0']
    loop: start=0, step=1, limit=6
    $region2: #{model_forward.4} parent=1 // loop_pre_header
      _
    $region3: #{model_forward.4} parent=1 // loop_header
      %s11 = sphi 0, %s15
      %p12 = scmp.ge.s32.totalorder %s11, 6
      %s18 = sphi 0, %s30
      %s19 = sphi 0, %s26
      %s20 = sphi 0, %s18
      %s21 = sphi 0, %s19
      %s22 = sphi 0, %s20
      %s23 = sphi 0, %s21
      %s35 = sphi 0, %s37
      %s38 = sphi 0, %s35
      %s39 = sphi 0, %s38
      %s55 = sphi 0, %s39
      %s61 = sphi 0, %s63
      %s64 = sphi 0, %s61
      %s65 = sphi 0, %s64
      %s81 = sphi 0, %s65
      %s87 = sphi 0, %s89
      %s90 = sphi 0, %s87
      %s91 = sphi 0, %s90
      %s107 = sphi 0, %s91
      %s111 = sphi 0, %s111
      %s113 = sphi 0, %s111
      %s114 = sphi 0, %s113
      %s128 = sphi 0, %s114
      %s132 = sphi 0, %s132
      %s134 = sphi 0, %s132
      %s135 = sphi 0, %s134
      %s149 = sphi 0, %s135
      %s155 = sphi 0, %s157
      %s158 = sphi 0, %s155
      %s159 = sphi 0, %s158
      %s175 = sphi 0, %s159
    $region4: #{model_forward.4} parent=1 // loop_header_branch
      %14 = sbr.rel (%p12) target = $region8
    $region5: #{model_forward.4} parent=1 // loop_body
      %s16 = ssub.s32 %s11, 1
      %s17 = ssub.s32 %s11, 2
      %s24 = sadd.s32 1, %s19
      %p25 = scmp.ge.s32.totalorder %s24, 2
      %s26 = scalar_select %p25, 0, %s24
      %s27 = sadd.s32 1, %s18
      %s28 = scalar_select %p25, %s27, %s18
      %p29 = scmp.ge.s32.totalorder %s28, 2
      %s30 = scalar_select %p29, 0, %s28
      %s31 = ssub.s32 %s18, %s30
      %s32 = ssub.s32 %s19, %s26
      %s33 = sor.u32 %s31, %s32
      %p34 = scmp.eq.s32.totalorder %s33, 0
      %s36 = sadd.s32 %s35, 1
      %s37 = scalar_select %p34, %s35, %s36
      %p40 = pneg %p34
      %p41 = scmp.eq.s32.totalorder %s11, 3
      %p42 = por %p40, %p41
      %p43 = scmp.ne.s32.totalorder %s35, %s38
      %p44 = scmp.eq.s32.totalorder %s11, 0
      %p45 = por %p43, %p44
      %p46 = scmp.ne.s32.totalorder %s35, %s38
      %p47 = scmp.eq.s32.totalorder %s16, 3
      %p48 = por %p46, %p47
      %p49 = scmp.ne.s32.totalorder %s38, %s39
      %p50 = scmp.eq.s32.totalorder %s16, 0
      %p51 = por %p49, %p50
      %p52 = scmp.ne.s32.totalorder %s38, %s39
      %p53 = scmp.eq.s32.totalorder %s17, 3
      %p54 = por %p52, %p53
      %p56 = scmp.ne.s32.totalorder %s39, %s55
      %p57 = scmp.eq.s32.totalorder %s17, 0
      %p58 = por %p56, %p57
      %s59 = ssub.s32 %s19, %s26
      %p60 = scmp.eq.s32.totalorder %s59, 0
      %s62 = sadd.s32 %s61, 1
      %s63 = scalar_select %p60, %s61, %s62
      %p66 = pneg %p60
      %p67 = scmp.eq.s32.totalorder %s11, 3
      %p68 = por %p66, %p67
      %p69 = scmp.ne.s32.totalorder %s61, %s64
      %p70 = scmp.eq.s32.totalorder %s11, 0
      %p71 = por %p69, %p70
      %p72 = scmp.ne.s32.totalorder %s61, %s64
      %p73 = scmp.eq.s32.totalorder %s16, 3
      %p74 = por %p72, %p73
      %p75 = scmp.ne.s32.totalorder %s64, %s65
      %p76 = scmp.eq.s32.totalorder %s16, 0
      %p77 = por %p75, %p76
      %p78 = scmp.ne.s32.totalorder %s64, %s65
      %p79 = scmp.eq.s32.totalorder %s17, 3
      %p80 = por %p78, %p79
      %p82 = scmp.ne.s32.totalorder %s65, %s81
      %p83 = scmp.eq.s32.totalorder %s17, 0
      %p84 = por %p82, %p83
      %s85 = ssub.s32 %s18, %s30
      %p86 = scmp.eq.s32.totalorder %s85, 0
      %s88 = sadd.s32 %s87, 1
      %s89 = scalar_select %p86, %s87, %s88
      %p92 = pneg %p86
      %p93 = scmp.eq.s32.totalorder %s11, 3
      %p94 = por %p92, %p93
      %p95 = scmp.ne.s32.totalorder %s87, %s90
      %p96 = scmp.eq.s32.totalorder %s11, 0
      %p97 = por %p95, %p96
      %p98 = scmp.ne.s32.totalorder %s87, %s90
      %p99 = scmp.eq.s32.totalorder %s16, 3
      %p100 = por %p98, %p99
      %p101 = scmp.ne.s32.totalorder %s90, %s91
      %p102 = scmp.eq.s32.totalorder %s16, 0
      %p103 = por %p101, %p102
      %p104 = scmp.ne.s32.totalorder %s90, %s91
      %p105 = scmp.eq.s32.totalorder %s17, 3
      %p106 = por %p104, %p105
      %p108 = scmp.ne.s32.totalorder %s91, %s107
      %p109 = scmp.eq.s32.totalorder %s17, 0
      %p110 = por %p108, %p109
      %s112 = sadd.s32 %s111, 1
      %p115 = scmp.eq.s32.totalorder %s11, 3
      %p116 = scmp.ne.s32.totalorder %s111, %s113
      %p117 = scmp.eq.s32.totalorder %s11, 0
      %p118 = por %p116, %p117
      %p119 = scmp.ne.s32.totalorder %s111, %s113
      %p120 = scmp.eq.s32.totalorder %s16, 3
      %p121 = por %p119, %p120
      %p122 = scmp.ne.s32.totalorder %s113, %s114
      %p123 = scmp.eq.s32.totalorder %s16, 0
      %p124 = por %p122, %p123
      %p125 = scmp.ne.s32.totalorder %s113, %s114
      %p126 = scmp.eq.s32.totalorder %s17, 3
      %p127 = por %p125, %p126
      %p129 = scmp.ne.s32.totalorder %s114, %s128
      %p130 = scmp.eq.s32.totalorder %s17, 0
      %p131 = por %p129, %p130
      %s133 = sadd.s32 %s132, 1
      %p136 = scmp.eq.s32.totalorder %s11, 3
      %p137 = scmp.ne.s32.totalorder %s132, %s134
      %p138 = scmp.eq.s32.totalorder %s11, 0
      %p139 = por %p137, %p138
      %p140 = scmp.ne.s32.totalorder %s132, %s134
      %p141 = scmp.eq.s32.totalorder %s16, 3
      %p142 = por %p140, %p141
      %p143 = scmp.ne.s32.totalorder %s134, %s135
      %p144 = scmp.eq.s32.totalorder %s16, 0
      %p145 = por %p143, %p144
      %p146 = scmp.ne.s32.totalorder %s134, %s135
      %p147 = scmp.eq.s32.totalorder %s17, 3
      %p148 = por %p146, %p147
      %p150 = scmp.ne.s32.totalorder %s135, %s149
      %p151 = scmp.eq.s32.totalorder %s17, 0
      %p152 = por %p150, %p151
      %s153 = ssub.s32 %s18, %s30
      %p154 = scmp.eq.s32.totalorder %s153, 0
      %s156 = sadd.s32 %s155, 1
      %s157 = scalar_select %p154, %s155, %s156
      %p160 = pneg %p154
      %p161 = scmp.eq.s32.totalorder %s11, 3
      %p162 = por %p160, %p161
      %p163 = scmp.ne.s32.totalorder %s155, %s158
      %p164 = scmp.eq.s32.totalorder %s11, 0
      %p165 = por %p163, %p164
      %p166 = scmp.ne.s32.totalorder %s155, %s158
      %p167 = scmp.eq.s32.totalorder %s16, 3
      %p168 = por %p166, %p167
      %p169 = scmp.ne.s32.totalorder %s158, %s159
      %p170 = scmp.eq.s32.totalorder %s16, 0
      %p171 = por %p169, %p170
      %p172 = scmp.ne.s32.totalorder %s158, %s159
      %p173 = scmp.eq.s32.totalorder %s17, 3
      %p174 = por %p172, %p173
      %p176 = scmp.ne.s32.totalorder %s159, %s175
      %p177 = scmp.eq.s32.totalorder %s17, 0
      %p178 = por %p176, %p177
      %p179 = scmp.le.s32.totalorder 1, %s11
      %p180 = scmp.lt.s32.totalorder %s11, 5
      %p181 = pnand %p179, %p180
      %p182 = pneg %p181
      // Predicated region
      $region9: #{model_forward.4} parent=5 // pred_check
        _
      $region10: #{model_forward.4} parent=5 // pred_check_branch
        %184 = sbr.rel (%p181) target = $region12
      $region11: #{model_forward.4} parent=5 // pred_region
        %s185 = ssub.s32 %s11, 1
        // Predicated region
        $region13: #{model_forward.4} parent=11 // pred_check
          %p186 = pneg %p124
        $region14: #{model_forward.4} parent=11 // pred_check_branch
          %188 = sbr.rel (%p186) target = $region16
        $region15: #{model_forward.4} parent=11 // pred_region
          _
        $region16: #{model_forward.4} parent=11 // pred_fallthru
          _
        // Predicated region
        $region17: #{model_forward.4} parent=11 // pred_check
          %p189 = pneg %p145
        $region18: #{model_forward.4} parent=11 // pred_check_branch
          %191 = sbr.rel (%p189) target = $region20
        $region19: #{model_forward.4} parent=11 // pred_region
          _
        $region20: #{model_forward.4} parent=11 // pred_fallthru
          _
      $region12: #{model_forward.4} parent=5 // pred_fallthru
        _
      %p192 = scmp.lt.s32.totalorder %s11, 4
      // Predicated region
      $region21: #{model_forward.4} parent=5 // pred_check
        %p193 = pneg %p192
      $region22: #{model_forward.4} parent=5 // pred_check_branch
        %195 = sbr.rel (%p193) target = $region24
      $region23: #{model_forward.4} parent=5 // pred_region
        // Predicated region
        $region25: #{model_forward.4} parent=23 // pred_check
          %p196 = pneg %p45
        $region26: #{model_forward.4} parent=23 // pred_check_branch
          %198 = sbr.rel (%p196) target = $region28
        $region27: #{model_forward.4} parent=23 // pred_region
          %s199 = sand.u32 %s35, 1
          %s200 = sand.u32 %s35, 1
          %s201 = smul.addr %s200, 64
          %s202 = scalar_lea.vmem [#allocation3], %s201
          %s203 = smul.u32 16, %s18
          %s204 = smul.addr %s203, 2
          %s205 = sadd.s32 %s19, %s204
          %s206 = smul.addr %s205, 4
          %s207 = scalar_lea.vmem %s0, %s206
          // Predicated region
          $region29: #{model_forward.4} parent=27 // pred_check
            _
          $region30: #{model_forward.4} parent=27 // pred_check_branch
            %209 = sbr.rel (0) target = $region32
          $region31: #{model_forward.4} parent=27 // pred_region
            // Predicated region
            $region33: #{model_forward.4} parent=31 // pred_check
              _
            $region34: #{model_forward.4} parent=31 // pred_check_branch
              %211 = sbr.rel target = $region36
            $region35: #{model_forward.4} parent=31 // pred_region
              // Predicated region
              $region48: #{model_forward.4} parent=35 // pred_check
                _
              $region49: #{model_forward.4} parent=35 // pred_check_branch
                %256 = sbr.rel (0) target = $region51
              $region50: #{model_forward.4} parent=35 // pred_region
                loop: start=0, step=1, limit=1
                $region52: #{model_forward.4} parent=50 // loop_pre_header
                  _
                $region53: #{model_forward.4} parent=50 // loop_header
                  %s258 = sphi 0, %s262
                  %p259 = scmp.ge.s32.totalorder %s258, 1
                  %s263 = sphi %s207, %s207
                  %s264 = sphi %s202, %s202
                $region54: #{model_forward.4} parent=50 // loop_header_branch
                  %261 = sbr.rel (%p259) target = $region58
                $region55: #{model_forward.4} parent=50 // loop_body
                  _
                $region56: #{model_forward.4} parent=50 // loop_footer
                  %s262 = sadd.s32 1, %s258
                $region57: #{model_forward.4} parent=50 // loop_footer_branch
                  %257 = sbr.rel target = $region53
                $region58: #{model_forward.4} parent=50 // loop_exit
                  _
                loop: start=0, step=1, limit=1
                $region59: #{model_forward.4} parent=50 // loop_pre_header
                  _
                $region60: #{model_forward.4} parent=50 // loop_header
                  %s267 = sphi 0, %s271
                  %p268 = scmp.ge.s32.totalorder %s267, 1
                  %s272 = sphi %s207, %s207
                  %s273 = sphi %s202, %s202
                $region61: #{model_forward.4} parent=50 // loop_header_branch
                  %270 = sbr.rel (%p268) target = $region65
                $region62: #{model_forward.4} parent=50 // loop_body
                  %v274 = vld [vmem:[%s272] sm:$0xf]
                  %275 = vst [vmem:[%s273] sm:$0xf] %v274
                  %v276 = vld [vmem:[%s272 + $0x8] sm:$0xf]
                  %277 = vst [vmem:[%s273 + $0x4] sm:$0xf] %v276
                  %v278 = vld [vmem:[%s272 + $0x10] sm:$0xf]
                  %279 = vst [vmem:[%s273 + $0x8] sm:$0xf] %v278
                  %v280 = vld [vmem:[%s272 + $0x18] sm:$0xf]
                  %281 = vst [vmem:[%s273 + $0xc] sm:$0xf] %v280
                  %v282 = vld [vmem:[%s272 + $0x20] sm:$0xf]
                  %283 = vst [vmem:[%s273 + $0x10] sm:$0xf] %v282
                  %v284 = vld [vmem:[%s272 + $0x28] sm:$0xf]
                  %285 = vst [vmem:[%s273 + $0x14] sm:$0xf] %v284
                  %v286 = vld [vmem:[%s272 + $0x30] sm:$0xf]
                  %287 = vst [vmem:[%s273 + $0x18] sm:$0xf] %v286
                  %v288 = vld [vmem:[%s272 + $0x38] sm:$0xf]
                  %289 = vst [vmem:[%s273 + $0x1c] sm:$0xf] %v288
                  %v290 = vld [vmem:[%s272 + $0x40] sm:$0xf]
                  %291 = vst [vmem:[%s273 + $0x20] sm:$0xf] %v290
                  %v292 = vld [vmem:[%s272 + $0x48] sm:$0xf]
                  %293 = vst [vmem:[%s273 + $0x24] sm:$0xf] %v292
                  %v294 = vld [vmem:[%s272 + $0x50] sm:$0xf]
                  %295 = vst [vmem:[%s273 + $0x28] sm:$0xf] %v294
                  %v296 = vld [vmem:[%s272 + $0x58] sm:$0xf]
                  %297 = vst [vmem:[%s273 + $0x2c] sm:$0xf] %v296
                  %v298 = vld [vmem:[%s272 + $0x60] sm:$0xf]
                  %299 = vst [vmem:[%s273 + $0x30] sm:$0xf] %v298
                  %v300 = vld [vmem:[%s272 + $0x68] sm:$0xf]
                  %301 = vst [vmem:[%s273 + $0x34] sm:$0xf] %v300
                  %v302 = vld [vmem:[%s272 + $0x70] sm:$0xf]
                  %303 = vst [vmem:[%s273 + $0x38] sm:$0xf] %v302
                  %v304 = vld [vmem:[%s272 + $0x78] sm:$0xf]
                  %305 = vst [vmem:[%s273 + $0x3c] sm:$0xf] %v304
                $region63: #{model_forward.4} parent=50 // loop_footer
                  %s271 = sadd.s32 1, %s267
                $region64: #{model_forward.4} parent=50 // loop_footer_branch
                  %266 = sbr.rel target = $region60
                $region65: #{model_forward.4} parent=50 // loop_exit
                  _
              $region51: #{model_forward.4} parent=35 // pred_fallthru
                _
            $region36: #{model_forward.4} parent=31 // pred_fallthru
              _
            // Predicated region
            $region37: #{model_forward.4} parent=31 // pred_check
              _
            $region38: #{model_forward.4} parent=31 // pred_check_branch
              %213 = sbr.rel (0) target = $region40
            $region39: #{model_forward.4} parent=31 // pred_region
              loop: start=0, step=1, limit=1
              $region41: #{model_forward.4} parent=39 // loop_pre_header
                _
              $region42: #{model_forward.4} parent=39 // loop_header
                %s216 = sphi 0, %s220
                %p217 = scmp.ge.s32.totalorder %s216, 1
                %s221 = sphi %s207, %s207
                %s222 = sphi %s202, %s202
              $region43: #{model_forward.4} parent=39 // loop_header_branch
                %219 = sbr.rel (%p217) target = $region47
              $region44: #{model_forward.4} parent=39 // loop_body
                %v223 = vld [vmem:[%s221] sm:$0xf]
                %224 = vst [vmem:[%s222] sm:$0xf] %v223
                %v225 = vld [vmem:[%s221 + $0x8] sm:$0xf]
                %226 = vst [vmem:[%s222 + $0x4] sm:$0xf] %v225
                %v227 = vld [vmem:[%s221 + $0x10] sm:$0xf]
                %228 = vst [vmem:[%s222 + $0x8] sm:$0xf] %v227
                %v229 = vld [vmem:[%s221 + $0x18] sm:$0xf]
                %230 = vst [vmem:[%s222 + $0xc] sm:$0xf] %v229
                %v231 = vld [vmem:[%s221 + $0x20] sm:$0xf]
                %232 = vst [vmem:[%s222 + $0x10] sm:$0xf] %v231
                %v233 = vld [vmem:[%s221 + $0x28] sm:$0xf]
                %234 = vst [vmem:[%s222 + $0x14] sm:$0xf] %v233
                %v235 = vld [vmem:[%s221 + $0x30] sm:$0xf]
                %236 = vst [vmem:[%s222 + $0x18] sm:$0xf] %v235
                %v237 = vld [vmem:[%s221 + $0x38] sm:$0xf]
                %238 = vst [vmem:[%s222 + $0x1c] sm:$0xf] %v237
                %v239 = vld [vmem:[%s221 + $0x40] sm:$0xf]
                %240 = vst [vmem:[%s222 + $0x20] sm:$0xf] %v239
                %v241 = vld [vmem:[%s221 + $0x48] sm:$0xf]
                %242 = vst [vmem:[%s222 + $0x24] sm:$0xf] %v241
                %v243 = vld [vmem:[%s221 + $0x50] sm:$0xf]
                %244 = vst [vmem:[%s222 + $0x28] sm:$0xf] %v243
                %v245 = vld [vmem:[%s221 + $0x58] sm:$0xf]
                %246 = vst [vmem:[%s222 + $0x2c] sm:$0xf] %v245
                %v247 = vld [vmem:[%s221 + $0x60] sm:$0xf]
                %248 = vst [vmem:[%s222 + $0x30] sm:$0xf] %v247
                %v249 = vld [vmem:[%s221 + $0x68] sm:$0xf]
                %250 = vst [vmem:[%s222 + $0x34] sm:$0xf] %v249
                %v251 = vld [vmem:[%s221 + $0x70] sm:$0xf]
                %252 = vst [vmem:[%s222 + $0x38] sm:$0xf] %v251
                %v253 = vld [vmem:[%s221 + $0x78] sm:$0xf]
                %254 = vst [vmem:[%s222 + $0x3c] sm:$0xf] %v253
              $region45: #{model_forward.4} parent=39 // loop_footer
                %s220 = sadd.s32 1, %s216
              $region46: #{model_forward.4} parent=39 // loop_footer_branch
                %215 = sbr.rel target = $region42
              $region47: #{model_forward.4} parent=39 // loop_exit
                _
            $region40: #{model_forward.4} parent=31 // pred_fallthru
              _
          $region32: #{model_forward.4} parent=27 // pred_fallthru
            _
          %306 = vnop
        $region28: #{model_forward.4} parent=23 // pred_fallthru
          _
        // Predicated region
        $region66: #{model_forward.4} parent=23 // pred_check
          %p307 = pneg %p71
        $region67: #{model_forward.4} parent=23 // pred_check_branch
          %309 = sbr.rel (%p307) target = $region69
        $region68: #{model_forward.4} parent=23 // pred_region
          %s310 = smul.u32 16, %s19
          %p311 = scmp.lt.s32.totalorder %s310, 31
          %s312 = scalar_select %p311, %s310, 31
          %s313 = smul.addr %s312, 4
          %s314 = scalar_lea.vmem %s1, %s313
          %s315 = smul.u32 16, %s19
        $region69: #{model_forward.4} parent=23 // pred_fallthru
          _
        // Predicated region
        $region70: #{model_forward.4} parent=23 // pred_check
          %p316 = pneg %p97
        $region71: #{model_forward.4} parent=23 // pred_check_branch
          %318 = sbr.rel (%p316) target = $region73
        $region72: #{model_forward.4} parent=23 // pred_region
          %s319 = smul.u32 16, %s18
          %p320 = scmp.lt.s32.totalorder %s319, 31
          %s321 = scalar_select %p320, %s319, 31
          %s322 = smul.addr %s321, 4
          %s323 = scalar_lea.vmem %s2, %s322
          %s324 = smul.u32 16, %s18
        $region73: #{model_forward.4} parent=23 // pred_fallthru
          _
      $region24: #{model_forward.4} parent=5 // pred_fallthru
        _
      %p325 = scmp.le.s32.totalorder 1, %s11
      %p326 = scmp.lt.s32.totalorder %s11, 5
      %p327 = pnand %p325, %p326
      %p328 = pneg %p327
      // Predicated region
      $region74: #{model_forward.4} parent=5 // pred_check
        _
      $region75: #{model_forward.4} parent=5 // pred_check_branch
        %330 = sbr.rel (%p327) target = $region77
      $region76: #{model_forward.4} parent=5 // pred_region
        %s331 = ssub.s32 %s11, 1
        %s332 = sand.u32 %s38, 1
        %s333 = sand.u32 %s38, 1
        %s334 = smul.addr %s333, 64
        %s335 = scalar_lea.vmem [#allocation3], %s334
        // Predicated region
        $region78: #{model_forward.4} parent=76 // pred_check
          %p336 = pneg %p51
        $region79: #{model_forward.4} parent=76 // pred_check_branch
          %338 = sbr.rel (%p336) target = $region81
        $region80: #{model_forward.4} parent=76 // pred_region
          _
        $region81: #{model_forward.4} parent=76 // pred_fallthru
          _
        %s339 = sand.u32 %s38, 1
        %s340 = sand.u32 %s38, 1
        %s341 = smul.addr %s340, 64
        %s342 = scalar_lea.vmem [#allocation3], %s341
        %p343 = pneg %p51
        %p344 = pneg %p48
        %s345 = smul.u32 16, %s21
        %p346 = scmp.lt.s32.totalorder %s345, 31
        %s347 = scalar_select %p346, %s345, 31
        %s348 = smul.addr %s347, 4
        %s349 = scalar_lea.vmem %s1, %s348
        %p350 = pneg %p77
        %p351 = pneg %p74
        %s352 = smul.u32 16, %s20
        %p353 = scmp.lt.s32.totalorder %s352, 31
        %s354 = scalar_select %p353, %s352, 31
        %s355 = smul.addr %s354, 4
        %s356 = scalar_lea.vmem %s2, %s355
        %p357 = pneg %p103
        %p358 = pneg %p100
        %p359 = pneg %p124
        %p360 = pneg %p121
        %p361 = pneg %p145
        %p362 = pneg %p142
        %p363 = pneg %p171
        %p364 = pneg %p168
        %s365 = smul.u32 16, %s20
        %p366 = scmp.lt.s32.totalorder %s365, 31
        %s367 = scalar_select %p366, %s365, 31
        %s368 = smul.addr %s367, 8
        %s369 = scalar_lea.vmem %s5, %s368
        %s370 = smul.u32 16, %s20
        %s371 = smul.u32 16, %s21
        %p372 = scmp.lt.s32.totalorder %s371, 31
        %s373 = scalar_select %p372, %s371, 31
        %s374 = smul.addr %s373, 4
        %s375 = scalar_lea.vmem %s1, %s374
        %s376 = smul.u32 16, %s21
        %s377 = smul.u32 16, %s20
        %p378 = scmp.lt.s32.totalorder %s377, 31
        %s379 = scalar_select %p378, %s377, 31
        %s380 = smul.addr %s379, 4
        %s381 = scalar_lea.vmem %s2, %s380
        %s382 = smul.u32 16, %s20
        %s383 = smul.u32 16, %s20
        %p384 = scmp.lt.s32.totalorder %s383, 31
        %s385 = scalar_select %p384, %s383, 31
        %s386 = smul.addr %s385, 8
        %s387 = scalar_lea.vmem %s5, %s386
        %s388 = smul.u32 16, %s20
        %p390 = scmp.eq.s32.totalorder %s21, 0
        // Predicated region
        $region82: #{model_forward.4} parent=76 // pred_check
          %p391 = pneg %p390
        $region83: #{model_forward.4} parent=76 // pred_check_branch
          %393 = sbr.rel (%p391) target = $region85
        $region84: #{model_forward.4} parent=76 // pred_region
          %394 = vst [vmem:[#allocation2] sm:$0xff] 0.0
          %395 = vst [vmem:[#allocation2 + $0x8] sm:$0xff] 0.0
          %396 = vst [vmem:[#allocation2 + $0x10] sm:$0xff] 0.0
          %397 = vst [vmem:[#allocation2 + $0x18] sm:$0xff] 0.0
          %398 = vst [vmem:[#allocation2 + $0x20] sm:$0xff] 0.0
          %399 = vst [vmem:[#allocation2 + $0x28] sm:$0xff] 0.0
          %400 = vst [vmem:[#allocation2 + $0x30] sm:$0xff] 0.0
          %401 = vst [vmem:[#allocation2 + $0x38] sm:$0xff] 0.0
          %402 = vst [vmem:[#allocation2 + $0x40] sm:$0xff] 0.0
          %403 = vst [vmem:[#allocation2 + $0x48] sm:$0xff] 0.0
          %404 = vst [vmem:[#allocation2 + $0x50] sm:$0xff] 0.0
          %405 = vst [vmem:[#allocation2 + $0x58] sm:$0xff] 0.0
          %406 = vst [vmem:[#allocation2 + $0x60] sm:$0xff] 0.0
          %407 = vst [vmem:[#allocation2 + $0x68] sm:$0xff] 0.0
          %408 = vst [vmem:[#allocation2 + $0x70] sm:$0xff] 0.0
          %409 = vst [vmem:[#allocation2 + $0x78] sm:$0xff] 0.0
        $region85: #{model_forward.4} parent=76 // pred_fallthru
          _
        %v410 = vld [vmem:[#allocation2] sm:$0xff]
        %v411 = vld [vmem:[#allocation2 + $0x8] sm:$0xff]
        %v412 = vld [vmem:[#allocation2 + $0x10] sm:$0xff]
        %v413 = vld [vmem:[#allocation2 + $0x18] sm:$0xff]
        %v414 = vld [vmem:[#allocation2 + $0x20] sm:$0xff]
        %v415 = vld [vmem:[#allocation2 + $0x28] sm:$0xff]
        %v416 = vld [vmem:[#allocation2 + $0x30] sm:$0xff]
        %v417 = vld [vmem:[#allocation2 + $0x38] sm:$0xff]
        %v418 = vld [vmem:[#allocation2 + $0x40] sm:$0xff]
        %v419 = vld [vmem:[#allocation2 + $0x48] sm:$0xff]
        %v420 = vld [vmem:[#allocation2 + $0x50] sm:$0xff]
        %v421 = vld [vmem:[#allocation2 + $0x58] sm:$0xff]
        %v422 = vld [vmem:[#allocation2 + $0x60] sm:$0xff]
        %v423 = vld [vmem:[#allocation2 + $0x68] sm:$0xff]
        %v424 = vld [vmem:[#allocation2 + $0x70] sm:$0xff]
        %v425 = vld [vmem:[#allocation2 + $0x78] sm:$0xff]
        %v426 = vld [vmem:[%s335] sm:$0xf]
        %v427 = vld [vmem:[%s335 + $0x4] sm:$0xf]
        %v428 = vld [vmem:[%s335 + $0x8] sm:$0xf]
        %v429 = vld [vmem:[%s335 + $0xc] sm:$0xf]
        %v430 = vld [vmem:[%s335 + $0x10] sm:$0xf]
        %v431 = vld [vmem:[%s335 + $0x14] sm:$0xf]
        %v432 = vld [vmem:[%s335 + $0x18] sm:$0xf]
        %v433 = vld [vmem:[%s335 + $0x1c] sm:$0xf]
        %v434 = vld [vmem:[%s335 + $0x20] sm:$0xf]
        %v435 = vld [vmem:[%s335 + $0x24] sm:$0xf]
        %v436 = vld [vmem:[%s335 + $0x28] sm:$0xf]
        %v437 = vld [vmem:[%s335 + $0x2c] sm:$0xf]
        %v438 = vld [vmem:[%s335 + $0x30] sm:$0xf]
        %v439 = vld [vmem:[%s335 + $0x34] sm:$0xf]
        %v440 = vld [vmem:[%s335 + $0x38] sm:$0xf]
        %v441 = vld [vmem:[%s335 + $0x3c] sm:$0xf]
        %v442 = vld [vmem:[%s375] sm:$0xf]
        %v443 = vld [vmem:[%s375 + $0x4] sm:$0xf]
        %v444 = vld [vmem:[%s375 + $0x8] sm:$0xf]
        %v445 = vld [vmem:[%s375 + $0xc] sm:$0xf]
        %v446 = vld [vmem:[%s375 + $0x10] sm:$0xf]
        %v447 = vld [vmem:[%s375 + $0x14] sm:$0xf]
        %v448 = vld [vmem:[%s375 + $0x18] sm:$0xf]
        %v449 = vld [vmem:[%s375 + $0x1c] sm:$0xf]
        %v450 = vld [vmem:[%s375 + $0x20] sm:$0xf]
        %v451 = vld [vmem:[%s375 + $0x24] sm:$0xf]
        %v452 = vld [vmem:[%s375 + $0x28] sm:$0xf]
        %v453 = vld [vmem:[%s375 + $0x2c] sm:$0xf]
        %v454 = vld [vmem:[%s375 + $0x30] sm:$0xf]
        %v455 = vld [vmem:[%s375 + $0x34] sm:$0xf]
        %v456 = vld [vmem:[%s375 + $0x38] sm:$0xf]
        %v457 = vld [vmem:[%s375 + $0x3c] sm:$0xf]
        %v474 = vunpack.c.l.b16 %v426
        %v475 = vunpack.c.l.b16 %v427
        %v476 = vunpack.c.l.b16 %v428
        %v477 = vunpack.c.l.b16 %v429
        %v478 = vunpack.c.l.b16 %v430
        %v479 = vunpack.c.l.b16 %v431
        %v480 = vunpack.c.l.b16 %v432
        %v481 = vunpack.c.l.b16 %v433
        %v482 = vunpack.c.l.b16 %v434
        %v483 = vunpack.c.l.b16 %v435
        %v484 = vunpack.c.l.b16 %v436
        %v485 = vunpack.c.l.b16 %v437
        %v486 = vunpack.c.l.b16 %v438
        %v487 = vunpack.c.l.b16 %v439
        %v488 = vunpack.c.l.b16 %v440
        %v489 = vunpack.c.l.b16 %v441
        %v490 = vpack.c.b16 %v475, %v474
        %v491 = vpack.c.b16 %v477, %v476
        %v492 = vpack.c.b16 %v479, %v478
        %v493 = vpack.c.b16 %v481, %v480
        %v494 = vpack.c.b16 %v483, %v482
        %v495 = vpack.c.b16 %v485, %v484
        %v496 = vpack.c.b16 %v487, %v486
        %v497 = vpack.c.b16 %v489, %v488
        %v522 = vunpack.c.l.b16 %v442
        %v523 = vunpack.c.l.b16 %v443
        %v524 = vunpack.c.l.b16 %v444
        %v525 = vunpack.c.l.b16 %v445
        %v526 = vunpack.c.l.b16 %v446
        %v527 = vunpack.c.l.b16 %v447
        %v528 = vunpack.c.l.b16 %v448
        %v529 = vunpack.c.l.b16 %v449
        %v530 = vunpack.c.l.b16 %v450
        %v531 = vunpack.c.l.b16 %v451
        %v532 = vunpack.c.l.b16 %v452
        %v533 = vunpack.c.l.b16 %v453
        %v534 = vunpack.c.l.b16 %v454
        %v535 = vunpack.c.l.b16 %v455
        %v536 = vunpack.c.l.b16 %v456
        %v537 = vunpack.c.l.b16 %v457
        %v538 = vpack.c.b16 %v523, %v522
        %v539 = vpack.c.b16 %v525, %v524
        %v540 = vpack.c.b16 %v527, %v526
        %v541 = vpack.c.b16 %v529, %v528
        %v542 = vpack.c.b16 %v531, %v530
        %v543 = vpack.c.b16 %v533, %v532
        %v544 = vpack.c.b16 %v535, %v534
        %v545 = vpack.c.b16 %v537, %v536
        %554 = vmatprep.subr.bf16.mxu0 0
        %555 = vmatpush1.bf16.msra.mxu0 %v538
        %556 = vmatprep.subr.bf16.mxu0 0
        %557 = vmatpush1.bf16.msra.mxu0 %v539
        %558 = vmatprep.subr.bf16.mxu0 0
        %559 = vmatpush1.bf16.msra.mxu0 %v540
        %560 = vmatprep.subr.bf16.mxu0 0
        %561 = vmatpush1.bf16.msra.mxu0 %v541
        %562 = vmatprep.subr.bf16.mxu0 0
        %563 = vmatpush1.bf16.msra.mxu0 %v542
        %564 = vmatprep.subr.bf16.mxu0 0
        %565 = vmatpush1.bf16.msra.mxu0 %v543
        %566 = vmatprep.subr.bf16.mxu0 0
        %567 = vmatpush1.bf16.msra.mxu0 %v544
        %568 = vmatprep.subr.bf16.mxu0 0
        %569 = vmatpush1.bf16.msra.mxu0 %v545
        %570 = vmatprep.subr.bf16.mxu0 0
        %571 = vmatpush1.bf16.msra.mxu0 0
        %572 = vmatprep.subr.bf16.mxu0 0
        %573 = vmatpush1.bf16.msra.mxu0 0
        %574 = vmatprep.subr.bf16.mxu0 0
        %575 = vmatpush1.bf16.msra.mxu0 0
        %576 = vmatprep.subr.bf16.mxu0 0
        %577 = vmatpush1.bf16.msra.mxu0 0
        %578 = vmatprep.subr.bf16.mxu0 0
        %579 = vmatpush1.bf16.msra.mxu0 0
        %580 = vmatprep.subr.bf16.mxu0 0
        %581 = vmatpush1.bf16.msra.mxu0 0
        %582 = vmatprep.subr.bf16.mxu0 0
        %583 = vmatpush1.bf16.msra.mxu0 0
        %584 = vmatprep.subr.bf16.mxu0 0
        %585 = vmatpush1.bf16.msra.mxu0 0
        %586 = vmatprep.mubr.bf16.mxu0 0
        %587 = vmatmul.mubr.bf16.gmra.mrb[0].mxu0 %v490
        %v588 = vpop.f32.mrb[0].mxu0
        %v589 = vadd.f32 0.0, %v588
        %v590 = vpop.f32.mrb[0].mxu0
        %v591 = vpop.f32.mrb[0].mxu0
        %v592 = vadd.f32 0.0, %v591
        %v593 = vpop.f32.mrb[0].mxu0
        %594 = vmatprep.mubr.bf16.mxu0 0
        %595 = vmatmul.mubr.bf16.gmra.mrb[0].mxu0 %v491
        %v596 = vpop.f32.mrb[0].mxu0
        %v597 = vadd.f32 0.0, %v596
        %v598 = vpop.f32.mrb[0].mxu0
        %v599 = vpop.f32.mrb[0].mxu0
        %v600 = vadd.f32 0.0, %v599
        %v601 = vpop.f32.mrb[0].mxu0
        %602 = vmatprep.mubr.bf16.mxu0 0
        %603 = vmatmul.mubr.bf16.gmra.mrb[0].mxu0 %v492
        %v604 = vpop.f32.mrb[0].mxu0
        %v605 = vadd.f32 0.0, %v604
        %v606 = vpop.f32.mrb[0].mxu0
        %v607 = vpop.f32.mrb[0].mxu0
        %v608 = vadd.f32 0.0, %v607
        %v609 = vpop.f32.mrb[0].mxu0
        %610 = vmatprep.mubr.bf16.mxu0 0
        %611 = vmatmul.mubr.bf16.gmra.mrb[0].mxu0 %v493
        %v612 = vpop.f32.mrb[0].mxu0
        %v613 = vadd.f32 0.0, %v612
        %v614 = vpop.f32.mrb[0].mxu0
        %v615 = vpop.f32.mrb[0].mxu0
        %v616 = vadd.f32 0.0, %v615
        %v617 = vpop.f32.mrb[0].mxu0
        %618 = vmatprep.mubr.bf16.mxu0 0
        %619 = vmatmul.mubr.bf16.gmra.mrb[0].mxu0 %v494
        %v620 = vpop.f32.mrb[0].mxu0
        %v621 = vadd.f32 0.0, %v620
        %v622 = vpop.f32.mrb[0].mxu0
        %v623 = vpop.f32.mrb[0].mxu0
        %v624 = vadd.f32 0.0, %v623
        %v625 = vpop.f32.mrb[0].mxu0
        %626 = vmatprep.mubr.bf16.mxu0 0
        %627 = vmatmul.mubr.bf16.gmra.mrb[0].mxu0 %v495
        %v628 = vpop.f32.mrb[0].mxu0
        %v629 = vadd.f32 0.0, %v628
        %v630 = vpop.f32.mrb[0].mxu0
        %v631 = vpop.f32.mrb[0].mxu0
        %v632 = vadd.f32 0.0, %v631
        %v633 = vpop.f32.mrb[0].mxu0
        %634 = vmatprep.mubr.bf16.mxu0 0
        %635 = vmatmul.mubr.bf16.gmra.mrb[0].mxu0 %v496
        %v636 = vpop.f32.mrb[0].mxu0
        %v637 = vadd.f32 0.0, %v636
        %v638 = vpop.f32.mrb[0].mxu0
        %v639 = vpop.f32.mrb[0].mxu0
        %v640 = vadd.f32 0.0, %v639
        %v641 = vpop.f32.mrb[0].mxu0
        %642 = vmatprep.mubr.bf16.mxu0 0
        %643 = vmatmul.mubr.bf16.gmra.mrb[0].mxu0 %v497
        %v644 = vpop.f32.mrb[0].mxu0
        %v645 = vadd.f32 0.0, %v644
        %v646 = vpop.f32.mrb[0].mxu0
        %v647 = vpop.f32.mrb[0].mxu0
        %v648 = vadd.f32 0.0, %v647
        %v649 = vpop.f32.mrb[0].mxu0
        %650 = vdwg.mxu0
        %v651 = vadd.f32 %v410, %v589
        %v652 = vadd.f32 %v411, %v592
        %v653 = vadd.f32 %v412, %v597
        %v654 = vadd.f32 %v413, %v600
        %v655 = vadd.f32 %v414, %v605
        %v656 = vadd.f32 %v415, %v608
        %v657 = vadd.f32 %v416, %v613
        %v658 = vadd.f32 %v417, %v616
        %v659 = vadd.f32 %v418, %v621
        %v660 = vadd.f32 %v419, %v624
        %v661 = vadd.f32 %v420, %v629
        %v662 = vadd.f32 %v421, %v632
        %v663 = vadd.f32 %v422, %v637
        %v664 = vadd.f32 %v423, %v640
        %v665 = vadd.f32 %v424, %v645
        %v666 = vadd.f32 %v425, %v648
        %667 = vst [vmem:[#allocation2] sm:$0xff] %v651
        %668 = vst [vmem:[#allocation2 + $0x8] sm:$0xff] %v652
        %669 = vst [vmem:[#allocation2 + $0x10] sm:$0xff] %v653
        %670 = vst [vmem:[#allocation2 + $0x18] sm:$0xff] %v654
        %671 = vst [vmem:[#allocation2 + $0x20] sm:$0xff] %v655
        %672 = vst [vmem:[#allocation2 + $0x28] sm:$0xff] %v656
        %673 = vst [vmem:[#allocation2 + $0x30] sm:$0xff] %v657
        %674 = vst [vmem:[#allocation2 + $0x38] sm:$0xff] %v658
        %675 = vst [vmem:[#allocation2 + $0x40] sm:$0xff] %v659
        %676 = vst [vmem:[#allocation2 + $0x48] sm:$0xff] %v660
        %677 = vst [vmem:[#allocation2 + $0x50] sm:$0xff] %v661
        %678 = vst [vmem:[#allocation2 + $0x58] sm:$0xff] %v662
        %679 = vst [vmem:[#allocation2 + $0x60] sm:$0xff] %v663
        %680 = vst [vmem:[#allocation2 + $0x68] sm:$0xff] %v664
        %681 = vst [vmem:[#allocation2 + $0x70] sm:$0xff] %v665
        %682 = vst [vmem:[#allocation2 + $0x78] sm:$0xff] %v666
        %p683 = scmp.eq.s32.totalorder %s21, 1
        // Predicated region
        $region86: #{model_forward.4} parent=76 // pred_check
          %p684 = pneg %p683
        $region87: #{model_forward.4} parent=76 // pred_check_branch
          %686 = sbr.rel (%p684) target = $region89
        $region88: #{model_forward.4} parent=76 // pred_region
          %v687 = vld [vmem:[#allocation2] sm:$0xff]
          %v688 = vld [vmem:[#allocation2 + $0x8] sm:$0xff]
          %v689 = vld [vmem:[#allocation2 + $0x10] sm:$0xff]
          %v690 = vld [vmem:[#allocation2 + $0x18] sm:$0xff]
          %v691 = vld [vmem:[#allocation2 + $0x20] sm:$0xff]
          %v692 = vld [vmem:[#allocation2 + $0x28] sm:$0xff]
          %v693 = vld [vmem:[#allocation2 + $0x30] sm:$0xff]
          %v694 = vld [vmem:[#allocation2 + $0x38] sm:$0xff]
          %v695 = vld [vmem:[#allocation2 + $0x40] sm:$0xff]
          %v696 = vld [vmem:[#allocation2 + $0x48] sm:$0xff]
          %v697 = vld [vmem:[#allocation2 + $0x50] sm:$0xff]
          %v698 = vld [vmem:[#allocation2 + $0x58] sm:$0xff]
          %v699 = vld [vmem:[#allocation2 + $0x60] sm:$0xff]
          %v700 = vld [vmem:[#allocation2 + $0x68] sm:$0xff]
          %v701 = vld [vmem:[#allocation2 + $0x70] sm:$0xff]
          %v702 = vld [vmem:[#allocation2 + $0x78] sm:$0xff]
          %v703 = vpack.c.bf16 %v688, %v687
          %v704 = vpack.c.bf16 %v690, %v689
          %v705 = vpack.c.bf16 %v692, %v691
          %v706 = vpack.c.bf16 %v694, %v693
          %v707 = vpack.c.bf16 %v696, %v695
          %v708 = vpack.c.bf16 %v698, %v697
          %v709 = vpack.c.bf16 %v700, %v699
          %v710 = vpack.c.bf16 %v702, %v701
          %v711 = vld [vmem:[%s381] sm:$0xf]
          %v712 = vld [vmem:[%s381 + $0x4] sm:$0xf]
          %v713 = vld [vmem:[%s381 + $0x8] sm:$0xf]
          %v714 = vld [vmem:[%s381 + $0xc] sm:$0xf]
          %v715 = vld [vmem:[%s381 + $0x10] sm:$0xf]
          %v716 = vld [vmem:[%s381 + $0x14] sm:$0xf]
          %v717 = vld [vmem:[%s381 + $0x18] sm:$0xf]
          %v718 = vld [vmem:[%s381 + $0x1c] sm:$0xf]
          %v719 = vld [vmem:[%s381 + $0x20] sm:$0xf]
          %v720 = vld [vmem:[%s381 + $0x24] sm:$0xf]
          %v721 = vld [vmem:[%s381 + $0x28] sm:$0xf]
          %v722 = vld [vmem:[%s381 + $0x2c] sm:$0xf]
          %v723 = vld [vmem:[%s381 + $0x30] sm:$0xf]
          %v724 = vld [vmem:[%s381 + $0x34] sm:$0xf]
          %v725 = vld [vmem:[%s381 + $0x38] sm:$0xf]
          %v726 = vld [vmem:[%s381 + $0x3c] sm:$0xf]
          %v743 = vunpack.c.l.b16 %v711
          %v744 = vunpack.c.l.b16 %v712
          %v745 = vunpack.c.l.b16 %v713
          %v746 = vunpack.c.l.b16 %v714
          %v747 = vunpack.c.l.b16 %v715
          %v748 = vunpack.c.l.b16 %v716
          %v749 = vunpack.c.l.b16 %v717
          %v750 = vunpack.c.l.b16 %v718
          %v751 = vunpack.c.l.b16 %v719
          %v752 = vunpack.c.l.b16 %v720
          %v753 = vunpack.c.l.b16 %v721
          %v754 = vunpack.c.l.b16 %v722
          %v755 = vunpack.c.l.b16 %v723
          %v756 = vunpack.c.l.b16 %v724
          %v757 = vunpack.c.l.b16 %v725
          %v758 = vunpack.c.l.b16 %v726
          %v759 = vpack.c.b16 %v744, %v743
          %v760 = vpack.c.b16 %v746, %v745
          %v761 = vpack.c.b16 %v748, %v747
          %v762 = vpack.c.b16 %v750, %v749
          %v763 = vpack.c.b16 %v752, %v751
          %v764 = vpack.c.b16 %v754, %v753
          %v765 = vpack.c.b16 %v756, %v755
          %v766 = vpack.c.b16 %v758, %v757
          %v775 = vld [vmem:[%s3] sm:$0xf]
          %v776 = vld [vmem:[%s3 + $0x4] sm:$0xf]
          %v777 = vld [vmem:[%s3 + $0x8] sm:$0xf]
          %v778 = vld [vmem:[%s3 + $0xc] sm:$0xf]
          %v779 = vld [vmem:[%s3 + $0x10] sm:$0xf]
          %v780 = vld [vmem:[%s3 + $0x14] sm:$0xf]
          %v781 = vld [vmem:[%s3 + $0x18] sm:$0xf]
          %v782 = vld [vmem:[%s3 + $0x1c] sm:$0xf]
          %v783 = vld [vmem:[%s3 + $0x20] sm:$0xf]
          %v784 = vld [vmem:[%s3 + $0x24] sm:$0xf]
          %v785 = vld [vmem:[%s3 + $0x28] sm:$0xf]
          %v786 = vld [vmem:[%s3 + $0x2c] sm:$0xf]
          %v787 = vld [vmem:[%s3 + $0x30] sm:$0xf]
          %v788 = vld [vmem:[%s3 + $0x34] sm:$0xf]
          %v789 = vld [vmem:[%s3 + $0x38] sm:$0xf]
          %v790 = vld [vmem:[%s3 + $0x3c] sm:$0xf]
          %v791 = vld [vmem:[%s3 + $0x40] sm:$0xf]
          %v792 = vld [vmem:[%s3 + $0x44] sm:$0xf]
          %v793 = vld [vmem:[%s3 + $0x48] sm:$0xf]
          %v794 = vld [vmem:[%s3 + $0x4c] sm:$0xf]
          %v795 = vld [vmem:[%s3 + $0x50] sm:$0xf]
          %v796 = vld [vmem:[%s3 + $0x54] sm:$0xf]
          %v797 = vld [vmem:[%s3 + $0x58] sm:$0xf]
          %v798 = vld [vmem:[%s3 + $0x5c] sm:$0xf]
          %v799 = vld [vmem:[%s3 + $0x60] sm:$0xf]
          %v800 = vld [vmem:[%s3 + $0x64] sm:$0xf]
          %v801 = vld [vmem:[%s3 + $0x68] sm:$0xf]
          %v802 = vld [vmem:[%s3 + $0x6c] sm:$0xf]
          %v803 = vld [vmem:[%s3 + $0x70] sm:$0xf]
          %v804 = vld [vmem:[%s3 + $0x74] sm:$0xf]
          %v805 = vld [vmem:[%s3 + $0x78] sm:$0xf]
          %v806 = vld [vmem:[%s3 + $0x7c] sm:$0xf]
          %v807 = vld [vmem:[%s4] sm:$0x1]
          %v809 = vlaneseq
          %v810 = vshrl.u32 %v809, 7
          %v811 = vsub.s32 0, %v810
          %v812 = vrot.slane %v807, %v811
          %v846 = vunpack.c.l.b16 %v775
          %v847 = vunpack.c.l.b16 %v776
          %v848 = vunpack.c.l.b16 %v777
          %v849 = vunpack.c.l.b16 %v778
          %v850 = vunpack.c.l.b16 %v779
          %v851 = vunpack.c.l.b16 %v780
          %v852 = vunpack.c.l.b16 %v781
          %v853 = vunpack.c.l.b16 %v782
          %v854 = vunpack.c.l.b16 %v783
          %v855 = vunpack.c.l.b16 %v784
          %v856 = vunpack.c.l.b16 %v785
          %v857 = vunpack.c.l.b16 %v786
          %v858 = vunpack.c.l.b16 %v787
          %v859 = vunpack.c.l.b16 %v788
          %v860 = vunpack.c.l.b16 %v789
          %v861 = vunpack.c.l.b16 %v790
          %v862 = vunpack.c.l.b16 %v791
          %v863 = vunpack.c.l.b16 %v792
          %v864 = vunpack.c.l.b16 %v793
          %v865 = vunpack.c.l.b16 %v794
          %v866 = vunpack.c.l.b16 %v795
          %v867 = vunpack.c.l.b16 %v796
          %v868 = vunpack.c.l.b16 %v797
          %v869 = vunpack.c.l.b16 %v798
          %v870 = vunpack.c.l.b16 %v799
          %v871 = vunpack.c.l.b16 %v800
          %v872 = vunpack.c.l.b16 %v801
          %v873 = vunpack.c.l.b16 %v802
          %v874 = vunpack.c.l.b16 %v803
          %v875 = vunpack.c.l.b16 %v804
          %v876 = vunpack.c.l.b16 %v805
          %v877 = vunpack.c.l.b16 %v806
          %v878 = vpack.c.b16 %v847, %v846
          %v879 = vpack.c.b16 %v849, %v848
          %v880 = vpack.c.b16 %v851, %v850
          %v881 = vpack.c.b16 %v853, %v852
          %v882 = vpack.c.b16 %v855, %v854
          %v883 = vpack.c.b16 %v857, %v856
          %v884 = vpack.c.b16 %v859, %v858
          %v885 = vpack.c.b16 %v861, %v860
          %v886 = vpack.c.b16 %v863, %v862
          %v887 = vpack.c.b16 %v865, %v864
          %v888 = vpack.c.b16 %v867, %v866
          %v889 = vpack.c.b16 %v869, %v868
          %v890 = vpack.c.b16 %v871, %v870
          %v891 = vpack.c.b16 %v873, %v872
          %v892 = vpack.c.b16 %v875, %v874
          %v893 = vpack.c.b16 %v877, %v876
          %910 = vmatprep.subr.bf16.mxu0 0
          %911 = vmatpush1.bf16.msra.mxu0 %v878
          %912 = vmatprep.subr.bf16.mxu0 0
          %913 = vmatpush1.bf16.msra.mxu0 %v879
          %914 = vmatprep.subr.bf16.mxu0 0
          %915 = vmatpush1.bf16.msra.mxu0 %v880
          %916 = vmatprep.subr.bf16.mxu0 0
          %917 = vmatpush1.bf16.msra.mxu0 %v881
          %918 = vmatprep.subr.bf16.mxu0 0
          %919 = vmatpush1.bf16.msra.mxu0 %v882
          %920 = vmatprep.subr.bf16.mxu0 0
          %921 = vmatpush1.bf16.msra.mxu0 %v883
          %922 = vmatprep.subr.bf16.mxu0 0
          %923 = vmatpush1.bf16.msra.mxu0 %v884
          %924 = vmatprep.subr.bf16.mxu0 0
          %925 = vmatpush1.bf16.msra.mxu0 %v885
          %926 = vmatprep.subr.bf16.mxu0 0
          %927 = vmatpush1.bf16.msra.mxu0 %v886
          %928 = vmatprep.subr.bf16.mxu0 0
          %929 = vmatpush1.bf16.msra.mxu0 %v887
          %930 = vmatprep.subr.bf16.mxu0 0
          %931 = vmatpush1.bf16.msra.mxu0 %v888
          %932 = vmatprep.subr.bf16.mxu0 0
          %933 = vmatpush1.bf16.msra.mxu0 %v889
          %934 = vmatprep.subr.bf16.mxu0 0
          %935 = vmatpush1.bf16.msra.mxu0 %v890
          %936 = vmatprep.subr.bf16.mxu0 0
          %937 = vmatpush1.bf16.msra.mxu0 %v891
          %938 = vmatprep.subr.bf16.mxu0 0
          %939 = vmatpush1.bf16.msra.mxu0 %v892
          %940 = vmatprep.subr.bf16.mxu0 0
          %941 = vmatpush1.bf16.msra.mxu0 %v893
          %942 = vmatprep.mubr.bf16.mxu0 %v703
          %943 = vmatmul.mubr.bf16.gmra.mrb[0].mxu0 %v759
          %v944 = vpop.f32.mrb[0].mxu0
          %v945 = vadd.f32 %v812, %v944
          %v946 = vpop.f32.mrb[0].mxu0
          %v947 = vpop.f32.mrb[0].mxu0
          %v948 = vadd.f32 %v812, %v947
          %v949 = vpop.f32.mrb[0].mxu0
          %950 = vmatprep.mubr.bf16.mxu0 %v704
          %951 = vmatmul.mubr.bf16.gmra.mrb[0].mxu0 %v760
          %v952 = vpop.f32.mrb[0].mxu0
          %v953 = vadd.f32 %v812, %v952
          %v954 = vpop.f32.mrb[0].mxu0
          %v955 = vpop.f32.mrb[0].mxu0
          %v956 = vadd.f32 %v812, %v955
          %v957 = vpop.f32.mrb[0].mxu0
          %958 = vmatprep.mubr.bf16.mxu0 %v705
          %959 = vmatmul.mubr.bf16.gmra.mrb[0].mxu0 %v761
          %v960 = vpop.f32.mrb[0].mxu0
          %v961 = vadd.f32 %v812, %v960
          %v962 = vpop.f32.mrb[0].mxu0
          %v963 = vpop.f32.mrb[0].mxu0
          %v964 = vadd.f32 %v812, %v963
          %v965 = vpop.f32.mrb[0].mxu0
          %966 = vmatprep.mubr.bf16.mxu0 %v706
          %967 = vmatmul.mubr.bf16.gmra.mrb[0].mxu0 %v762
          %v968 = vpop.f32.mrb[0].mxu0
          %v969 = vadd.f32 %v812, %v968
          %v970 = vpop.f32.mrb[0].mxu0
          %v971 = vpop.f32.mrb[0].mxu0
          %v972 = vadd.f32 %v812, %v971
          %v973 = vpop.f32.mrb[0].mxu0
          %974 = vmatprep.mubr.bf16.mxu0 %v707
          %975 = vmatmul.mubr.bf16.gmra.mrb[0].mxu0 %v763
          %v976 = vpop.f32.mrb[0].mxu0
          %v977 = vadd.f32 %v812, %v976
          %v978 = vpop.f32.mrb[0].mxu0
          %v979 = vpop.f32.mrb[0].mxu0
          %v980 = vadd.f32 %v812, %v979
          %v981 = vpop.f32.mrb[0].mxu0
          %982 = vmatprep.mubr.bf16.mxu0 %v708
          %983 = vmatmul.mubr.bf16.gmra.mrb[0].mxu0 %v764
          %v984 = vpop.f32.mrb[0].mxu0
          %v985 = vadd.f32 %v812, %v984
          %v986 = vpop.f32.mrb[0].mxu0
          %v987 = vpop.f32.mrb[0].mxu0
          %v988 = vadd.f32 %v812, %v987
          %v989 = vpop.f32.mrb[0].mxu0
          %990 = vmatprep.mubr.bf16.mxu0 %v709
          %991 = vmatmul.mubr.bf16.gmra.mrb[0].mxu0 %v765
          %v992 = vpop.f32.mrb[0].mxu0
          %v993 = vadd.f32 %v812, %v992
          %v994 = vpop.f32.mrb[0].mxu0
          %v995 = vpop.f32.mrb[0].mxu0
          %v996 = vadd.f32 %v812, %v995
          %v997 = vpop.f32.mrb[0].mxu0
          %998 = vmatprep.mubr.bf16.mxu0 %v710
          %999 = vmatmul.mubr.bf16.gmra.mrb[0].mxu0 %v766
          %v1000 = vpop.f32.mrb[0].mxu0
          %v1001 = vadd.f32 %v812, %v1000
          %v1002 = vpop.f32.mrb[0].mxu0
          %v1003 = vpop.f32.mrb[0].mxu0
          %v1004 = vadd.f32 %v812, %v1003
          %v1005 = vpop.f32.mrb[0].mxu0
          %1006 = vdwg.mxu0
          %1007 = vst [vmem:[%s387] sm:$0xff] %v945
          %1008 = vst [vmem:[%s387 + $0x8] sm:$0xff] %v948
          %1009 = vst [vmem:[%s387 + $0x10] sm:$0xff] %v953
          %1010 = vst [vmem:[%s387 + $0x18] sm:$0xff] %v956
          %1011 = vst [vmem:[%s387 + $0x20] sm:$0xff] %v961
          %1012 = vst [vmem:[%s387 + $0x28] sm:$0xff] %v964
          %1013 = vst [vmem:[%s387 + $0x30] sm:$0xff] %v969
          %1014 = vst [vmem:[%s387 + $0x38] sm:$0xff] %v972
          %1015 = vst [vmem:[%s387 + $0x40] sm:$0xff] %v977
          %1016 = vst [vmem:[%s387 + $0x48] sm:$0xff] %v980
          %1017 = vst [vmem:[%s387 + $0x50] sm:$0xff] %v985
          %1018 = vst [vmem:[%s387 + $0x58] sm:$0xff] %v988
          %1019 = vst [vmem:[%s387 + $0x60] sm:$0xff] %v993
          %1020 = vst [vmem:[%s387 + $0x68] sm:$0xff] %v996
          %1021 = vst [vmem:[%s387 + $0x70] sm:$0xff] %v1001
          %1022 = vst [vmem:[%s387 + $0x78] sm:$0xff] %v1004
        $region89: #{model_forward.4} parent=76 // pred_fallthru
          _
        %s1023 = smul.u32 16, %s20
        %p1024 = scmp.lt.s32.totalorder %s1023, 31
        %s1025 = scalar_select %p1024, %s1023, 31
        %s1026 = smul.addr %s1025, 8
        %s1027 = scalar_lea.vmem %s5, %s1026
        // Predicated region
        $region90: #{model_forward.4} parent=76 // pred_check
          %p1028 = pneg %p168
        $region91: #{model_forward.4} parent=76 // pred_check_branch
          %1030 = sbr.rel (%p1028) target = $region93
        $region92: #{model_forward.4} parent=76 // pred_region
          %s1031 = smul.u32 16, %s20
        $region93: #{model_forward.4} parent=76 // pred_fallthru
          _
      $region77: #{model_forward.4} parent=5 // pred_fallthru
        _
      %p1032 = scmp.le.s32.totalorder 2, %s11
      // Predicated region
      $region94: #{model_forward.4} parent=5 // pred_check
        %p1033 = pneg %p1032
      $region95: #{model_forward.4} parent=5 // pred_check_branch
        %1035 = sbr.rel (%p1033) target = $region97
      $region96: #{model_forward.4} parent=5 // pred_region
        %s1036 = ssub.s32 %s11, 2
        // Predicated region
        $region98: #{model_forward.4} parent=96 // pred_check
          %p1037 = pneg %p174
        $region99: #{model_forward.4} parent=96 // pred_check_branch
          %1039 = sbr.rel (%p1037) target = $region101
        $region100: #{model_forward.4} parent=96 // pred_region
          %s1040 = smul.u32 16, %s22
          %p1041 = scmp.lt.s32.totalorder %s1040, 31
          %s1042 = scalar_select %p1041, %s1040, 31
          %s1043 = smul.addr %s1042, 8
          %s1044 = scalar_lea.vmem %s5, %s1043
        $region101: #{model_forward.4} parent=96 // pred_fallthru
          _
      $region97: #{model_forward.4} parent=5 // pred_fallthru
        _
    $region6: #{model_forward.4} parent=1 // loop_footer
      %s15 = sadd.s32 1, %s11
    $region7: #{model_forward.4} parent=1 // loop_footer_branch
      %10 = sbr.rel target = $region3
    $region8: #{model_forward.4} parent=1 // loop_exit
      _

// kernel: model_forward.3
$region0: #{model_forward.3}
  #allocation0 [shape = 'u32[]', space=smem, size = 0x4, offset = 0x4, fixed_abs, tag = 'smem constant byte address 0x4 - core index']
  #allocation1 [shape = 'u32[144,128]{1,0:T(1,128)}', space=vmem, size = 0x12000, scoped, tag = 'internal scratch']
  #allocation2 [shape = 'f32[128,128]{1,0:T(8,128)}', space=vmem, size = 0x10000, scoped, tag = 'scratch operand']
  %s0 = inlined_call_operand.vmem [shape: bf16[256,256], index: 0, kind: input, shape index: {}]
  %s1 = inlined_call_operand.vmem [shape: bf16[256,128], index: 1, kind: input, shape index: {}, may-alias: {1,2}]
  %s2 = inlined_call_operand.vmem [shape: bf16[256,128], index: 2, kind: input, shape index: {}, may-alias: {1,2}]
  %s3 = inlined_call_operand.vmem [shape: bf16[256,128], index: 3, kind: input, shape index: {}]
  %s4 = inlined_call_operand.vmem [shape: f32[1,128], index: 4, kind: input, shape index: {}]
  %s5 = inlined_call_operand.vmem [shape: bf16[256,128], index: 5, kind: output, shape index: {}]
  %s6 = sld [smem:[#allocation0]]
  $region102: #{model_forward.3} parent=0
    _
  %s8 = ssub.s32 1, %s6
  %s9 = scalar_select 0, %s8, %s6
  $region1: #{model_forward.3} parent=0
    #allocation3 [shape = 'u8[65536]{0}', space=vmem, size = 0x10000, scoped, tag = 'input window, operand 0']
    loop: start=0, step=1, limit=6
    $region2: #{model_forward.3} parent=1 // loop_pre_header
      _
    $region3: #{model_forward.3} parent=1 // loop_header
      %s11 = sphi 0, %s15
      %p12 = scmp.ge.s32.totalorder %s11, 6
      %s18 = sphi 0, %s30
      %s19 = sphi 0, %s26
      %s20 = sphi 0, %s18
      %s21 = sphi 0, %s19
      %s22 = sphi 0, %s20
      %s23 = sphi 0, %s21
      %s35 = sphi 0, %s37
      %s38 = sphi 0, %s35
      %s39 = sphi 0, %s38
      %s55 = sphi 0, %s39
      %s61 = sphi 0, %s63
      %s64 = sphi 0, %s61
      %s65 = sphi 0, %s64
      %s81 = sphi 0, %s65
      %s87 = sphi 0, %s89
      %s90 = sphi 0, %s87
      %s91 = sphi 0, %s90
      %s107 = sphi 0, %s91
      %s111 = sphi 0, %s111
      %s113 = sphi 0, %s111
      %s114 = sphi 0, %s113
      %s128 = sphi 0, %s114
      %s132 = sphi 0, %s132
      %s134 = sphi 0, %s132
      %s135 = sphi 0, %s134
      %s149 = sphi 0, %s135
      %s155 = sphi 0, %s157
      %s158 = sphi 0, %s155
      %s159 = sphi 0, %s158
      %s175 = sphi 0, %s159
    $region4: #{model_forward.3} parent=1 // loop_header_branch
      %14 = sbr.rel (%p12) target = $region8
    $region5: #{model_forward.3} parent=1 // loop_body
      %s16 = ssub.s32 %s11, 1
      %s17 = ssub.s32 %s11, 2
      %s24 = sadd.s32 1, %s19
      %p25 = scmp.ge.s32.totalorder %s24, 2
      %s26 = scalar_select %p25, 0, %s24
      %s27 = sadd.s32 1, %s18
      %s28 = scalar_select %p25, %s27, %s18
      %p29 = scmp.ge.s32.totalorder %s28, 2
      %s30 = scalar_select %p29, 0, %s28
      %s31 = ssub.s32 %s18, %s30
      %s32 = ssub.s32 %s19, %s26
      %s33 = sor.u32 %s31, %s32
      %p34 = scmp.eq.s32.totalorder %s33, 0
      %s36 = sadd.s32 %s35, 1
      %s37 = scalar_select %p34, %s35, %s36
      %p40 = pneg %p34
      %p41 = scmp.eq.s32.totalorder %s11, 3
      %p42 = por %p40, %p41
      %p43 = scmp.ne.s32.totalorder %s35, %s38
      %p44 = scmp.eq.s32.totalorder %s11, 0
      %p45 = por %p43, %p44
      %p46 = scmp.ne.s32.totalorder %s35, %s38
      %p47 = scmp.eq.s32.totalorder %s16, 3
      %p48 = por %p46, %p47
      %p49 = scmp.ne.s32.totalorder %s38, %s39
      %p50 = scmp.eq.s32.totalorder %s16, 0
      %p51 = por %p49, %p50
      %p52 = scmp.ne.s32.totalorder %s38, %s39
      %p53 = scmp.eq.s32.totalorder %s17, 3
      %p54 = por %p52, %p53
      %p56 = scmp.ne.s32.totalorder %s39, %s55
      %p57 = scmp.eq.s32.totalorder %s17, 0
      %p58 = por %p56, %p57
      %s59 = ssub.s32 %s19, %s26
      %p60 = scmp.eq.s32.totalorder %s59, 0
      %s62 = sadd.s32 %s61, 1
      %s63 = scalar_select %p60, %s61, %s62
      %p66 = pneg %p60
      %p67 = scmp.eq.s32.totalorder %s11, 3
      %p68 = por %p66, %p67
      %p69 = scmp.ne.s32.totalorder %s61, %s64
      %p70 = scmp.eq.s32.totalorder %s11, 0
      %p71 = por %p69, %p70
      %p72 = scmp.ne.s32.totalorder %s61, %s64
      %p73 = scmp.eq.s32.totalorder %s16, 3
      %p74 = por %p72, %p73
      %p75 = scmp.ne.s32.totalorder %s64, %s65
      %p76 = scmp.eq.s32.totalorder %s16, 0
      %p77 = por %p75, %p76
      %p78 = scmp.ne.s32.totalorder %s64, %s65
      %p79 = scmp.eq.s32.totalorder %s17, 3
      %p80 = por %p78, %p79
      %p82 = scmp.ne.s32.totalorder %s65, %s81
      %p83 = scmp.eq.s32.totalorder %s17, 0
      %p84 = por %p82, %p83
      %s85 = ssub.s32 %s18, %s30
      %p86 = scmp.eq.s32.totalorder %s85, 0
      %s88 = sadd.s32 %s87, 1
      %s89 = scalar_select %p86, %s87, %s88
      %p92 = pneg %p86
      %p93 = scmp.eq.s32.totalorder %s11, 3
      %p94 = por %p92, %p93
      %p95 = scmp.ne.s32.totalorder %s87, %s90
      %p96 = scmp.eq.s32.totalorder %s11, 0
      %p97 = por %p95, %p96
      %p98 = scmp.ne.s32.totalorder %s87, %s90
      %p99 = scmp.eq.s32.totalorder %s16, 3
      %p100 = por %p98, %p99
      %p101 = scmp.ne.s32.totalorder %s90, %s91
      %p102 = scmp.eq.s32.totalorder %s16, 0
      %p103 = por %p101, %p102
      %p104 = scmp.ne.s32.totalorder %s90, %s91
      %p105 = scmp.eq.s32.totalorder %s17, 3
      %p106 = por %p104, %p105
      %p108 = scmp.ne.s32.totalorder %s91, %s107
      %p109 = scmp.eq.s32.totalorder %s17, 0
      %p110 = por %p108, %p109
      %s112 = sadd.s32 %s111, 1
      %p115 = scmp.eq.s32.totalorder %s11, 3
      %p116 = scmp.ne.s32.totalorder %s111, %s113
      %p117 = scmp.eq.s32.totalorder %s11, 0
      %p118 = por %p116, %p117
      %p119 = scmp.ne.s32.totalorder %s111, %s113
      %p120 = scmp.eq.s32.totalorder %s16, 3
      %p121 = por %p119, %p120
      %p122 = scmp.ne.s32.totalorder %s113, %s114
      %p123 = scmp.eq.s32.totalorder %s16, 0
      %p124 = por %p122, %p123
      %p125 = scmp.ne.s32.totalorder %s113, %s114
      %p126 = scmp.eq.s32.totalorder %s17, 3
      %p127 = por %p125, %p126
      %p129 = scmp.ne.s32.totalorder %s114, %s128
      %p130 = scmp.eq.s32.totalorder %s17, 0
      %p131 = por %p129, %p130
      %s133 = sadd.s32 %s132, 1
      %p136 = scmp.eq.s32.totalorder %s11, 3
      %p137 = scmp.ne.s32.totalorder %s132, %s134
      %p138 = scmp.eq.s32.totalorder %s11, 0
      %p139 = por %p137, %p138
      %p140 = scmp.ne.s32.totalorder %s132, %s134
      %p141 = scmp.eq.s32.totalorder %s16, 3
      %p142 = por %p140, %p141
      %p143 = scmp.ne.s32.totalorder %s134, %s135
      %p144 = scmp.eq.s32.totalorder %s16, 0
      %p145 = por %p143, %p144
      %p146 = scmp.ne.s32.totalorder %s134, %s135
      %p147 = scmp.eq.s32.totalorder %s17, 3
      %p148 = por %p146, %p147
      %p150 = scmp.ne.s32.totalorder %s135, %s149
      %p151 = scmp.eq.s32.totalorder %s17, 0
      %p152 = por %p150, %p151
      %s153 = ssub.s32 %s18, %s30
      %p154 = scmp.eq.s32.totalorder %s153, 0
      %s156 = sadd.s32 %s155, 1
      %s157 = scalar_select %p154, %s155, %s156
      %p160 = pneg %p154
      %p161 = scmp.eq.s32.totalorder %s11, 3
      %p162 = por %p160, %p161
      %p163 = scmp.ne.s32.totalorder %s155, %s158
      %p164 = scmp.eq.s32.totalorder %s11, 0
      %p165 = por %p163, %p164
      %p166 = scmp.ne.s32.totalorder %s155, %s158
      %p167 = scmp.eq.s32.totalorder %s16, 3
      %p168 = por %p166, %p167
      %p169 = scmp.ne.s32.totalorder %s158, %s159
      %p170 = scmp.eq.s32.totalorder %s16, 0
      %p171 = por %p169, %p170
      %p172 = scmp.ne.s32.totalorder %s158, %s159
      %p173 = scmp.eq.s32.totalorder %s17, 3
      %p174 = por %p172, %p173
      %p176 = scmp.ne.s32.totalorder %s159, %s175
      %p177 = scmp.eq.s32.totalorder %s17, 0
      %p178 = por %p176, %p177
      %p179 = scmp.le.s32.totalorder 1, %s11
      %p180 = scmp.lt.s32.totalorder %s11, 5
      %p181 = pnand %p179, %p180
      %p182 = pneg %p181
      // Predicated region
      $region9: #{model_forward.3} parent=5 // pred_check
        _
      $region10: #{model_forward.3} parent=5 // pred_check_branch
        %184 = sbr.rel (%p181) target = $region12
      $region11: #{model_forward.3} parent=5 // pred_region
        %s185 = ssub.s32 %s11, 1
        // Predicated region
        $region13: #{model_forward.3} parent=11 // pred_check
          %p186 = pneg %p124
        $region14: #{model_forward.3} parent=11 // pred_check_branch
          %188 = sbr.rel (%p186) target = $region16
        $region15: #{model_forward.3} parent=11 // pred_region
          _
        $region16: #{model_forward.3} parent=11 // pred_fallthru
          _
        // Predicated region
        $region17: #{model_forward.3} parent=11 // pred_check
          %p189 = pneg %p145
        $region18: #{model_forward.3} parent=11 // pred_check_branch
          %191 = sbr.rel (%p189) target = $region20
        $region19: #{model_forward.3} parent=11 // pred_region
          _
        $region20: #{model_forward.3} parent=11 // pred_fallthru
          _
      $region12: #{model_forward.3} parent=5 // pred_fallthru
        _
      %p192 = scmp.lt.s32.totalorder %s11, 4
      // Predicated region
      $region21: #{model_forward.3} parent=5 // pred_check
        %p193 = pneg %p192
      $region22: #{model_forward.3} parent=5 // pred_check_branch
        %195 = sbr.rel (%p193) target = $region24
      $region23: #{model_forward.3} parent=5 // pred_region
        // Predicated region
        $region25: #{model_forward.3} parent=23 // pred_check
          %p196 = pneg %p45
        $region26: #{model_forward.3} parent=23 // pred_check_branch
          %198 = sbr.rel (%p196) target = $region28
        $region27: #{model_forward.3} parent=23 // pred_region
          %s199 = sand.u32 %s35, 1
          %s200 = sand.u32 %s35, 1
          %s201 = smul.addr %s200, 64
          %s202 = scalar_lea.vmem [#allocation3], %s201
          %s203 = smul.u32 16, %s18
          %s204 = smul.addr %s203, 2
          %s205 = sadd.s32 %s19, %s204
          %s206 = smul.addr %s205, 4
          %s207 = scalar_lea.vmem %s0, %s206
          // Predicated region
          $region29: #{model_forward.3} parent=27 // pred_check
            _
          $region30: #{model_forward.3} parent=27 // pred_check_branch
            %209 = sbr.rel (0) target = $region32
          $region31: #{model_forward.3} parent=27 // pred_region
            // Predicated region
            $region33: #{model_forward.3} parent=31 // pred_check
              _
            $region34: #{model_forward.3} parent=31 // pred_check_branch
              %211 = sbr.rel target = $region36
            $region35: #{model_forward.3} parent=31 // pred_region
              // Predicated region
              $region48: #{model_forward.3} parent=35 // pred_check
                _
              $region49: #{model_forward.3} parent=35 // pred_check_branch
                %256 = sbr.rel (0) target = $region51
              $region50: #{model_forward.3} parent=35 // pred_region
                loop: start=0, step=1, limit=1
                $region52: #{model_forward.3} parent=50 // loop_pre_header
                  _
                $region53: #{model_forward.3} parent=50 // loop_header
                  %s258 = sphi 0, %s262
                  %p259 = scmp.ge.s32.totalorder %s258, 1
                  %s263 = sphi %s207, %s207
                  %s264 = sphi %s202, %s202
                $region54: #{model_forward.3} parent=50 // loop_header_branch
                  %261 = sbr.rel (%p259) target = $region58
                $region55: #{model_forward.3} parent=50 // loop_body
                  _
                $region56: #{model_forward.3} parent=50 // loop_footer
                  %s262 = sadd.s32 1, %s258
                $region57: #{model_forward.3} parent=50 // loop_footer_branch
                  %257 = sbr.rel target = $region53
                $region58: #{model_forward.3} parent=50 // loop_exit
                  _
                loop: start=0, step=1, limit=1
                $region59: #{model_forward.3} parent=50 // loop_pre_header
                  _
                $region60: #{model_forward.3} parent=50 // loop_header
                  %s267 = sphi 0, %s271
                  %p268 = scmp.ge.s32.totalorder %s267, 1
                  %s272 = sphi %s207, %s207
                  %s273 = sphi %s202, %s202
                $region61: #{model_forward.3} parent=50 // loop_header_branch
                  %270 = sbr.rel (%p268) target = $region65
                $region62: #{model_forward.3} parent=50 // loop_body
                  %v274 = vld [vmem:[%s272] sm:$0xf]
                  %275 = vst [vmem:[%s273] sm:$0xf] %v274
                  %v276 = vld [vmem:[%s272 + $0x8] sm:$0xf]
                  %277 = vst [vmem:[%s273 + $0x4] sm:$0xf] %v276
                  %v278 = vld [vmem:[%s272 + $0x10] sm:$0xf]
                  %279 = vst [vmem:[%s273 + $0x8] sm:$0xf] %v278
                  %v280 = vld [vmem:[%s272 + $0x18] sm:$0xf]
                  %281 = vst [vmem:[%s273 + $0xc] sm:$0xf] %v280
                  %v282 = vld [vmem:[%s272 + $0x20] sm:$0xf]
                  %283 = vst [vmem:[%s273 + $0x10] sm:$0xf] %v282
                  %v284 = vld [vmem:[%s272 + $0x28] sm:$0xf]
                  %285 = vst [vmem:[%s273 + $0x14] sm:$0xf] %v284
                  %v286 = vld [vmem:[%s272 + $0x30] sm:$0xf]
                  %287 = vst [vmem:[%s273 + $0x18] sm:$0xf] %v286
                  %v288 = vld [vmem:[%s272 + $0x38] sm:$0xf]
                  %289 = vst [vmem:[%s273 + $0x1c] sm:$0xf] %v288
                  %v290 = vld [vmem:[%s272 + $0x40] sm:$0xf]
                  %291 = vst [vmem:[%s273 + $0x20] sm:$0xf] %v290
                  %v292 = vld [vmem:[%s272 + $0x48] sm:$0xf]
                  %293 = vst [vmem:[%s273 + $0x24] sm:$0xf] %v292
                  %v294 = vld [vmem:[%s272 + $0x50] sm:$0xf]
                  %295 = vst [vmem:[%s273 + $0x28] sm:$0xf] %v294
                  %v296 = vld [vmem:[%s272 + $0x58] sm:$0xf]
                  %297 = vst [vmem:[%s273 + $0x2c] sm:$0xf] %v296
                  %v298 = vld [vmem:[%s272 + $0x60] sm:$0xf]
                  %299 = vst [vmem:[%s273 + $0x30] sm:$0xf] %v298
                  %v300 = vld [vmem:[%s272 + $0x68] sm:$0xf]
                  %301 = vst [vmem:[%s273 + $0x34] sm:$0xf] %v300
                  %v302 = vld [vmem:[%s272 + $0x70] sm:$0xf]
                  %303 = vst [vmem:[%s273 + $0x38] sm:$0xf] %v302
                  %v304 = vld [vmem:[%s272 + $0x78] sm:$0xf]
                  %305 = vst [vmem:[%s273 + $0x3c] sm:$0xf] %v304
                $region63: #{model_forward.3} parent=50 // loop_footer
                  %s271 = sadd.s32 1, %s267
                $region64: #{model_forward.3} parent=50 // loop_footer_branch
                  %266 = sbr.rel target = $region60
                $region65: #{model_forward.3} parent=50 // loop_exit
                  _
              $region51: #{model_forward.3} parent=35 // pred_fallthru
                _
            $region36: #{model_forward.3} parent=31 // pred_fallthru
              _
            // Predicated region
            $region37: #{model_forward.3} parent=31 // pred_check
              _
            $region38: #{model_forward.3} parent=31 // pred_check_branch
              %213 = sbr.rel (0) target = $region40
            $region39: #{model_forward.3} parent=31 // pred_region
              loop: start=0, step=1, limit=1
              $region41: #{model_forward.3} parent=39 // loop_pre_header
                _
              $region42: #{model_forward.3} parent=39 // loop_header
                %s216 = sphi 0, %s220
                %p217 = scmp.ge.s32.totalorder %s216, 1
                %s221 = sphi %s207, %s207
                %s222 = sphi %s202, %s202
              $region43: #{model_forward.3} parent=39 // loop_header_branch
                %219 = sbr.rel (%p217) target = $region47
              $region44: #{model_forward.3} parent=39 // loop_body
                %v223 = vld [vmem:[%s221] sm:$0xf]
                %224 = vst [vmem:[%s222] sm:$0xf] %v223
                %v225 = vld [vmem:[%s221 + $0x8] sm:$0xf]
                %226 = vst [vmem:[%s222 + $0x4] sm:$0xf] %v225
                %v227 = vld [vmem:[%s221 + $0x10] sm:$0xf]
                %228 = vst [vmem:[%s222 + $0x8] sm:$0xf] %v227
                %v229 = vld [vmem:[%s221 + $0x18] sm:$0xf]
                %230 = vst [vmem:[%s222 + $0xc] sm:$0xf] %v229
                %v231 = vld [vmem:[%s221 + $0x20] sm:$0xf]
                %232 = vst [vmem:[%s222 + $0x10] sm:$0xf] %v231
                %v233 = vld [vmem:[%s221 + $0x28] sm:$0xf]
                %234 = vst [vmem:[%s222 + $0x14] sm:$0xf] %v233
                %v235 = vld [vmem:[%s221 + $0x30] sm:$0xf]
                %236 = vst [vmem:[%s222 + $0x18] sm:$0xf] %v235
                %v237 = vld [vmem:[%s221 + $0x38] sm:$0xf]
                %238 = vst [vmem:[%s222 + $0x1c] sm:$0xf] %v237
                %v239 = vld [vmem:[%s221 + $0x40] sm:$0xf]
                %240 = vst [vmem:[%s222 + $0x20] sm:$0xf] %v239
                %v241 = vld [vmem:[%s221 + $0x48] sm:$0xf]
                %242 = vst [vmem:[%s222 + $0x24] sm:$0xf] %v241
                %v243 = vld [vmem:[%s221 + $0x50] sm:$0xf]
                %244 = vst [vmem:[%s222 + $0x28] sm:$0xf] %v243
                %v245 = vld [vmem:[%s221 + $0x58] sm:$0xf]
                %246 = vst [vmem:[%s222 + $0x2c] sm:$0xf] %v245
                %v247 = vld [vmem:[%s221 + $0x60] sm:$0xf]
                %248 = vst [vmem:[%s222 + $0x30] sm:$0xf] %v247
                %v249 = vld [vmem:[%s221 + $0x68] sm:$0xf]
                %250 = vst [vmem:[%s222 + $0x34] sm:$0xf] %v249
                %v251 = vld [vmem:[%s221 + $0x70] sm:$0xf]
                %252 = vst [vmem:[%s222 + $0x38] sm:$0xf] %v251
                %v253 = vld [vmem:[%s221 + $0x78] sm:$0xf]
                %254 = vst [vmem:[%s222 + $0x3c] sm:$0xf] %v253
              $region45: #{model_forward.3} parent=39 // loop_footer
                %s220 = sadd.s32 1, %s216
              $region46: #{model_forward.3} parent=39 // loop_footer_branch
                %215 = sbr.rel target = $region42
              $region47: #{model_forward.3} parent=39 // loop_exit
                _
            $region40: #{model_forward.3} parent=31 // pred_fallthru
              _
          $region32: #{model_forward.3} parent=27 // pred_fallthru
            _
          %306 = vnop
        $region28: #{model_forward.3} parent=23 // pred_fallthru
          _
        // Predicated region
        $region66: #{model_forward.3} parent=23 // pred_check
          %p307 = pneg %p71
        $region67: #{model_forward.3} parent=23 // pred_check_branch
          %309 = sbr.rel (%p307) target = $region69
        $region68: #{model_forward.3} parent=23 // pred_region
          %s310 = smul.u32 16, %s19
          %p311 = scmp.lt.s32.totalorder %s310, 31
          %s312 = scalar_select %p311, %s310, 31
          %s313 = smul.addr %s312, 4
          %s314 = scalar_lea.vmem %s1, %s313
          %s315 = smul.u32 16, %s19
        $region69: #{model_forward.3} parent=23 // pred_fallthru
          _
        // Predicated region
        $region70: #{model_forward.3} parent=23 // pred_check
          %p316 = pneg %p97
        $region71: #{model_forward.3} parent=23 // pred_check_branch
          %318 = sbr.rel (%p316) target = $region73
        $region72: #{model_forward.3} parent=23 // pred_region
          %s319 = smul.u32 16, %s18
          %p320 = scmp.lt.s32.totalorder %s319, 31
          %s321 = scalar_select %p320, %s319, 31
          %s322 = smul.addr %s321, 4
          %s323 = scalar_lea.vmem %s2, %s322
          %s324 = smul.u32 16, %s18
        $region73: #{model_forward.3} parent=23 // pred_fallthru
          _
      $region24: #{model_forward.3} parent=5 // pred_fallthru
        _
      %p325 = scmp.le.s32.totalorder 1, %s11
      %p326 = scmp.lt.s32.totalorder %s11, 5
      %p327 = pnand %p325, %p326
      %p328 = pneg %p327
      // Predicated region
      $region74: #{model_forward.3} parent=5 // pred_check
        _
      $region75: #{model_forward.3} parent=5 // pred_check_branch
        %330 = sbr.rel (%p327) target = $region77
      $region76: #{model_forward.3} parent=5 // pred_region
        %s331 = ssub.s32 %s11, 1
        %s332 = sand.u32 %s38, 1
        %s333 = sand.u32 %s38, 1
        %s334 = smul.addr %s333, 64
        %s335 = scalar_lea.vmem [#allocation3], %s334
        // Predicated region
        $region78: #{model_forward.3} parent=76 // pred_check
          %p336 = pneg %p51
        $region79: #{model_forward.3} parent=76 // pred_check_branch
          %338 = sbr.rel (%p336) target = $region81
        $region80: #{model_forward.3} parent=76 // pred_region
          _
        $region81: #{model_forward.3} parent=76 // pred_fallthru
          _
        %s339 = sand.u32 %s38, 1
        %s340 = sand.u32 %s38, 1
        %s341 = smul.addr %s340, 64
        %s342 = scalar_lea.vmem [#allocation3], %s341
        %p343 = pneg %p51
        %p344 = pneg %p48
        %s345 = smul.u32 16, %s21
        %p346 = scmp.lt.s32.totalorder %s345, 31
        %s347 = scalar_select %p346, %s345, 31
        %s348 = smul.addr %s347, 4
        %s349 = scalar_lea.vmem %s1, %s348
        %p350 = pneg %p77
        %p351 = pneg %p74
        %s352 = smul.u32 16, %s20
        %p353 = scmp.lt.s32.totalorder %s352, 31
        %s354 = scalar_select %p353, %s352, 31
        %s355 = smul.addr %s354, 4
        %s356 = scalar_lea.vmem %s2, %s355
        %p357 = pneg %p103
        %p358 = pneg %p100
        %p359 = pneg %p124
        %p360 = pneg %p121
        %p361 = pneg %p145
        %p362 = pneg %p142
        %p363 = pneg %p171
        %p364 = pneg %p168
        %s365 = smul.u32 16, %s20
        %p366 = scmp.lt.s32.totalorder %s365, 31
        %s367 = scalar_select %p366, %s365, 31
        %s368 = smul.addr %s367, 4
        %s369 = scalar_lea.vmem %s5, %s368
        %s370 = smul.u32 16, %s20
        %s371 = smul.u32 16, %s21
        %p372 = scmp.lt.s32.totalorder %s371, 31
        %s373 = scalar_select %p372, %s371, 31
        %s374 = smul.addr %s373, 4
        %s375 = scalar_lea.vmem %s1, %s374
        %s376 = smul.u32 16, %s21
        %s377 = smul.u32 16, %s20
        %p378 = scmp.lt.s32.totalorder %s377, 31
        %s379 = scalar_select %p378, %s377, 31
        %s380 = smul.addr %s379, 4
        %s381 = scalar_lea.vmem %s2, %s380
        %s382 = smul.u32 16, %s20
        %s383 = smul.u32 16, %s20
        %p384 = scmp.lt.s32.totalorder %s383, 31
        %s385 = scalar_select %p384, %s383, 31
        %s386 = smul.addr %s385, 4
        %s387 = scalar_lea.vmem %s5, %s386
        %s388 = smul.u32 16, %s20
        %p390 = scmp.eq.s32.totalorder %s21, 0
        // Predicated region
        $region82: #{model_forward.3} parent=76 // pred_check
          %p391 = pneg %p390
        $region83: #{model_forward.3} parent=76 // pred_check_branch
          %393 = sbr.rel (%p391) target = $region85
        $region84: #{model_forward.3} parent=76 // pred_region
          %394 = vst [vmem:[#allocation2] sm:$0xff] 0.0
          %395 = vst [vmem:[#allocation2 + $0x8] sm:$0xff] 0.0
          %396 = vst [vmem:[#allocation2 + $0x10] sm:$0xff] 0.0
          %397 = vst [vmem:[#allocation2 + $0x18] sm:$0xff] 0.0
          %398 = vst [vmem:[#allocation2 + $0x20] sm:$0xff] 0.0
          %399 = vst [vmem:[#allocation2 + $0x28] sm:$0xff] 0.0
          %400 = vst [vmem:[#allocation2 + $0x30] sm:$0xff] 0.0
          %401 = vst [vmem:[#allocation2 + $0x38] sm:$0xff] 0.0
          %402 = vst [vmem:[#allocation2 + $0x40] sm:$0xff] 0.0
          %403 = vst [vmem:[#allocation2 + $0x48] sm:$0xff] 0.0
          %404 = vst [vmem:[#allocation2 + $0x50] sm:$0xff] 0.0
          %405 = vst [vmem:[#allocation2 + $0x58] sm:$0xff] 0.0
          %406 = vst [vmem:[#allocation2 + $0x60] sm:$0xff] 0.0
          %407 = vst [vmem:[#allocation2 + $0x68] sm:$0xff] 0.0
          %408 = vst [vmem:[#allocation2 + $0x70] sm:$0xff] 0.0
          %409 = vst [vmem:[#allocation2 + $0x78] sm:$0xff] 0.0
        $region85: #{model_forward.3} parent=76 // pred_fallthru
          _
        %v410 = vld [vmem:[#allocation2] sm:$0xff]
        %v411 = vld [vmem:[#allocation2 + $0x8] sm:$0xff]
        %v412 = vld [vmem:[#allocation2 + $0x10] sm:$0xff]
        %v413 = vld [vmem:[#allocation2 + $0x18] sm:$0xff]
        %v414 = vld [vmem:[#allocation2 + $0x20] sm:$0xff]
        %v415 = vld [vmem:[#allocation2 + $0x28] sm:$0xff]
        %v416 = vld [vmem:[#allocation2 + $0x30] sm:$0xff]
        %v417 = vld [vmem:[#allocation2 + $0x38] sm:$0xff]
        %v418 = vld [vmem:[#allocation2 + $0x40] sm:$0xff]
        %v419 = vld [vmem:[#allocation2 + $0x48] sm:$0xff]
        %v420 = vld [vmem:[#allocation2 + $0x50] sm:$0xff]
        %v421 = vld [vmem:[#allocation2 + $0x58] sm:$0xff]
        %v422 = vld [vmem:[#allocation2 + $0x60] sm:$0xff]
        %v423 = vld [vmem:[#allocation2 + $0x68] sm:$0xff]
        %v424 = vld [vmem:[#allocation2 + $0x70] sm:$0xff]
        %v425 = vld [vmem:[#allocation2 + $0x78] sm:$0xff]
        %v426 = vld [vmem:[%s335] sm:$0xf]
        %v427 = vld [vmem:[%s335 + $0x4] sm:$0xf]
        %v428 = vld [vmem:[%s335 + $0x8] sm:$0xf]
        %v429 = vld [vmem:[%s335 + $0xc] sm:$0xf]
        %v430 = vld [vmem:[%s335 + $0x10] sm:$0xf]
        %v431 = vld [vmem:[%s335 + $0x14] sm:$0xf]
        %v432 = vld [vmem:[%s335 + $0x18] sm:$0xf]
        %v433 = vld [vmem:[%s335 + $0x1c] sm:$0xf]
        %v434 = vld [vmem:[%s335 + $0x20] sm:$0xf]
        %v435 = vld [vmem:[%s335 + $0x24] sm:$0xf]
        %v436 = vld [vmem:[%s335 + $0x28] sm:$0xf]
        %v437 = vld [vmem:[%s335 + $0x2c] sm:$0xf]
        %v438 = vld [vmem:[%s335 + $0x30] sm:$0xf]
        %v439 = vld [vmem:[%s335 + $0x34] sm:$0xf]
        %v440 = vld [vmem:[%s335 + $0x38] sm:$0xf]
        %v441 = vld [vmem:[%s335 + $0x3c] sm:$0xf]
        %v442 = vld [vmem:[%s375] sm:$0xf]
        %v443 = vld [vmem:[%s375 + $0x4] sm:$0xf]
        %v444 = vld [vmem:[%s375 + $0x8] sm:$0xf]
        %v445 = vld [vmem:[%s375 + $0xc] sm:$0xf]
        %v446 = vld [vmem:[%s375 + $0x10] sm:$0xf]
        %v447 = vld [vmem:[%s375 + $0x14] sm:$0xf]
        %v448 = vld [vmem:[%s375 + $0x18] sm:$0xf]
        %v449 = vld [vmem:[%s375 + $0x1c] sm:$0xf]
        %v450 = vld [vmem:[%s375 + $0x20] sm:$0xf]
        %v451 = vld [vmem:[%s375 + $0x24] sm:$0xf]
        %v452 = vld [vmem:[%s375 + $0x28] sm:$0xf]
        %v453 = vld [vmem:[%s375 + $0x2c] sm:$0xf]
        %v454 = vld [vmem:[%s375 + $0x30] sm:$0xf]
        %v455 = vld [vmem:[%s375 + $0x34] sm:$0xf]
        %v456 = vld [vmem:[%s375 + $0x38] sm:$0xf]
        %v457 = vld [vmem:[%s375 + $0x3c] sm:$0xf]
        %v474 = vunpack.c.l.b16 %v426
        %v475 = vunpack.c.l.b16 %v427
        %v476 = vunpack.c.l.b16 %v428
        %v477 = vunpack.c.l.b16 %v429
        %v478 = vunpack.c.l.b16 %v430
        %v479 = vunpack.c.l.b16 %v431
        %v480 = vunpack.c.l.b16 %v432
        %v481 = vunpack.c.l.b16 %v433
        %v482 = vunpack.c.l.b16 %v434
        %v483 = vunpack.c.l.b16 %v435
        %v484 = vunpack.c.l.b16 %v436
        %v485 = vunpack.c.l.b16 %v437
        %v486 = vunpack.c.l.b16 %v438
        %v487 = vunpack.c.l.b16 %v439
        %v488 = vunpack.c.l.b16 %v440
        %v489 = vunpack.c.l.b16 %v441
        %v490 = vpack.c.b16 %v475, %v474
        %v491 = vpack.c.b16 %v477, %v476
        %v492 = vpack.c.b16 %v479, %v478
        %v493 = vpack.c.b16 %v481, %v480
        %v494 = vpack.c.b16 %v483, %v482
        %v495 = vpack.c.b16 %v485, %v484
        %v496 = vpack.c.b16 %v487, %v486
        %v497 = vpack.c.b16 %v489, %v488
        %v522 = vunpack.c.l.b16 %v442
        %v523 = vunpack.c.l.b16 %v443
        %v524 = vunpack.c.l.b16 %v444
        %v525 = vunpack.c.l.b16 %v445
        %v526 = vunpack.c.l.b16 %v446
        %v527 = vunpack.c.l.b16 %v447
        %v528 = vunpack.c.l.b16 %v448
        %v529 = vunpack.c.l.b16 %v449
        %v530 = vunpack.c.l.b16 %v450
        %v531 = vunpack.c.l.b16 %v451
        %v532 = vunpack.c.l.b16 %v452
        %v533 = vunpack.c.l.b16 %v453
        %v534 = vunpack.c.l.b16 %v454
        %v535 = vunpack.c.l.b16 %v455
        %v536 = vunpack.c.l.b16 %v456
        %v537 = vunpack.c.l.b16 %v457
        %v538 = vpack.c.b16 %v523, %v522
        %v539 = vpack.c.b16 %v525, %v524
        %v540 = vpack.c.b16 %v527, %v526
        %v541 = vpack.c.b16 %v529, %v528
        %v542 = vpack.c.b16 %v531, %v530
        %v543 = vpack.c.b16 %v533, %v532
        %v544 = vpack.c.b16 %v535, %v534
        %v545 = vpack.c.b16 %v537, %v536
        %554 = vmatprep.subr.bf16.mxu0 0
        %555 = vmatpush1.bf16.msra.mxu0 %v538
        %556 = vmatprep.subr.bf16.mxu0 0
        %557 = vmatpush1.bf16.msra.mxu0 %v539
        %558 = vmatprep.subr.bf16.mxu0 0
        %559 = vmatpush1.bf16.msra.mxu0 %v540
        %560 = vmatprep.subr.bf16.mxu0 0
        %561 = vmatpush1.bf16.msra.mxu0 %v541
        %562 = vmatprep.subr.bf16.mxu0 0
        %563 = vmatpush1.bf16.msra.mxu0 %v542
        %564 = vmatprep.subr.bf16.mxu0 0
        %565 = vmatpush1.bf16.msra.mxu0 %v543
        %566 = vmatprep.subr.bf16.mxu0 0
        %567 = vmatpush1.bf16.msra.mxu0 %v544
        %568 = vmatprep.subr.bf16.mxu0 0
        %569 = vmatpush1.bf16.msra.mxu0 %v545
        %570 = vmatprep.subr.bf16.mxu0 0
        %571 = vmatpush1.bf16.msra.mxu0 0
        %572 = vmatprep.subr.bf16.mxu0 0
        %573 = vmatpush1.bf16.msra.mxu0 0
        %574 = vmatprep.subr.bf16.mxu0 0
        %575 = vmatpush1.bf16.msra.mxu0 0
        %576 = vmatprep.subr.bf16.mxu0 0
        %577 = vmatpush1.bf16.msra.mxu0 0
        %578 = vmatprep.subr.bf16.mxu0 0
        %579 = vmatpush1.bf16.msra.mxu0 0
        %580 = vmatprep.subr.bf16.mxu0 0
        %581 = vmatpush1.bf16.msra.mxu0 0
        %582 = vmatprep.subr.bf16.mxu0 0
        %583 = vmatpush1.bf16.msra.mxu0 0
        %584 = vmatprep.subr.bf16.mxu0 0
        %585 = vmatpush1.bf16.msra.mxu0 0
        %586 = vmatprep.mubr.bf16.mxu0 0
        %587 = vmatmul.mubr.bf16.gmra.mrb[0].mxu0 %v490
        %v588 = vpop.f32.mrb[0].mxu0
        %v589 = vadd.f32 0.0, %v588
        %v590 = vpop.f32.mrb[0].mxu0
        %v591 = vpop.f32.mrb[0].mxu0
        %v592 = vadd.f32 0.0, %v591
        %v593 = vpop.f32.mrb[0].mxu0
        %594 = vmatprep.mubr.bf16.mxu0 0
        %595 = vmatmul.mubr.bf16.gmra.mrb[0].mxu0 %v491
        %v596 = vpop.f32.mrb[0].mxu0
        %v597 = vadd.f32 0.0, %v596
        %v598 = vpop.f32.mrb[0].mxu0
        %v599 = vpop.f32.mrb[0].mxu0
        %v600 = vadd.f32 0.0, %v599
        %v601 = vpop.f32.mrb[0].mxu0
        %602 = vmatprep.mubr.bf16.mxu0 0
        %603 = vmatmul.mubr.bf16.gmra.mrb[0].mxu0 %v492
        %v604 = vpop.f32.mrb[0].mxu0
        %v605 = vadd.f32 0.0, %v604
        %v606 = vpop.f32.mrb[0].mxu0
        %v607 = vpop.f32.mrb[0].mxu0
        %v608 = vadd.f32 0.0, %v607
        %v609 = vpop.f32.mrb[0].mxu0
        %610 = vmatprep.mubr.bf16.mxu0 0
        %611 = vmatmul.mubr.bf16.gmra.mrb[0].mxu0 %v493
        %v612 = vpop.f32.mrb[0].mxu0
        %v613 = vadd.f32 0.0, %v612
        %v614 = vpop.f32.mrb[0].mxu0
        %v615 = vpop.f32.mrb[0].mxu0
        %v616 = vadd.f32 0.0, %v615
        %v617 = vpop.f32.mrb[0].mxu0
        %618 = vmatprep.mubr.bf16.mxu0 0
        %619 = vmatmul.mubr.bf16.gmra.mrb[0].mxu0 %v494
        %v620 = vpop.f32.mrb[0].mxu0
        %v621 = vadd.f32 0.0, %v620
        %v622 = vpop.f32.mrb[0].mxu0
        %v623 = vpop.f32.mrb[0].mxu0
        %v624 = vadd.f32 0.0, %v623
        %v625 = vpop.f32.mrb[0].mxu0
        %626 = vmatprep.mubr.bf16.mxu0 0
        %627 = vmatmul.mubr.bf16.gmra.mrb[0].mxu0 %v495
        %v628 = vpop.f32.mrb[0].mxu0
        %v629 = vadd.f32 0.0, %v628
        %v630 = vpop.f32.mrb[0].mxu0
        %v631 = vpop.f32.mrb[0].mxu0
        %v632 = vadd.f32 0.0, %v631
        %v633 = vpop.f32.mrb[0].mxu0
        %634 = vmatprep.mubr.bf16.mxu0 0
        %635 = vmatmul.mubr.bf16.gmra.mrb[0].mxu0 %v496
        %v636 = vpop.f32.mrb[0].mxu0
        %v637 = vadd.f32 0.0, %v636
        %v638 = vpop.f32.mrb[0].mxu0
        %v639 = vpop.f32.mrb[0].mxu0
        %v640 = vadd.f32 0.0, %v639
        %v641 = vpop.f32.mrb[0].mxu0
        %642 = vmatprep.mubr.bf16.mxu0 0
        %643 = vmatmul.mubr.bf16.gmra.mrb[0].mxu0 %v497
        %v644 = vpop.f32.mrb[0].mxu0
        %v645 = vadd.f32 0.0, %v644
        %v646 = vpop.f32.mrb[0].mxu0
        %v647 = vpop.f32.mrb[0].mxu0
        %v648 = vadd.f32 0.0, %v647
        %v649 = vpop.f32.mrb[0].mxu0
        %650 = vdwg.mxu0
        %v651 = vadd.f32 %v410, %v589
        %v652 = vadd.f32 %v411, %v592
        %v653 = vadd.f32 %v412, %v597
        %v654 = vadd.f32 %v413, %v600
        %v655 = vadd.f32 %v414, %v605
        %v656 = vadd.f32 %v415, %v608
        %v657 = vadd.f32 %v416, %v613
        %v658 = vadd.f32 %v417, %v616
        %v659 = vadd.f32 %v418, %v621
        %v660 = vadd.f32 %v419, %v624
        %v661 = vadd.f32 %v420, %v629
        %v662 = vadd.f32 %v421, %v632
        %v663 = vadd.f32 %v422, %v637
        %v664 = vadd.f32 %v423, %v640
        %v665 = vadd.f32 %v424, %v645
        %v666 = vadd.f32 %v425, %v648
        %667 = vst [vmem:[#allocation2] sm:$0xff] %v651
        %668 = vst [vmem:[#allocation2 + $0x8] sm:$0xff] %v652
        %669 = vst [vmem:[#allocation2 + $0x10] sm:$0xff] %v653
        %670 = vst [vmem:[#allocation2 + $0x18] sm:$0xff] %v654
        %671 = vst [vmem:[#allocation2 + $0x20] sm:$0xff] %v655
        %672 = vst [vmem:[#allocation2 + $0x28] sm:$0xff] %v656
        %673 = vst [vmem:[#allocation2 + $0x30] sm:$0xff] %v657
        %674 = vst [vmem:[#allocation2 + $0x38] sm:$0xff] %v658
        %675 = vst [vmem:[#allocation2 + $0x40] sm:$0xff] %v659
        %676 = vst [vmem:[#allocation2 + $0x48] sm:$0xff] %v660
        %677 = vst [vmem:[#allocation2 + $0x50] sm:$0xff] %v661
        %678 = vst [vmem:[#allocation2 + $0x58] sm:$0xff] %v662
        %679 = vst [vmem:[#allocation2 + $0x60] sm:$0xff] %v663
        %680 = vst [vmem:[#allocation2 + $0x68] sm:$0xff] %v664
        %681 = vst [vmem:[#allocation2 + $0x70] sm:$0xff] %v665
        %682 = vst [vmem:[#allocation2 + $0x78] sm:$0xff] %v666
        %p683 = scmp.eq.s32.totalorder %s21, 1
        // Predicated region
        $region86: #{model_forward.3} parent=76 // pred_check
          %p684 = pneg %p683
        $region87: #{model_forward.3} parent=76 // pred_check_branch
          %686 = sbr.rel (%p684) target = $region89
        $region88: #{model_forward.3} parent=76 // pred_region
          %v687 = vld [vmem:[#allocation2] sm:$0xff]
          %v688 = vld [vmem:[#allocation2 + $0x8] sm:$0xff]
          %v689 = vld [vmem:[#allocation2 + $0x10] sm:$0xff]
          %v690 = vld [vmem:[#allocation2 + $0x18] sm:$0xff]
          %v691 = vld [vmem:[#allocation2 + $0x20] sm:$0xff]
          %v692 = vld [vmem:[#allocation2 + $0x28] sm:$0xff]
          %v693 = vld [vmem:[#allocation2 + $0x30] sm:$0xff]
          %v694 = vld [vmem:[#allocation2 + $0x38] sm:$0xff]
          %v695 = vld [vmem:[#allocation2 + $0x40] sm:$0xff]
          %v696 = vld [vmem:[#allocation2 + $0x48] sm:$0xff]
          %v697 = vld [vmem:[#allocation2 + $0x50] sm:$0xff]
          %v698 = vld [vmem:[#allocation2 + $0x58] sm:$0xff]
          %v699 = vld [vmem:[#allocation2 + $0x60] sm:$0xff]
          %v700 = vld [vmem:[#allocation2 + $0x68] sm:$0xff]
          %v701 = vld [vmem:[#allocation2 + $0x70] sm:$0xff]
          %v702 = vld [vmem:[#allocation2 + $0x78] sm:$0xff]
          %v703 = vpack.c.bf16 %v688, %v687
          %v704 = vpack.c.bf16 %v690, %v689
          %v705 = vpack.c.bf16 %v692, %v691
          %v706 = vpack.c.bf16 %v694, %v693
          %v707 = vpack.c.bf16 %v696, %v695
          %v708 = vpack.c.bf16 %v698, %v697
          %v709 = vpack.c.bf16 %v700, %v699
          %v710 = vpack.c.bf16 %v702, %v701
          %v711 = vld [vmem:[%s381] sm:$0xf]
          %v712 = vld [vmem:[%s381 + $0x4] sm:$0xf]
          %v713 = vld [vmem:[%s381 + $0x8] sm:$0xf]
          %v714 = vld [vmem:[%s381 + $0xc] sm:$0xf]
          %v715 = vld [vmem:[%s381 + $0x10] sm:$0xf]
          %v716 = vld [vmem:[%s381 + $0x14] sm:$0xf]
          %v717 = vld [vmem:[%s381 + $0x18] sm:$0xf]
          %v718 = vld [vmem:[%s381 + $0x1c] sm:$0xf]
          %v719 = vld [vmem:[%s381 + $0x20] sm:$0xf]
          %v720 = vld [vmem:[%s381 + $0x24] sm:$0xf]
          %v721 = vld [vmem:[%s381 + $0x28] sm:$0xf]
          %v722 = vld [vmem:[%s381 + $0x2c] sm:$0xf]
          %v723 = vld [vmem:[%s381 + $0x30] sm:$0xf]
          %v724 = vld [vmem:[%s381 + $0x34] sm:$0xf]
          %v725 = vld [vmem:[%s381 + $0x38] sm:$0xf]
          %v726 = vld [vmem:[%s381 + $0x3c] sm:$0xf]
          %v743 = vunpack.c.l.b16 %v711
          %v744 = vunpack.c.l.b16 %v712
          %v745 = vunpack.c.l.b16 %v713
          %v746 = vunpack.c.l.b16 %v714
          %v747 = vunpack.c.l.b16 %v715
          %v748 = vunpack.c.l.b16 %v716
          %v749 = vunpack.c.l.b16 %v717
          %v750 = vunpack.c.l.b16 %v718
          %v751 = vunpack.c.l.b16 %v719
          %v752 = vunpack.c.l.b16 %v720
          %v753 = vunpack.c.l.b16 %v721
          %v754 = vunpack.c.l.b16 %v722
          %v755 = vunpack.c.l.b16 %v723
          %v756 = vunpack.c.l.b16 %v724
          %v757 = vunpack.c.l.b16 %v725
          %v758 = vunpack.c.l.b16 %v726
          %v759 = vpack.c.b16 %v744, %v743
          %v760 = vpack.c.b16 %v746, %v745
          %v761 = vpack.c.b16 %v748, %v747
          %v762 = vpack.c.b16 %v750, %v749
          %v763 = vpack.c.b16 %v752, %v751
          %v764 = vpack.c.b16 %v754, %v753
          %v765 = vpack.c.b16 %v756, %v755
          %v766 = vpack.c.b16 %v758, %v757
          %v775 = vld [vmem:[%s3] sm:$0xf]
          %v776 = vld [vmem:[%s3 + $0x4] sm:$0xf]
          %v777 = vld [vmem:[%s3 + $0x8] sm:$0xf]
          %v778 = vld [vmem:[%s3 + $0xc] sm:$0xf]
          %v779 = vld [vmem:[%s3 + $0x10] sm:$0xf]
          %v780 = vld [vmem:[%s3 + $0x14] sm:$0xf]
          %v781 = vld [vmem:[%s3 + $0x18] sm:$0xf]
          %v782 = vld [vmem:[%s3 + $0x1c] sm:$0xf]
          %v783 = vld [vmem:[%s3 + $0x20] sm:$0xf]
          %v784 = vld [vmem:[%s3 + $0x24] sm:$0xf]
          %v785 = vld [vmem:[%s3 + $0x28] sm:$0xf]
          %v786 = vld [vmem:[%s3 + $0x2c] sm:$0xf]
          %v787 = vld [vmem:[%s3 + $0x30] sm:$0xf]
          %v788 = vld [vmem:[%s3 + $0x34] sm:$0xf]
          %v789 = vld [vmem:[%s3 + $0x38] sm:$0xf]
          %v790 = vld [vmem:[%s3 + $0x3c] sm:$0xf]
          %v791 = vld [vmem:[%s3 + $0x40] sm:$0xf]
          %v792 = vld [vmem:[%s3 + $0x44] sm:$0xf]
          %v793 = vld [vmem:[%s3 + $0x48] sm:$0xf]
          %v794 = vld [vmem:[%s3 + $0x4c] sm:$0xf]
          %v795 = vld [vmem:[%s3 + $0x50] sm:$0xf]
          %v796 = vld [vmem:[%s3 + $0x54] sm:$0xf]
          %v797 = vld [vmem:[%s3 + $0x58] sm:$0xf]
          %v798 = vld [vmem:[%s3 + $0x5c] sm:$0xf]
          %v799 = vld [vmem:[%s3 + $0x60] sm:$0xf]
          %v800 = vld [vmem:[%s3 + $0x64] sm:$0xf]
          %v801 = vld [vmem:[%s3 + $0x68] sm:$0xf]
          %v802 = vld [vmem:[%s3 + $0x6c] sm:$0xf]
          %v803 = vld [vmem:[%s3 + $0x70] sm:$0xf]
          %v804 = vld [vmem:[%s3 + $0x74] sm:$0xf]
          %v805 = vld [vmem:[%s3 + $0x78] sm:$0xf]
          %v806 = vld [vmem:[%s3 + $0x7c] sm:$0xf]
          %v807 = vld [vmem:[%s4] sm:$0x1]
          %v809 = vlaneseq
          %v810 = vshrl.u32 %v809, 7
          %v811 = vsub.s32 0, %v810
          %v812 = vrot.slane %v807, %v811
          %v846 = vunpack.c.l.b16 %v775
          %v847 = vunpack.c.l.b16 %v776
          %v848 = vunpack.c.l.b16 %v777
          %v849 = vunpack.c.l.b16 %v778
          %v850 = vunpack.c.l.b16 %v779
          %v851 = vunpack.c.l.b16 %v780
          %v852 = vunpack.c.l.b16 %v781
          %v853 = vunpack.c.l.b16 %v782
          %v854 = vunpack.c.l.b16 %v783
          %v855 = vunpack.c.l.b16 %v784
          %v856 = vunpack.c.l.b16 %v785
          %v857 = vunpack.c.l.b16 %v786
          %v858 = vunpack.c.l.b16 %v787
          %v859 = vunpack.c.l.b16 %v788
          %v860 = vunpack.c.l.b16 %v789
          %v861 = vunpack.c.l.b16 %v790
          %v862 = vunpack.c.l.b16 %v791
          %v863 = vunpack.c.l.b16 %v792
          %v864 = vunpack.c.l.b16 %v793
          %v865 = vunpack.c.l.b16 %v794
          %v866 = vunpack.c.l.b16 %v795
          %v867 = vunpack.c.l.b16 %v796
          %v868 = vunpack.c.l.b16 %v797
          %v869 = vunpack.c.l.b16 %v798
          %v870 = vunpack.c.l.b16 %v799
          %v871 = vunpack.c.l.b16 %v800
          %v872 = vunpack.c.l.b16 %v801
          %v873 = vunpack.c.l.b16 %v802
          %v874 = vunpack.c.l.b16 %v803
          %v875 = vunpack.c.l.b16 %v804
          %v876 = vunpack.c.l.b16 %v805
          %v877 = vunpack.c.l.b16 %v806
          %v878 = vpack.c.b16 %v847, %v846
          %v879 = vpack.c.b16 %v849, %v848
          %v880 = vpack.c.b16 %v851, %v850
          %v881 = vpack.c.b16 %v853, %v852
          %v882 = vpack.c.b16 %v855, %v854
          %v883 = vpack.c.b16 %v857, %v856
          %v884 = vpack.c.b16 %v859, %v858
          %v885 = vpack.c.b16 %v861, %v860
          %v886 = vpack.c.b16 %v863, %v862
          %v887 = vpack.c.b16 %v865, %v864
          %v888 = vpack.c.b16 %v867, %v866
          %v889 = vpack.c.b16 %v869, %v868
          %v890 = vpack.c.b16 %v871, %v870
          %v891 = vpack.c.b16 %v873, %v872
          %v892 = vpack.c.b16 %v875, %v874
          %v893 = vpack.c.b16 %v877, %v876
          %910 = vmatprep.subr.bf16.mxu0 0
          %911 = vmatpush1.bf16.msra.mxu0 %v878
          %912 = vmatprep.subr.bf16.mxu0 0
          %913 = vmatpush1.bf16.msra.mxu0 %v879
          %914 = vmatprep.subr.bf16.mxu0 0
          %915 = vmatpush1.bf16.msra.mxu0 %v880
          %916 = vmatprep.subr.bf16.mxu0 0
          %917 = vmatpush1.bf16.msra.mxu0 %v881
          %918 = vmatprep.subr.bf16.mxu0 0
          %919 = vmatpush1.bf16.msra.mxu0 %v882
          %920 = vmatprep.subr.bf16.mxu0 0
          %921 = vmatpush1.bf16.msra.mxu0 %v883
          %922 = vmatprep.subr.bf16.mxu0 0
          %923 = vmatpush1.bf16.msra.mxu0 %v884
          %924 = vmatprep.subr.bf16.mxu0 0
          %925 = vmatpush1.bf16.msra.mxu0 %v885
          %926 = vmatprep.subr.bf16.mxu0 0
          %927 = vmatpush1.bf16.msra.mxu0 %v886
          %928 = vmatprep.subr.bf16.mxu0 0
          %929 = vmatpush1.bf16.msra.mxu0 %v887
          %930 = vmatprep.subr.bf16.mxu0 0
          %931 = vmatpush1.bf16.msra.mxu0 %v888
          %932 = vmatprep.subr.bf16.mxu0 0
          %933 = vmatpush1.bf16.msra.mxu0 %v889
          %934 = vmatprep.subr.bf16.mxu0 0
          %935 = vmatpush1.bf16.msra.mxu0 %v890
          %936 = vmatprep.subr.bf16.mxu0 0
          %937 = vmatpush1.bf16.msra.mxu0 %v891
          %938 = vmatprep.subr.bf16.mxu0 0
          %939 = vmatpush1.bf16.msra.mxu0 %v892
          %940 = vmatprep.subr.bf16.mxu0 0
          %941 = vmatpush1.bf16.msra.mxu0 %v893
          %942 = vmatprep.mubr.bf16.mxu0 %v703
          %943 = vmatmul.mubr.bf16.gmra.mrb[0].mxu0 %v759
          %v944 = vpop.f32.mrb[0].mxu0
          %v945 = vadd.f32 %v812, %v944
          %v946 = vpop.f32.mrb[0].mxu0
          %v947 = vpop.f32.mrb[0].mxu0
          %v948 = vadd.f32 %v812, %v947
          %v949 = vpop.f32.mrb[0].mxu0
          %950 = vmatprep.mubr.bf16.mxu0 %v704
          %951 = vmatmul.mubr.bf16.gmra.mrb[0].mxu0 %v760
          %v952 = vpop.f32.mrb[0].mxu0
          %v953 = vadd.f32 %v812, %v952
          %v954 = vpop.f32.mrb[0].mxu0
          %v955 = vpop.f32.mrb[0].mxu0
          %v956 = vadd.f32 %v812, %v955
          %v957 = vpop.f32.mrb[0].mxu0
          %958 = vmatprep.mubr.bf16.mxu0 %v705
          %959 = vmatmul.mubr.bf16.gmra.mrb[0].mxu0 %v761
          %v960 = vpop.f32.mrb[0].mxu0
          %v961 = vadd.f32 %v812, %v960
          %v962 = vpop.f32.mrb[0].mxu0
          %v963 = vpop.f32.mrb[0].mxu0
          %v964 = vadd.f32 %v812, %v963
          %v965 = vpop.f32.mrb[0].mxu0
          %966 = vmatprep.mubr.bf16.mxu0 %v706
          %967 = vmatmul.mubr.bf16.gmra.mrb[0].mxu0 %v762
          %v968 = vpop.f32.mrb[0].mxu0
          %v969 = vadd.f32 %v812, %v968
          %v970 = vpop.f32.mrb[0].mxu0
          %v971 = vpop.f32.mrb[0].mxu0
          %v972 = vadd.f32 %v812, %v971
          %v973 = vpop.f32.mrb[0].mxu0
          %974 = vmatprep.mubr.bf16.mxu0 %v707
          %975 = vmatmul.mubr.bf16.gmra.mrb[0].mxu0 %v763
          %v976 = vpop.f32.mrb[0].mxu0
          %v977 = vadd.f32 %v812, %v976
          %v978 = vpop.f32.mrb[0].mxu0
          %v979 = vpop.f32.mrb[0].mxu0
          %v980 = vadd.f32 %v812, %v979
          %v981 = vpop.f32.mrb[0].mxu0
          %982 = vmatprep.mubr.bf16.mxu0 %v708
          %983 = vmatmul.mubr.bf16.gmra.mrb[0].mxu0 %v764
          %v984 = vpop.f32.mrb[0].mxu0
          %v985 = vadd.f32 %v812, %v984
          %v986 = vpop.f32.mrb[0].mxu0
          %v987 = vpop.f32.mrb[0].mxu0
          %v988 = vadd.f32 %v812, %v987
          %v989 = vpop.f32.mrb[0].mxu0
          %990 = vmatprep.mubr.bf16.mxu0 %v709
          %991 = vmatmul.mubr.bf16.gmra.mrb[0].mxu0 %v765
          %v992 = vpop.f32.mrb[0].mxu0
          %v993 = vadd.f32 %v812, %v992
          %v994 = vpop.f32.mrb[0].mxu0
          %v995 = vpop.f32.mrb[0].mxu0
          %v996 = vadd.f32 %v812, %v995
          %v997 = vpop.f32.mrb[0].mxu0
          %998 = vmatprep.mubr.bf16.mxu0 %v710
          %999 = vmatmul.mubr.bf16.gmra.mrb[0].mxu0 %v766
          %v1000 = vpop.f32.mrb[0].mxu0
          %v1001 = vadd.f32 %v812, %v1000
          %v1002 = vpop.f32.mrb[0].mxu0
          %v1003 = vpop.f32.mrb[0].mxu0
          %v1004 = vadd.f32 %v812, %v1003
          %v1005 = vpop.f32.mrb[0].mxu0
          %1006 = vdwg.mxu0
          %v1007 = vmax.f32 %v945, 0.0
          %v1008 = vmax.f32 %v948, 0.0
          %v1009 = vmax.f32 %v953, 0.0
          %v1010 = vmax.f32 %v956, 0.0
          %v1011 = vmax.f32 %v961, 0.0
          %v1012 = vmax.f32 %v964, 0.0
          %v1013 = vmax.f32 %v969, 0.0
          %v1014 = vmax.f32 %v972, 0.0
          %v1015 = vmax.f32 %v977, 0.0
          %v1016 = vmax.f32 %v980, 0.0
          %v1017 = vmax.f32 %v985, 0.0
          %v1018 = vmax.f32 %v988, 0.0
          %v1019 = vmax.f32 %v993, 0.0
          %v1020 = vmax.f32 %v996, 0.0
          %v1021 = vmax.f32 %v1001, 0.0
          %v1022 = vmax.f32 %v1004, 0.0
          %v1023 = vpack.c.bf16 %v1008, %v1007
          %v1024 = vpack.c.bf16 %v1010, %v1009
          %v1025 = vpack.c.bf16 %v1012, %v1011
          %v1026 = vpack.c.bf16 %v1014, %v1013
          %v1027 = vpack.c.bf16 %v1016, %v1015
          %v1028 = vpack.c.bf16 %v1018, %v1017
          %v1029 = vpack.c.bf16 %v1020, %v1019
          %v1030 = vpack.c.bf16 %v1022, %v1021
          %v1039 = vunpack.c.l.b16 %v1023
          %v1040 = vunpack.c.h.b16 %v1023
          %v1041 = vunpack.c.l.b16 %v1024
          %v1042 = vunpack.c.h.b16 %v1024
          %v1043 = vunpack.c.l.b16 %v1025
          %v1044 = vunpack.c.h.b16 %v1025
          %v1045 = vunpack.c.l.b16 %v1026
          %v1046 = vunpack.c.h.b16 %v1026
          %v1047 = vunpack.c.l.b16 %v1027
          %v1048 = vunpack.c.h.b16 %v1027
          %v1049 = vunpack.c.l.b16 %v1028
          %v1050 = vunpack.c.h.b16 %v1028
          %v1051 = vunpack.c.l.b16 %v1029
          %v1052 = vunpack.c.h.b16 %v1029
          %v1053 = vunpack.c.l.b16 %v1030
          %v1054 = vunpack.c.h.b16 %v1030
          %v1055 = vpack.c.b16 %v1039, %v1039
          %v1056 = vpack.c.b16 %v1040, %v1040
          %v1057 = vpack.c.b16 %v1041, %v1041
          %v1058 = vpack.c.b16 %v1042, %v1042
          %v1059 = vpack.c.b16 %v1043, %v1043
          %v1060 = vpack.c.b16 %v1044, %v1044
          %v1061 = vpack.c.b16 %v1045, %v1045
          %v1062 = vpack.c.b16 %v1046, %v1046
          %v1063 = vpack.c.b16 %v1047, %v1047
          %v1064 = vpack.c.b16 %v1048, %v1048
          %v1065 = vpack.c.b16 %v1049, %v1049
          %v1066 = vpack.c.b16 %v1050, %v1050
          %v1067 = vpack.c.b16 %v1051, %v1051
          %v1068 = vpack.c.b16 %v1052, %v1052
          %v1069 = vpack.c.b16 %v1053, %v1053
          %v1070 = vpack.c.b16 %v1054, %v1054
          %1087 = vst [vmem:[%s387] sm:$0xf] %v1055
          %1088 = vst [vmem:[%s387 + $0x4] sm:$0xf] %v1056
          %1089 = vst [vmem:[%s387 + $0x8] sm:$0xf] %v1057
          %1090 = vst [vmem:[%s387 + $0xc] sm:$0xf] %v1058
          %1091 = vst [vmem:[%s387 + $0x10] sm:$0xf] %v1059
          %1092 = vst [vmem:[%s387 + $0x14] sm:$0xf] %v1060
          %1093 = vst [vmem:[%s387 + $0x18] sm:$0xf] %v1061
          %1094 = vst [vmem:[%s387 + $0x1c] sm:$0xf] %v1062
          %1095 = vst [vmem:[%s387 + $0x20] sm:$0xf] %v1063
          %1096 = vst [vmem:[%s387 + $0x24] sm:$0xf] %v1064
          %1097 = vst [vmem:[%s387 + $0x28] sm:$0xf] %v1065
          %1098 = vst [vmem:[%s387 + $0x2c] sm:$0xf] %v1066
          %1099 = vst [vmem:[%s387 + $0x30] sm:$0xf] %v1067
          %1100 = vst [vmem:[%s387 + $0x34] sm:$0xf] %v1068
          %1101 = vst [vmem:[%s387 + $0x38] sm:$0xf] %v1069
          %1102 = vst [vmem:[%s387 + $0x3c] sm:$0xf] %v1070
        $region89: #{model_forward.3} parent=76 // pred_fallthru
          _
        %s1103 = smul.u32 16, %s20
        %p1104 = scmp.lt.s32.totalorder %s1103, 31
        %s1105 = scalar_select %p1104, %s1103, 31
        %s1106 = smul.addr %s1105, 4
        %s1107 = scalar_lea.vmem %s5, %s1106
        // Predicated region
        $region90: #{model_forward.3} parent=76 // pred_check
          %p1108 = pneg %p168
        $region91: #{model_forward.3} parent=76 // pred_check_branch
          %1110 = sbr.rel (%p1108) target = $region93
        $region92: #{model_forward.3} parent=76 // pred_region
          %s1111 = smul.u32 16, %s20
        $region93: #{model_forward.3} parent=76 // pred_fallthru
          _
      $region77: #{model_forward.3} parent=5 // pred_fallthru
        _
      %p1112 = scmp.le.s32.totalorder 2, %s11
      // Predicated region
      $region94: #{model_forward.3} parent=5 // pred_check
        %p1113 = pneg %p1112
      $region95: #{model_forward.3} parent=5 // pred_check_branch
        %1115 = sbr.rel (%p1113) target = $region97
      $region96: #{model_forward.3} parent=5 // pred_region
        %s1116 = ssub.s32 %s11, 2
        // Predicated region
        $region98: #{model_forward.3} parent=96 // pred_check
          %p1117 = pneg %p174
        $region99: #{model_forward.3} parent=96 // pred_check_branch
          %1119 = sbr.rel (%p1117) target = $region101
        $region100: #{model_forward.3} parent=96 // pred_region
          %s1120 = smul.u32 16, %s22
          %p1121 = scmp.lt.s32.totalorder %s1120, 31
          %s1122 = scalar_select %p1121, %s1120, 31
          %s1123 = smul.addr %s1122, 4
          %s1124 = scalar_lea.vmem %s5, %s1123
        $region101: #{model_forward.3} parent=96 // pred_fallthru
          _
      $region97: #{model_forward.3} parent=5 // pred_fallthru
        _
    $region6: #{model_forward.3} parent=1 // loop_footer
      %s15 = sadd.s32 1, %s11
    $region7: #{model_forward.3} parent=1 // loop_footer_branch
      %10 = sbr.rel target = $region3
    $region8: #{model_forward.3} parent=1 // loop_exit
      _

</llo_original>
